<compile_context>
chip_gen: v7x
topology: tpu7x:2x2x1
jax: 0.10.0
libtpu: 0.0.40
codegen_flags: <defaults>
</compile_context>

<pallas_src>
import jax
import jax.numpy as jnp
from jax import lax
from jax.experimental import pallas as pl
from jax.experimental.pallas import tpu as pltpu


NPAD = 128      # padded channel / feature width (lane-dense outputs)
K1_PAD = 32     # conv1 contraction: 1*5*5 = 25  -> 32
K2_PAD = 256    # conv2 contraction: 6*5*5 = 150 -> 256


# ----------------------------------------------------------------------------
# Pallas kernels
# ----------------------------------------------------------------------------

def _conv_relu_pool_kernel(p_ref, w_ref, b_ref, o_ref):
    # p: (4, M, K) im2col patches — branch i holds the patches of conv-output
    #    position (2r+dh, 2c+dw) for the 4 positions of each 2x2 pool window.
    # o: (M, 128) = max_i relu(p[i] @ w + b)   (fused conv + bias + ReLU + pool)
    w = w_ref[...]
    b = b_ref[...]

    def branch(i):
        acc = jnp.dot(p_ref[i], w, preferred_element_type=jnp.float32)
        return jnp.maximum(acc + b, 0.0)

    o_ref[...] = jnp.maximum(jnp.maximum(branch(0), branch(1)),
                             jnp.maximum(branch(2), branch(3)))


def _mlp_head_kernel(x_ref, w1_ref, b1_ref, w2_ref, b2_ref, w3_ref, b3_ref, o_ref):
    # x: (B, 2048) -> relu(fc1) -> relu(fc2) -> fc3 -> softmax.  All widths
    # padded to 128; padded class logits have bias -1e30 so their prob is 0.
    h = jnp.dot(x_ref[...], w1_ref[...], preferred_element_type=jnp.float32) + b1_ref[...]
    h = jnp.maximum(h, 0.0)
    h = jnp.dot(h, w2_ref[...], preferred_element_type=jnp.float32) + b2_ref[...]
    h = jnp.maximum(h, 0.0)
    logits = jnp.dot(h, w3_ref[...], preferred_element_type=jnp.float32) + b3_ref[...]
    m = jnp.max(logits, axis=-1, keepdims=True)
    e = jnp.exp(logits - m)
    s = jnp.sum(e, axis=-1, keepdims=True)
    o_ref[...] = (e * pl.reciprocal(s, approx=True)).astype(o_ref.dtype)


# ----------------------------------------------------------------------------
# pallas_call wrappers (tiny shapes -> whole arrays resident in VMEM)
# ----------------------------------------------------------------------------

def _vmem():
    return pl.BlockSpec(memory_space=pltpu.MemorySpace.VMEM)


def conv_relu_pool(patches, w, b):
    _, M, _ = patches.shape
    return pl.pallas_call(
        _conv_relu_pool_kernel,
        out_shape=jax.ShapeDtypeStruct((M, NPAD), jnp.float32),
        in_specs=[_vmem(), _vmem(), _vmem()],
        out_specs=_vmem(),
    )(patches, w, b)


def mlp_head(x, w1, b1, w2, b2, w3, b3):
    B = x.shape[0]
    return pl.pallas_call(
        _mlp_head_kernel,
        out_shape=jax.ShapeDtypeStruct((B, NPAD), jnp.float32),
        in_specs=[_vmem()] * 7,
        out_specs=_vmem(),
    )(x, w1, b1, w2, b2, w3, b3)


# ----------------------------------------------------------------------------
# Glue: im2col patches for a fused (valid k x k conv) + ReLU + 2x2 max-pool
# ----------------------------------------------------------------------------

def _pool_conv_patches(x, k, k_pad):
    # x: (B, H, W, C) f32.  Returns (4, B*Hp*Wp, k_pad):
    #   row    m = b*Hp*Wp + i*Wp + j        (pooled output position)
    #   branch p = dh*2 + dw                 (position inside the 2x2 window)
    #   column   = (kh*k + kw)*C + c         (matches weight packing below)
    B, H, W, C = x.shape
    Ho, Wo = H - k + 1, W - k + 1
    Hp, Wp = Ho // 2, Wo // 2
    cols = [x[:, kh:kh + Ho, kw:kw + Wo, :] for kh in range(k) for kw in range(k)]
    pat = jnp.concatenate(cols, axis=-1)                          # (B, Ho, Wo, k*k*C)
    branches = [pat[:, dh::2, dw::2, :].reshape(B * Hp * Wp, k * k * C)
                for dh in (0, 1) for dw in (0, 1)]
    p = jnp.stack(branches, axis=0)                               # (4, B*Hp*Wp, k*k*C)
    if k_pad > k * k * C:
        p = jnp.pad(p, ((0, 0), (0, 0), (0, k_pad - k * k * C)))
    return p


# ----------------------------------------------------------------------------
# One-time parameter packing (transpose / pad / cast hoisted out of the forward)
# ----------------------------------------------------------------------------

def pack_params(params):
    f32 = jnp.float32

    def pack_conv(w, b, cin, cout, k, k_pad):
        # torch layout (Cout, Cin, k, k) -> (k*k*Cin, Cout), row = (kh*k+kw)*Cin + c
        wm = jnp.transpose(w.astype(f32), (2, 3, 1, 0)).reshape(k * k * cin, cout)
        wp = jnp.zeros((k_pad, NPAD), f32).at[:k * k * cin, :cout].set(wm)
        bp = jnp.zeros((1, NPAD), f32).at[0, :cout].set(b.astype(f32))
        return wp, bp

    c1w, c1b = pack_conv(params["conv1_w"], params["conv1_b"], 1, 6, 5, K1_PAD)
    c2w, c2b = pack_conv(params["conv2_w"], params["conv2_b"], 6, 16, 5, K2_PAD)

    # fc1: torch input index = c*16 + s  (c = channel 0..15, s = i*4 + j)
    #      kernel input index = s*128 + c (channels padded to 128 lanes), so
    #      permute the weight columns once here -> no NCHW transpose at runtime.
    w1 = params["fc1_w"].astype(f32).reshape(120, 16, 16)          # [out, c, s]
    w1 = jnp.transpose(w1, (2, 1, 0))                              # [s, c, out]
    f1w = jnp.zeros((16, NPAD, NPAD), f32).at[:, :16, :120].set(w1)
    f1w = f1w.reshape(16 * NPAD, NPAD)                             # row = s*128 + c
    f1b = jnp.zeros((1, NPAD), f32).at[0, :120].set(params["fc1_b"].astype(f32))

    f2w = jnp.zeros((NPAD, NPAD), f32).at[:120, :84].set(params["fc2_w"].astype(f32).T)
    f2b = jnp.zeros((1, NPAD), f32).at[0, :84].set(params["fc2_b"].astype(f32))

    f3w = jnp.zeros((NPAD, NPAD), f32).at[:84, :10].set(params["fc3_w"].astype(f32).T)
    # -1e30 bias on padded class logits -> exp underflows to exactly 0 in softmax
    f3b = jnp.full((1, NPAD), -1e30, f32).at[0, :10].set(params["fc3_b"].astype(f32))

    return {"conv1_w": c1w, "conv1_b": c1b, "conv2_w": c2w, "conv2_b": c2b,
            "fc1_w": f1w, "fc1_b": f1b, "fc2_w": f2w, "fc2_b": f2b,
            "fc3_w": f3w, "fc3_b": f3b}


# ----------------------------------------------------------------------------
# Full forward pass (takes packed params)
# ----------------------------------------------------------------------------

@jax.jit
def cnn_forward(x_nchw, p):
    B = x_nchw.shape[0]
    x = jnp.transpose(x_nchw, (0, 2, 3, 1)).astype(jnp.float32)     # (B, 28, 28, 1)

    # stage 1: conv1(1->6, k5) + ReLU + 2x2 maxpool — one fused kernel
    p1 = _pool_conv_patches(x, 5, K1_PAD)                           # (4, B*144, 32)
    y1 = conv_relu_pool(p1, p["conv1_w"], p["conv1_b"])             # (B*144, 128)

    # stage 2: conv2(6->16, k5) + ReLU + 2x2 maxpool — one fused kernel
    y1 = y1.reshape(B, 12, 12, NPAD)[:, :, :, :6]                   # (B, 12, 12, 6)
    p2 = _pool_conv_patches(y1, 5, K2_PAD)                          # (4, B*16, 256)
    y2 = conv_relu_pool(p2, p["conv2_w"], p["conv2_b"])             # (B*16, 128)

    # flatten: fc1 weight columns were permuted at pack time to consume this
    # (spatial, padded-channel) layout directly — contiguous reshape only.
    flat = y2.reshape(B, 16 * NPAD)                                 # (B, 2048)

    # fused fc1+fc2+fc3+softmax; padded classes come out as exactly 0.
    probs = mlp_head(flat, p["fc1_w"], p["fc1_b"], p["fc2_w"], p["fc2_b"],
                     p["fc3_w"], p["fc3_b"])                        # (B, 128)
    return probs[:, :10]


# ----------------------------------------------------------------------------
# Deterministic parameter init (shapes follow the torch module) + pure-JAX ref
# ----------------------------------------------------------------------------

def init_params(key):
    ks = jax.random.split(key, 10)

    def u(k, shape, fan_in):
        bound = 1.0 / jnp.sqrt(jnp.float32(fan_in))
        return jax.random.uniform(k, shape, jnp.float32, -bound, bound)

    return {
        "conv1_w": u(ks[0], (6, 1, 5, 5), 1 * 5 * 5),
        "conv1_b": u(ks[1], (6,), 1 * 5 * 5),
        "conv2_w": u(ks[2], (16, 6, 5, 5), 6 * 5 * 5),
        "conv2_b": u(ks[3], (16,), 6 * 5 * 5),
        "fc1_w":   u(ks[4], (120, 256), 256),
        "fc1_b":   u(ks[5], (120,), 256),
        "fc2_w":   u(ks[6], (84, 120), 120),
        "fc2_b":   u(ks[7], (84,), 120),
        "fc3_w":   u(ks[8], (10, 84), 84),
        "fc3_b":   u(ks[9], (10,), 84),
    }


def reference_forward(x_nchw, params):
    dn = ("NCHW", "OIHW", "NCHW")
    hi = lax.Precision.HIGHEST
    y = lax.conv_general_dilated(x_nchw, params["conv1_w"], (1, 1), "VALID",
                                 dimension_numbers=dn, precision=hi)
    y = jnp.maximum(y + params["conv1_b"][None, :, None, None], 0.0)
    y = lax.reduce_window(y, -jnp.inf, lax.max, (1, 1, 2, 2), (1, 1, 2, 2), "VALID")
    y = lax.conv_general_dilated(y, params["conv2_w"], (1, 1), "VALID",
                                 dimension_numbers=dn, precision=hi)
    y = jnp.maximum(y + params["conv2_b"][None, :, None, None], 0.0)
    y = lax.reduce_window(y, -jnp.inf, lax.max, (1, 1, 2, 2), (1, 1, 2, 2), "VALID")
    f = y.reshape(y.shape[0], -1)                                   # (B, 256) NCHW order
    h = jnp.maximum(f @ params["fc1_w"].T + params["fc1_b"], 0.0)
    h = jnp.maximum(h @ params["fc2_w"].T + params["fc2_b"], 0.0)
    logits = h @ params["fc3_w"].T + params["fc3_b"]
    return jax.nn.softmax(logits, axis=-1)


if __name__ == "__main__":
    params = init_params(jax.random.PRNGKey(1))
    packed = pack_params(params)                                    # one-time packing

    # Input must be (B, 1, 28, 28) so 16*4*4 lines up with fc1 (LeNet geometry).
    x = jax.random.normal(jax.random.PRNGKey(0), (2, 1, 28, 28), dtype=jnp.float32)

    out = jax.block_until_ready(cnn_forward(x, packed))

    assert out.shape == (2, 10), out.shape
    assert bool(jnp.all(jnp.isfinite(out)))
    # softmax rows should sum to ~1 (approx EUP reciprocal -> loose tolerance)
    assert bool(jnp.all(jnp.abs(jnp.sum(out, axis=-1) - 1.0) < 5e-3))
    # cross-check against a pure-JAX reference of the torch module
    ref = reference_forward(x, params)
    assert bool(jnp.max(jnp.abs(out - ref)) < 1e-2), jnp.max(jnp.abs(out - ref))
    print("KERNEL_OK")
</pallas_src>

<mosaic_0001>
module attributes {stable_mosaic.version = 11 : i64} {
  func.func @_conv_relu_pool_kernel(%arg0: memref<4x288x32xf32, #tpu.memory_space<vmem>>, %arg1: memref<32x128xf32, #tpu.memory_space<vmem>>, %arg2: memref<1x128xf32, #tpu.memory_space<vmem>>, %arg3: memref<288x128xf32, #tpu.memory_space<vmem>>) attributes {dimension_semantics = [], scalar_prefetch = 0 : i64, scratch_operands = 0 : i64, tpu.core_type = #tpu.core_type<tc>} {
    %c0 = arith.constant 0 : index
    %c0_0 = arith.constant 0 : index
    %0 = vector.load %arg1[%c0, %c0_0] : memref<32x128xf32, #tpu.memory_space<vmem>>, vector<32x128xf32>
    %c0_1 = arith.constant 0 : index
    %c0_2 = arith.constant 0 : index
    %1 = vector.load %arg2[%c0_1, %c0_2] : memref<1x128xf32, #tpu.memory_space<vmem>>, vector<1x128xf32>
    %c0_3 = arith.constant 0 : index
    %c0_4 = arith.constant 0 : index
    %c0_5 = arith.constant 0 : index
    %2 = vector.load %arg0[%c0_3, %c0_4, %c0_5] : memref<4x288x32xf32, #tpu.memory_space<vmem>>, vector<1x288x32xf32>
    %3 = vector.shape_cast %2 : vector<1x288x32xf32> to vector<288x32xf32>
    %cst = arith.constant dense<0.000000e+00> : vector<288x128xf32>
    %4 = tpu.matmul %3, %0, %cst {dimension_numbers = #tpu.dot_dimension_numbers<[1], [0], [0], [1], [0, 0, 1, 1], [], []>} : vector<288x32xf32>, vector<32x128xf32>, vector<288x128xf32> -> vector<288x128xf32>
    %5 = vector.broadcast %1 : vector<1x128xf32> to vector<288x128xf32>
    %6 = arith.addf %4, %5 : vector<288x128xf32>
    %cst_6 = arith.constant 0.000000e+00 : f32
    %7 = vector.broadcast %cst_6 : f32 to vector<288x128xf32>
    %8 = arith.maximumf %6, %7 : vector<288x128xf32>
    %c1 = arith.constant 1 : index
    %c0_7 = arith.constant 0 : index
    %c0_8 = arith.constant 0 : index
    %9 = vector.load %arg0[%c1, %c0_7, %c0_8] : memref<4x288x32xf32, #tpu.memory_space<vmem>>, vector<1x288x32xf32>
    %10 = vector.shape_cast %9 : vector<1x288x32xf32> to vector<288x32xf32>
    %cst_9 = arith.constant dense<0.000000e+00> : vector<288x128xf32>
    %11 = tpu.matmul %10, %0, %cst_9 {dimension_numbers = #tpu.dot_dimension_numbers<[1], [0], [0], [1], [0, 0, 1, 1], [], []>} : vector<288x32xf32>, vector<32x128xf32>, vector<288x128xf32> -> vector<288x128xf32>
    %12 = vector.broadcast %1 : vector<1x128xf32> to vector<288x128xf32>
    %13 = arith.addf %11, %12 : vector<288x128xf32>
    %cst_10 = arith.constant 0.000000e+00 : f32
    %14 = vector.broadcast %cst_10 : f32 to vector<288x128xf32>
    %15 = arith.maximumf %13, %14 : vector<288x128xf32>
    %16 = arith.maximumf %8, %15 : vector<288x128xf32>
    %c2 = arith.constant 2 : index
    %c0_11 = arith.constant 0 : index
    %c0_12 = arith.constant 0 : index
    %17 = vector.load %arg0[%c2, %c0_11, %c0_12] : memref<4x288x32xf32, #tpu.memory_space<vmem>>, vector<1x288x32xf32>
    %18 = vector.shape_cast %17 : vector<1x288x32xf32> to vector<288x32xf32>
    %cst_13 = arith.constant dense<0.000000e+00> : vector<288x128xf32>
    %19 = tpu.matmul %18, %0, %cst_13 {dimension_numbers = #tpu.dot_dimension_numbers<[1], [0], [0], [1], [0, 0, 1, 1], [], []>} : vector<288x32xf32>, vector<32x128xf32>, vector<288x128xf32> -> vector<288x128xf32>
    %20 = vector.broadcast %1 : vector<1x128xf32> to vector<288x128xf32>
    %21 = arith.addf %19, %20 : vector<288x128xf32>
    %cst_14 = arith.constant 0.000000e+00 : f32
    %22 = vector.broadcast %cst_14 : f32 to vector<288x128xf32>
    %23 = arith.maximumf %21, %22 : vector<288x128xf32>
    %c3 = arith.constant 3 : index
    %c0_15 = arith.constant 0 : index
    %c0_16 = arith.constant 0 : index
    %24 = vector.load %arg0[%c3, %c0_15, %c0_16] : memref<4x288x32xf32, #tpu.memory_space<vmem>>, vector<1x288x32xf32>
    %25 = vector.shape_cast %24 : vector<1x288x32xf32> to vector<288x32xf32>
    %cst_17 = arith.constant dense<0.000000e+00> : vector<288x128xf32>
    %26 = tpu.matmul %25, %0, %cst_17 {dimension_numbers = #tpu.dot_dimension_numbers<[1], [0], [0], [1], [0, 0, 1, 1], [], []>} : vector<288x32xf32>, vector<32x128xf32>, vector<288x128xf32> -> vector<288x128xf32>
    %27 = vector.broadcast %1 : vector<1x128xf32> to vector<288x128xf32>
    %28 = arith.addf %26, %27 : vector<288x128xf32>
    %cst_18 = arith.constant 0.000000e+00 : f32
    %29 = vector.broadcast %cst_18 : f32 to vector<288x128xf32>
    %30 = arith.maximumf %28, %29 : vector<288x128xf32>
    %31 = arith.maximumf %23, %30 : vector<288x128xf32>
    %32 = arith.maximumf %16, %31 : vector<288x128xf32>
    %c0_19 = arith.constant 0 : index
    %c0_20 = arith.constant 0 : index
    %33 = vector.load %arg3[%c0_19, %c0_20] : memref<288x128xf32, #tpu.memory_space<vmem>>, vector<288x128xf32>
    tpu.vector_store %arg3[%c0_19, %c0_20], %32 {strides = array<i32>} : memref<288x128xf32, #tpu.memory_space<vmem>>, vector<288x128xf32>,
    return
  }
}

module attributes {stable_mosaic.version = 11 : i64} {
  func.func @_conv_relu_pool_kernel(%arg0: memref<4x32x256xf32, #tpu.memory_space<vmem>>, %arg1: memref<256x128xf32, #tpu.memory_space<vmem>>, %arg2: memref<1x128xf32, #tpu.memory_space<vmem>>, %arg3: memref<32x128xf32, #tpu.memory_space<vmem>>) attributes {dimension_semantics = [], scalar_prefetch = 0 : i64, scratch_operands = 0 : i64, tpu.core_type = #tpu.core_type<tc>} {
    %c0 = arith.constant 0 : index
    %c0_0 = arith.constant 0 : index
    %0 = vector.load %arg1[%c0, %c0_0] : memref<256x128xf32, #tpu.memory_space<vmem>>, vector<256x128xf32>
    %c0_1 = arith.constant 0 : index
    %c0_2 = arith.constant 0 : index
    %1 = vector.load %arg2[%c0_1, %c0_2] : memref<1x128xf32, #tpu.memory_space<vmem>>, vector<1x128xf32>
    %c0_3 = arith.constant 0 : index
    %c0_4 = arith.constant 0 : index
    %c0_5 = arith.constant 0 : index
    %2 = vector.load %arg0[%c0_3, %c0_4, %c0_5] : memref<4x32x256xf32, #tpu.memory_space<vmem>>, vector<1x32x256xf32>
    %3 = vector.shape_cast %2 : vector<1x32x256xf32> to vector<32x256xf32>
    %cst = arith.constant dense<0.000000e+00> : vector<32x128xf32>
    %4 = tpu.matmul %3, %0, %cst {dimension_numbers = #tpu.dot_dimension_numbers<[1], [0], [0], [1], [0, 0, 1, 1], [], []>} : vector<32x256xf32>, vector<256x128xf32>, vector<32x128xf32> -> vector<32x128xf32>
    %5 = vector.broadcast %1 : vector<1x128xf32> to vector<32x128xf32>
    %6 = arith.addf %4, %5 : vector<32x128xf32>
    %cst_6 = arith.constant 0.000000e+00 : f32
    %7 = vector.broadcast %cst_6 : f32 to vector<32x128xf32>
    %8 = arith.maximumf %6, %7 : vector<32x128xf32>
    %c1 = arith.constant 1 : index
    %c0_7 = arith.constant 0 : index
    %c0_8 = arith.constant 0 : index
    %9 = vector.load %arg0[%c1, %c0_7, %c0_8] : memref<4x32x256xf32, #tpu.memory_space<vmem>>, vector<1x32x256xf32>
    %10 = vector.shape_cast %9 : vector<1x32x256xf32> to vector<32x256xf32>
    %cst_9 = arith.constant dense<0.000000e+00> : vector<32x128xf32>
    %11 = tpu.matmul %10, %0, %cst_9 {dimension_numbers = #tpu.dot_dimension_numbers<[1], [0], [0], [1], [0, 0, 1, 1], [], []>} : vector<32x256xf32>, vector<256x128xf32>, vector<32x128xf32> -> vector<32x128xf32>
    %12 = vector.broadcast %1 : vector<1x128xf32> to vector<32x128xf32>
    %13 = arith.addf %11, %12 : vector<32x128xf32>
    %cst_10 = arith.constant 0.000000e+00 : f32
    %14 = vector.broadcast %cst_10 : f32 to vector<32x128xf32>
    %15 = arith.maximumf %13, %14 : vector<32x128xf32>
    %16 = arith.maximumf %8, %15 : vector<32x128xf32>
    %c2 = arith.constant 2 : index
    %c0_11 = arith.constant 0 : index
    %c0_12 = arith.constant 0 : index
    %17 = vector.load %arg0[%c2, %c0_11, %c0_12] : memref<4x32x256xf32, #tpu.memory_space<vmem>>, vector<1x32x256xf32>
    %18 = vector.shape_cast %17 : vector<1x32x256xf32> to vector<32x256xf32>
    %cst_13 = arith.constant dense<0.000000e+00> : vector<32x128xf32>
    %19 = tpu.matmul %18, %0, %cst_13 {dimension_numbers = #tpu.dot_dimension_numbers<[1], [0], [0], [1], [0, 0, 1, 1], [], []>} : vector<32x256xf32>, vector<256x128xf32>, vector<32x128xf32> -> vector<32x128xf32>
    %20 = vector.broadcast %1 : vector<1x128xf32> to vector<32x128xf32>
    %21 = arith.addf %19, %20 : vector<32x128xf32>
    %cst_14 = arith.constant 0.000000e+00 : f32
    %22 = vector.broadcast %cst_14 : f32 to vector<32x128xf32>
    %23 = arith.maximumf %21, %22 : vector<32x128xf32>
    %c3 = arith.constant 3 : index
    %c0_15 = arith.constant 0 : index
    %c0_16 = arith.constant 0 : index
    %24 = vector.load %arg0[%c3, %c0_15, %c0_16] : memref<4x32x256xf32, #tpu.memory_space<vmem>>, vector<1x32x256xf32>
    %25 = vector.shape_cast %24 : vector<1x32x256xf32> to vector<32x256xf32>
    %cst_17 = arith.constant dense<0.000000e+00> : vector<32x128xf32>
    %26 = tpu.matmul %25, %0, %cst_17 {dimension_numbers = #tpu.dot_dimension_numbers<[1], [0], [0], [1], [0, 0, 1, 1], [], []>} : vector<32x256xf32>, vector<256x128xf32>, vector<32x128xf32> -> vector<32x128xf32>
    %27 = vector.broadcast %1 : vector<1x128xf32> to vector<32x128xf32>
    %28 = arith.addf %26, %27 : vector<32x128xf32>
    %cst_18 = arith.constant 0.000000e+00 : f32
    %29 = vector.broadcast %cst_18 : f32 to vector<32x128xf32>
    %30 = arith.maximumf %28, %29 : vector<32x128xf32>
    %31 = arith.maximumf %23, %30 : vector<32x128xf32>
    %32 = arith.maximumf %16, %31 : vector<32x128xf32>
    %c0_19 = arith.constant 0 : index
    %c0_20 = arith.constant 0 : index
    %33 = vector.load %arg3[%c0_19, %c0_20] : memref<32x128xf32, #tpu.memory_space<vmem>>, vector<32x128xf32>
    tpu.vector_store %arg3[%c0_19, %c0_20], %32 {strides = array<i32>} : memref<32x128xf32, #tpu.memory_space<vmem>>, vector<32x128xf32>,
    return
  }
}

module attributes {stable_mosaic.version = 11 : i64} {
  func.func @_mlp_head_kernel(%arg0: memref<2x2048xf32, #tpu.memory_space<vmem>>, %arg1: memref<2048x128xf32, #tpu.memory_space<vmem>>, %arg2: memref<1x128xf32, #tpu.memory_space<vmem>>, %arg3: memref<128x128xf32, #tpu.memory_space<vmem>>, %arg4: memref<1x128xf32, #tpu.memory_space<vmem>>, %arg5: memref<128x128xf32, #tpu.memory_space<vmem>>, %arg6: memref<1x128xf32, #tpu.memory_space<vmem>>, %arg7: memref<2x128xf32, #tpu.memory_space<vmem>>) attributes {dimension_semantics = [], scalar_prefetch = 0 : i64, scratch_operands = 0 : i64, tpu.core_type = #tpu.core_type<tc>} {
    %c0 = arith.constant 0 : index
    %c0_0 = arith.constant 0 : index
    %0 = vector.load %arg0[%c0, %c0_0] : memref<2x2048xf32, #tpu.memory_space<vmem>>, vector<2x2048xf32>
    %c0_1 = arith.constant 0 : index
    %c0_2 = arith.constant 0 : index
    %1 = vector.load %arg1[%c0_1, %c0_2] : memref<2048x128xf32, #tpu.memory_space<vmem>>, vector<2048x128xf32>
    %cst = arith.constant dense<0.000000e+00> : vector<2x128xf32>
    %2 = tpu.matmul %0, %1, %cst {dimension_numbers = #tpu.dot_dimension_numbers<[1], [0], [0], [1], [0, 0, 1, 1], [], []>} : vector<2x2048xf32>, vector<2048x128xf32>, vector<2x128xf32> -> vector<2x128xf32>
    %c0_3 = arith.constant 0 : index
    %c0_4 = arith.constant 0 : index
    %3 = vector.load %arg2[%c0_3, %c0_4] : memref<1x128xf32, #tpu.memory_space<vmem>>, vector<1x128xf32>
    %4 = vector.broadcast %3 : vector<1x128xf32> to vector<2x128xf32>
    %5 = arith.addf %2, %4 : vector<2x128xf32>
    %cst_5 = arith.constant 0.000000e+00 : f32
    %6 = vector.broadcast %cst_5 : f32 to vector<2x128xf32>
    %7 = arith.maximumf %5, %6 : vector<2x128xf32>
    %c0_6 = arith.constant 0 : index
    %c0_7 = arith.constant 0 : index
    %8 = vector.load %arg3[%c0_6, %c0_7] : memref<128x128xf32, #tpu.memory_space<vmem>>, vector<128x128xf32>
    %cst_8 = arith.constant dense<0.000000e+00> : vector<2x128xf32>
    %9 = tpu.matmul %7, %8, %cst_8 {dimension_numbers = #tpu.dot_dimension_numbers<[1], [0], [0], [1], [0, 0, 1, 1], [], []>} : vector<2x128xf32>, vector<128x128xf32>, vector<2x128xf32> -> vector<2x128xf32>
    %c0_9 = arith.constant 0 : index
    %c0_10 = arith.constant 0 : index
    %10 = vector.load %arg4[%c0_9, %c0_10] : memref<1x128xf32, #tpu.memory_space<vmem>>, vector<1x128xf32>
    %11 = vector.broadcast %10 : vector<1x128xf32> to vector<2x128xf32>
    %12 = arith.addf %9, %11 : vector<2x128xf32>
    %cst_11 = arith.constant 0.000000e+00 : f32
    %13 = vector.broadcast %cst_11 : f32 to vector<2x128xf32>
    %14 = arith.maximumf %12, %13 : vector<2x128xf32>
    %c0_12 = arith.constant 0 : index
    %c0_13 = arith.constant 0 : index
    %15 = vector.load %arg5[%c0_12, %c0_13] : memref<128x128xf32, #tpu.memory_space<vmem>>, vector<128x128xf32>
    %cst_14 = arith.constant dense<0.000000e+00> : vector<2x128xf32>
    %16 = tpu.matmul %14, %15, %cst_14 {dimension_numbers = #tpu.dot_dimension_numbers<[1], [0], [0], [1], [0, 0, 1, 1], [], []>} : vector<2x128xf32>, vector<128x128xf32>, vector<2x128xf32> -> vector<2x128xf32>
    %c0_15 = arith.constant 0 : index
    %c0_16 = arith.constant 0 : index
    %17 = vector.load %arg6[%c0_15, %c0_16] : memref<1x128xf32, #tpu.memory_space<vmem>>, vector<1x128xf32>
    %18 = vector.broadcast %17 : vector<1x128xf32> to vector<2x128xf32>
    %19 = arith.addf %16, %18 : vector<2x128xf32>
    %cst_17 = arith.constant dense<0xFF800000> : vector<2xf32>
    %20 = vector.multi_reduction <maximumf>, %19, %cst_17 [1] : vector<2x128xf32> to vector<2xf32>
    %21 = vector.shape_cast %20 : vector<2xf32> to vector<2x1xf32>
    %22 = vector.broadcast %21 : vector<2x1xf32> to vector<2x128xf32>
    %23 = arith.subf %19, %22 : vector<2x128xf32>
    %24 = math.exp %23 : vector<2x128xf32>
    %cst_18 = arith.constant dense<0.000000e+00> : vector<2xf32>
    %25 = vector.multi_reduction <add>, %24, %cst_18 [1] : vector<2x128xf32> to vector<2xf32>
    %26 = vector.shape_cast %25 : vector<2xf32> to vector<2x1xf32>
    %27 = tpu.reciprocal %26 {approx = true} : vector<2x1xf32> -> vector<2x1xf32>
    %28 = vector.broadcast %27 : vector<2x1xf32> to vector<2x128xf32>
    %29 = arith.mulf %24, %28 : vector<2x128xf32>
    %c0_19 = arith.constant 0 : index
    %c0_20 = arith.constant 0 : index
    %30 = vector.load %arg7[%c0_19, %c0_20] : memref<2x128xf32, #tpu.memory_space<vmem>>, vector<2x128xf32>
    tpu.vector_store %arg7[%c0_19, %c0_20], %29 {strides = array<i32>} : memref<2x128xf32, #tpu.memory_space<vmem>>, vector<2x128xf32>,
    return
  }
}

</mosaic_0001>

<llo_original>
// kernel: cnn_forward.3
$region0: #{cnn_forward.3}
  #allocation0 [shape = 'u32[]', space=smem, size = 0x4, offset = 0x4, fixed_abs, tag = 'smem constant byte address 0x4 - core index']
  #allocation1 [shape = 'u32[144,128]{1,0:T(1,128)}', space=vmem, size = 0x12000, scoped, tag = 'internal scratch']
  %s0 = inlined_call_operand.vmem [shape: f32[4,288,32], index: 0, kind: input, shape index: {}]
  %s1 = inlined_call_operand.vmem [shape: f32[32,128], index: 1, kind: input, shape index: {}]
  %s2 = inlined_call_operand.vmem [shape: f32[1,128], index: 2, kind: input, shape index: {}]
  %s3 = inlined_call_operand.vmem [shape: f32[288,128], index: 3, kind: output, shape index: {}]
  %s4 = sld [smem:[#allocation0]]
  $region22: #{cnn_forward.3} parent=0
    _
  %s6 = ssub.s32 1, %s4
  %s7 = scalar_select 0, %s6, %s4
  // Predicated region
  $region2: #{cnn_forward.3} parent=0 // pred_check
    _
  $region3: #{cnn_forward.3} parent=0 // pred_check_branch
    %9 = sbr.rel (0) target = $region5
  $region4: #{cnn_forward.3} parent=0 // pred_region
    _
  $region5: #{cnn_forward.3} parent=0 // pred_fallthru
    _
  // Predicated region
  $region6: #{cnn_forward.3} parent=0 // pred_check
    _
  $region7: #{cnn_forward.3} parent=0 // pred_check_branch
    %11 = sbr.rel (0) target = $region9
  $region8: #{cnn_forward.3} parent=0 // pred_region
    _
  $region9: #{cnn_forward.3} parent=0 // pred_fallthru
    _
  // Predicated region
  $region10: #{cnn_forward.3} parent=0 // pred_check
    _
  $region11: #{cnn_forward.3} parent=0 // pred_check_branch
    %13 = sbr.rel (0) target = $region13
  $region12: #{cnn_forward.3} parent=0 // pred_region
    _
  $region13: #{cnn_forward.3} parent=0 // pred_fallthru
    _
  %v14 = vld [vmem:[%s1] sm:$0xff]
  %v15 = vld [vmem:[%s1 + $0x8] sm:$0xff]
  %v16 = vld [vmem:[%s1 + $0x10] sm:$0xff]
  %v17 = vld [vmem:[%s1 + $0x18] sm:$0xff]
  %v18 = vld [vmem:[%s2] sm:$0x1]
  %v19 = vld [vmem:[%s0] sm:$0xff]
  %v20 = vld [vmem:[%s0 + $0x8] sm:$0xff]
  %v21 = vld [vmem:[%s0 + $0x10] sm:$0xff]
  %v22 = vld [vmem:[%s0 + $0x18] sm:$0xff]
  %v23 = vld [vmem:[%s0 + $0x20] sm:$0xff]
  %v24 = vld [vmem:[%s0 + $0x28] sm:$0xff]
  %v25 = vld [vmem:[%s0 + $0x30] sm:$0xff]
  %v26 = vld [vmem:[%s0 + $0x38] sm:$0xff]
  %v27 = vld [vmem:[%s0 + $0x40] sm:$0xff]
  %v28 = vld [vmem:[%s0 + $0x48] sm:$0xff]
  %v29 = vld [vmem:[%s0 + $0x50] sm:$0xff]
  %v30 = vld [vmem:[%s0 + $0x58] sm:$0xff]
  %v31 = vld [vmem:[%s0 + $0x60] sm:$0xff]
  %v32 = vld [vmem:[%s0 + $0x68] sm:$0xff]
  %v33 = vld [vmem:[%s0 + $0x70] sm:$0xff]
  %v34 = vld [vmem:[%s0 + $0x78] sm:$0xff]
  %v35 = vld [vmem:[%s0 + $0x80] sm:$0xff]
  %v36 = vld [vmem:[%s0 + $0x88] sm:$0xff]
  %v37 = vld [vmem:[%s0 + $0x90] sm:$0xff]
  %v38 = vld [vmem:[%s0 + $0x98] sm:$0xff]
  %v39 = vld [vmem:[%s0 + $0xa0] sm:$0xff]
  %v40 = vld [vmem:[%s0 + $0xa8] sm:$0xff]
  %v41 = vld [vmem:[%s0 + $0xb0] sm:$0xff]
  %v42 = vld [vmem:[%s0 + $0xb8] sm:$0xff]
  %v43 = vld [vmem:[%s0 + $0xc0] sm:$0xff]
  %v44 = vld [vmem:[%s0 + $0xc8] sm:$0xff]
  %v45 = vld [vmem:[%s0 + $0xd0] sm:$0xff]
  %v46 = vld [vmem:[%s0 + $0xd8] sm:$0xff]
  %v47 = vld [vmem:[%s0 + $0xe0] sm:$0xff]
  %v48 = vld [vmem:[%s0 + $0xe8] sm:$0xff]
  %v49 = vld [vmem:[%s0 + $0xf0] sm:$0xff]
  %v50 = vld [vmem:[%s0 + $0xf8] sm:$0xff]
  %v51 = vld [vmem:[%s0 + $0x100] sm:$0xff]
  %v52 = vld [vmem:[%s0 + $0x108] sm:$0xff]
  %v53 = vld [vmem:[%s0 + $0x110] sm:$0xff]
  %v54 = vld [vmem:[%s0 + $0x118] sm:$0xff]
  %v56 = vlaneseq
  %v57 = vshrl.u32 %v56, 7
  %v58 = vsub.s32 0, %v57
  %v59 = vrot.slane %v18, %v58
  %vm61 = vcmask 261120
  %v63 = vsel %vm61, %v19, 0
  %v66 = vsel %vm61, %v20, 0
  %v69 = vsel %vm61, %v21, 0
  %v72 = vsel %vm61, %v22, 0
  %v75 = vsel %vm61, %v23, 0
  %v78 = vsel %vm61, %v24, 0
  %v81 = vsel %vm61, %v25, 0
  %v84 = vsel %vm61, %v26, 0
  %v87 = vsel %vm61, %v27, 0
  %v90 = vsel %vm61, %v28, 0
  %v93 = vsel %vm61, %v29, 0
  %v96 = vsel %vm61, %v30, 0
  %v99 = vsel %vm61, %v31, 0
  %v102 = vsel %vm61, %v32, 0
  %v105 = vsel %vm61, %v33, 0
  %v108 = vsel %vm61, %v34, 0
  %v111 = vsel %vm61, %v35, 0
  %v114 = vsel %vm61, %v36, 0
  %v117 = vsel %vm61, %v37, 0
  %v120 = vsel %vm61, %v38, 0
  %v123 = vsel %vm61, %v39, 0
  %v126 = vsel %vm61, %v40, 0
  %v129 = vsel %vm61, %v41, 0
  %v132 = vsel %vm61, %v42, 0
  %v135 = vsel %vm61, %v43, 0
  %v138 = vsel %vm61, %v44, 0
  %v141 = vsel %vm61, %v45, 0
  %v144 = vsel %vm61, %v46, 0
  %v147 = vsel %vm61, %v47, 0
  %v150 = vsel %vm61, %v48, 0
  %v153 = vsel %vm61, %v49, 0
  %v156 = vsel %vm61, %v50, 0
  %v159 = vsel %vm61, %v51, 0
  %v162 = vsel %vm61, %v52, 0
  %v165 = vsel %vm61, %v53, 0
  %v168 = vsel %vm61, %v54, 0
  %170 = vmatprep.subr.mxu0 0.0
  %171 = vmatpush1.msra.mxu0 %v14
  %172 = vmatprep.subr.mxu0 0.0
  %173 = vmatpush1.msra.mxu0 %v15
  %174 = vmatprep.subr.mxu0 0.0
  %175 = vmatpush1.msra.mxu0 %v16
  %176 = vmatprep.subr.mxu0 0.0
  %177 = vmatpush1.msra.mxu0 %v17
  %178 = vmatprep.subr.mxu0 0.0
  %179 = vmatpush1.msra.mxu0 0.0
  %180 = vmatprep.subr.mxu0 0.0
  %181 = vmatpush1.msra.mxu0 0.0
  %182 = vmatprep.subr.mxu0 0.0
  %183 = vmatpush1.msra.mxu0 0.0
  %184 = vmatprep.subr.mxu0 0.0
  %185 = vmatpush1.msra.mxu0 0.0
  %186 = vmatprep.subr.mxu0 0.0
  %187 = vmatpush1.msra.mxu0 0.0
  %188 = vmatprep.subr.mxu0 0.0
  %189 = vmatpush1.msra.mxu0 0.0
  %190 = vmatprep.subr.mxu0 0.0
  %191 = vmatpush1.msra.mxu0 0.0
  %192 = vmatprep.subr.mxu0 0.0
  %193 = vmatpush1.msra.mxu0 0.0
  %194 = vmatprep.subr.mxu0 0.0
  %195 = vmatpush1.msra.mxu0 0.0
  %196 = vmatprep.subr.mxu0 0.0
  %197 = vmatpush1.msra.mxu0 0.0
  %198 = vmatprep.subr.mxu0 0.0
  %199 = vmatpush1.msra.mxu0 0.0
  %200 = vmatprep.subr.mxu0 0.0
  %201 = vmatpush1.msra.mxu0 0.0
  %202 = vmatprep.subr.mxu0 0.0
  %203 = vmatpush1.msra.mxu0 0.0
  %204 = vmatprep.subr.mxu0 0.0
  %205 = vmatpush1.msra.mxu0 0.0
  %206 = vmatprep.subr.mxu0 0.0
  %207 = vmatpush1.msra.mxu0 0.0
  %208 = vmatprep.subr.mxu0 0.0
  %209 = vmatpush1.msra.mxu0 0.0
  %210 = vmatprep.subr.mxu0 0.0
  %211 = vmatpush1.msra.mxu0 0.0
  %212 = vmatprep.subr.mxu0 0.0
  %213 = vmatpush1.msra.mxu0 0.0
  %214 = vmatprep.subr.mxu0 0.0
  %215 = vmatpush1.msra.mxu0 0.0
  %216 = vmatprep.subr.mxu0 0.0
  %217 = vmatpush1.msra.mxu0 0.0
  %218 = vmatprep.subr.mxu0 0.0
  %219 = vmatpush1.msra.mxu0 0.0
  %220 = vmatprep.subr.mxu0 0.0
  %221 = vmatpush1.msra.mxu0 0.0
  %222 = vmatprep.subr.mxu0 0.0
  %223 = vmatpush1.msra.mxu0 0.0
  %224 = vmatprep.subr.mxu0 0.0
  %225 = vmatpush1.msra.mxu0 0.0
  %226 = vmatprep.subr.mxu0 0.0
  %227 = vmatpush1.msra.mxu0 0.0
  %228 = vmatprep.subr.mxu0 0.0
  %229 = vmatpush1.msra.mxu0 0.0
  %230 = vmatprep.subr.mxu0 0.0
  %231 = vmatpush1.msra.mxu0 0.0
  %232 = vmatprep.subr.mxu0 0.0
  %233 = vmatpush1.msra.mxu0 0.0
  %234 = vmatprep.mubr.f32.mxu0 0.0
  %235 = vmatmul.mubr.f32.gmra.mrb[0].mxu0 %v63
  %v236 = vpop.f32.mrb[0].mxu0
  %v237 = vadd.f32 %v59, %v236
  %v238 = vpop.f32.mrb[0].mxu0
  %239 = vmatprep.mubr.f32.mxu0 0.0
  %240 = vmatmul.mubr.f32.gmra.mrb[0].mxu0 %v66
  %v241 = vpop.f32.mrb[0].mxu0
  %v242 = vadd.f32 %v59, %v241
  %v243 = vpop.f32.mrb[0].mxu0
  %244 = vmatprep.mubr.f32.mxu0 0.0
  %245 = vmatmul.mubr.f32.gmra.mrb[0].mxu0 %v69
  %v246 = vpop.f32.mrb[0].mxu0
  %v247 = vadd.f32 %v59, %v246
  %v248 = vpop.f32.mrb[0].mxu0
  %249 = vmatprep.mubr.f32.mxu0 0.0
  %250 = vmatmul.mubr.f32.gmra.mrb[0].mxu0 %v72
  %v251 = vpop.f32.mrb[0].mxu0
  %v252 = vadd.f32 %v59, %v251
  %v253 = vpop.f32.mrb[0].mxu0
  %254 = vmatprep.mubr.f32.mxu0 0.0
  %255 = vmatmul.mubr.f32.gmra.mrb[0].mxu0 %v75
  %v256 = vpop.f32.mrb[0].mxu0
  %v257 = vadd.f32 %v59, %v256
  %v258 = vpop.f32.mrb[0].mxu0
  %259 = vmatprep.mubr.f32.mxu0 0.0
  %260 = vmatmul.mubr.f32.gmra.mrb[0].mxu0 %v78
  %v261 = vpop.f32.mrb[0].mxu0
  %v262 = vadd.f32 %v59, %v261
  %v263 = vpop.f32.mrb[0].mxu0
  %264 = vmatprep.mubr.f32.mxu0 0.0
  %265 = vmatmul.mubr.f32.gmra.mrb[0].mxu0 %v81
  %v266 = vpop.f32.mrb[0].mxu0
  %v267 = vadd.f32 %v59, %v266
  %v268 = vpop.f32.mrb[0].mxu0
  %269 = vmatprep.mubr.f32.mxu0 0.0
  %270 = vmatmul.mubr.f32.gmra.mrb[0].mxu0 %v84
  %v271 = vpop.f32.mrb[0].mxu0
  %v272 = vadd.f32 %v59, %v271
  %v273 = vpop.f32.mrb[0].mxu0
  %274 = vmatprep.mubr.f32.mxu0 0.0
  %275 = vmatmul.mubr.f32.gmra.mrb[0].mxu0 %v87
  %v276 = vpop.f32.mrb[0].mxu0
  %v277 = vadd.f32 %v59, %v276
  %v278 = vpop.f32.mrb[0].mxu0
  %279 = vmatprep.mubr.f32.mxu0 0.0
  %280 = vmatmul.mubr.f32.gmra.mrb[0].mxu0 %v90
  %v281 = vpop.f32.mrb[0].mxu0
  %v282 = vadd.f32 %v59, %v281
  %v283 = vpop.f32.mrb[0].mxu0
  %284 = vmatprep.mubr.f32.mxu0 0.0
  %285 = vmatmul.mubr.f32.gmra.mrb[0].mxu0 %v93
  %v286 = vpop.f32.mrb[0].mxu0
  %v287 = vadd.f32 %v59, %v286
  %v288 = vpop.f32.mrb[0].mxu0
  %289 = vmatprep.mubr.f32.mxu0 0.0
  %290 = vmatmul.mubr.f32.gmra.mrb[0].mxu0 %v96
  %v291 = vpop.f32.mrb[0].mxu0
  %v292 = vadd.f32 %v59, %v291
  %v293 = vpop.f32.mrb[0].mxu0
  %294 = vmatprep.mubr.f32.mxu0 0.0
  %295 = vmatmul.mubr.f32.gmra.mrb[0].mxu0 %v99
  %v296 = vpop.f32.mrb[0].mxu0
  %v297 = vadd.f32 %v59, %v296
  %v298 = vpop.f32.mrb[0].mxu0
  %299 = vmatprep.mubr.f32.mxu0 0.0
  %300 = vmatmul.mubr.f32.gmra.mrb[0].mxu0 %v102
  %v301 = vpop.f32.mrb[0].mxu0
  %v302 = vadd.f32 %v59, %v301
  %v303 = vpop.f32.mrb[0].mxu0
  %304 = vmatprep.mubr.f32.mxu0 0.0
  %305 = vmatmul.mubr.f32.gmra.mrb[0].mxu0 %v105
  %v306 = vpop.f32.mrb[0].mxu0
  %v307 = vadd.f32 %v59, %v306
  %v308 = vpop.f32.mrb[0].mxu0
  %309 = vmatprep.mubr.f32.mxu0 0.0
  %310 = vmatmul.mubr.f32.gmra.mrb[0].mxu0 %v108
  %v311 = vpop.f32.mrb[0].mxu0
  %v312 = vadd.f32 %v59, %v311
  %v313 = vpop.f32.mrb[0].mxu0
  %314 = vmatprep.mubr.f32.mxu0 0.0
  %315 = vmatmul.mubr.f32.gmra.mrb[0].mxu0 %v111
  %v316 = vpop.f32.mrb[0].mxu0
  %v317 = vadd.f32 %v59, %v316
  %v318 = vpop.f32.mrb[0].mxu0
  %319 = vmatprep.mubr.f32.mxu0 0.0
  %320 = vmatmul.mubr.f32.gmra.mrb[0].mxu0 %v114
  %v321 = vpop.f32.mrb[0].mxu0
  %v322 = vadd.f32 %v59, %v321
  %v323 = vpop.f32.mrb[0].mxu0
  %324 = vmatprep.mubr.f32.mxu0 0.0
  %325 = vmatmul.mubr.f32.gmra.mrb[0].mxu0 %v117
  %v326 = vpop.f32.mrb[0].mxu0
  %v327 = vadd.f32 %v59, %v326
  %v328 = vpop.f32.mrb[0].mxu0
  %329 = vmatprep.mubr.f32.mxu0 0.0
  %330 = vmatmul.mubr.f32.gmra.mrb[0].mxu0 %v120
  %v331 = vpop.f32.mrb[0].mxu0
  %v332 = vadd.f32 %v59, %v331
  %v333 = vpop.f32.mrb[0].mxu0
  %334 = vmatprep.mubr.f32.mxu0 0.0
  %335 = vmatmul.mubr.f32.gmra.mrb[0].mxu0 %v123
  %v336 = vpop.f32.mrb[0].mxu0
  %v337 = vadd.f32 %v59, %v336
  %v338 = vpop.f32.mrb[0].mxu0
  %339 = vmatprep.mubr.f32.mxu0 0.0
  %340 = vmatmul.mubr.f32.gmra.mrb[0].mxu0 %v126
  %v341 = vpop.f32.mrb[0].mxu0
  %v342 = vadd.f32 %v59, %v341
  %v343 = vpop.f32.mrb[0].mxu0
  %344 = vmatprep.mubr.f32.mxu0 0.0
  %345 = vmatmul.mubr.f32.gmra.mrb[0].mxu0 %v129
  %v346 = vpop.f32.mrb[0].mxu0
  %v347 = vadd.f32 %v59, %v346
  %v348 = vpop.f32.mrb[0].mxu0
  %349 = vmatprep.mubr.f32.mxu0 0.0
  %350 = vmatmul.mubr.f32.gmra.mrb[0].mxu0 %v132
  %v351 = vpop.f32.mrb[0].mxu0
  %v352 = vadd.f32 %v59, %v351
  %v353 = vpop.f32.mrb[0].mxu0
  %354 = vmatprep.mubr.f32.mxu0 0.0
  %355 = vmatmul.mubr.f32.gmra.mrb[0].mxu0 %v135
  %v356 = vpop.f32.mrb[0].mxu0
  %v357 = vadd.f32 %v59, %v356
  %v358 = vpop.f32.mrb[0].mxu0
  %359 = vmatprep.mubr.f32.mxu0 0.0
  %360 = vmatmul.mubr.f32.gmra.mrb[0].mxu0 %v138
  %v361 = vpop.f32.mrb[0].mxu0
  %v362 = vadd.f32 %v59, %v361
  %v363 = vpop.f32.mrb[0].mxu0
  %364 = vmatprep.mubr.f32.mxu0 0.0
  %365 = vmatmul.mubr.f32.gmra.mrb[0].mxu0 %v141
  %v366 = vpop.f32.mrb[0].mxu0
  %v367 = vadd.f32 %v59, %v366
  %v368 = vpop.f32.mrb[0].mxu0
  %369 = vmatprep.mubr.f32.mxu0 0.0
  %370 = vmatmul.mubr.f32.gmra.mrb[0].mxu0 %v144
  %v371 = vpop.f32.mrb[0].mxu0
  %v372 = vadd.f32 %v59, %v371
  %v373 = vpop.f32.mrb[0].mxu0
  %374 = vmatprep.mubr.f32.mxu0 0.0
  %375 = vmatmul.mubr.f32.gmra.mrb[0].mxu0 %v147
  %v376 = vpop.f32.mrb[0].mxu0
  %v377 = vadd.f32 %v59, %v376
  %v378 = vpop.f32.mrb[0].mxu0
  %379 = vmatprep.mubr.f32.mxu0 0.0
  %380 = vmatmul.mubr.f32.gmra.mrb[0].mxu0 %v150
  %v381 = vpop.f32.mrb[0].mxu0
  %v382 = vadd.f32 %v59, %v381
  %v383 = vpop.f32.mrb[0].mxu0
  %384 = vmatprep.mubr.f32.mxu0 0.0
  %385 = vmatmul.mubr.f32.gmra.mrb[0].mxu0 %v153
  %v386 = vpop.f32.mrb[0].mxu0
  %v387 = vadd.f32 %v59, %v386
  %v388 = vpop.f32.mrb[0].mxu0
  %389 = vmatprep.mubr.f32.mxu0 0.0
  %390 = vmatmul.mubr.f32.gmra.mrb[0].mxu0 %v156
  %v391 = vpop.f32.mrb[0].mxu0
  %v392 = vadd.f32 %v59, %v391
  %v393 = vpop.f32.mrb[0].mxu0
  %394 = vmatprep.mubr.f32.mxu0 0.0
  %395 = vmatmul.mubr.f32.gmra.mrb[0].mxu0 %v159
  %v396 = vpop.f32.mrb[0].mxu0
  %v397 = vadd.f32 %v59, %v396
  %v398 = vpop.f32.mrb[0].mxu0
  %399 = vmatprep.mubr.f32.mxu0 0.0
  %400 = vmatmul.mubr.f32.gmra.mrb[0].mxu0 %v162
  %v401 = vpop.f32.mrb[0].mxu0
  %v402 = vadd.f32 %v59, %v401
  %v403 = vpop.f32.mrb[0].mxu0
  %404 = vmatprep.mubr.f32.mxu0 0.0
  %405 = vmatmul.mubr.f32.gmra.mrb[0].mxu0 %v165
  %v406 = vpop.f32.mrb[0].mxu0
  %v407 = vadd.f32 %v59, %v406
  %v408 = vpop.f32.mrb[0].mxu0
  %409 = vmatprep.mubr.f32.mxu0 0.0
  %410 = vmatmul.mubr.f32.gmra.mrb[0].mxu0 %v168
  %v411 = vpop.f32.mrb[0].mxu0
  %v412 = vadd.f32 %v59, %v411
  %v413 = vpop.f32.mrb[0].mxu0
  %414 = vdwg.mxu0
  %v415 = vmax.f32 %v237, 0.0
  %v416 = vmax.f32 %v242, 0.0
  %v417 = vmax.f32 %v247, 0.0
  %v418 = vmax.f32 %v252, 0.0
  %v419 = vmax.f32 %v257, 0.0
  %v420 = vmax.f32 %v262, 0.0
  %v421 = vmax.f32 %v267, 0.0
  %v422 = vmax.f32 %v272, 0.0
  %v423 = vmax.f32 %v277, 0.0
  %v424 = vmax.f32 %v282, 0.0
  %v425 = vmax.f32 %v287, 0.0
  %v426 = vmax.f32 %v292, 0.0
  %v427 = vmax.f32 %v297, 0.0
  %v428 = vmax.f32 %v302, 0.0
  %v429 = vmax.f32 %v307, 0.0
  %v430 = vmax.f32 %v312, 0.0
  %v431 = vmax.f32 %v317, 0.0
  %v432 = vmax.f32 %v322, 0.0
  %v433 = vmax.f32 %v327, 0.0
  %v434 = vmax.f32 %v332, 0.0
  %v435 = vmax.f32 %v337, 0.0
  %v436 = vmax.f32 %v342, 0.0
  %v437 = vmax.f32 %v347, 0.0
  %v438 = vmax.f32 %v352, 0.0
  %v439 = vmax.f32 %v357, 0.0
  %v440 = vmax.f32 %v362, 0.0
  %v441 = vmax.f32 %v367, 0.0
  %v442 = vmax.f32 %v372, 0.0
  %v443 = vmax.f32 %v377, 0.0
  %v444 = vmax.f32 %v382, 0.0
  %v445 = vmax.f32 %v387, 0.0
  %v446 = vmax.f32 %v392, 0.0
  %v447 = vmax.f32 %v397, 0.0
  %v448 = vmax.f32 %v402, 0.0
  %v449 = vmax.f32 %v407, 0.0
  %v450 = vmax.f32 %v412, 0.0
  %s451 = scalar_lea.vmem %s0, 288
  %v452 = vld [vmem:[%s451] sm:$0xff]
  %v453 = vld [vmem:[%s451 + $0x8] sm:$0xff]
  %v454 = vld [vmem:[%s451 + $0x10] sm:$0xff]
  %v455 = vld [vmem:[%s451 + $0x18] sm:$0xff]
  %v456 = vld [vmem:[%s451 + $0x20] sm:$0xff]
  %v457 = vld [vmem:[%s451 + $0x28] sm:$0xff]
  %v458 = vld [vmem:[%s451 + $0x30] sm:$0xff]
  %v459 = vld [vmem:[%s451 + $0x38] sm:$0xff]
  %v460 = vld [vmem:[%s451 + $0x40] sm:$0xff]
  %v461 = vld [vmem:[%s451 + $0x48] sm:$0xff]
  %v462 = vld [vmem:[%s451 + $0x50] sm:$0xff]
  %v463 = vld [vmem:[%s451 + $0x58] sm:$0xff]
  %v464 = vld [vmem:[%s451 + $0x60] sm:$0xff]
  %v465 = vld [vmem:[%s451 + $0x68] sm:$0xff]
  %v466 = vld [vmem:[%s451 + $0x70] sm:$0xff]
  %v467 = vld [vmem:[%s451 + $0x78] sm:$0xff]
  %v468 = vld [vmem:[%s451 + $0x80] sm:$0xff]
  %v469 = vld [vmem:[%s451 + $0x88] sm:$0xff]
  %v470 = vld [vmem:[%s451 + $0x90] sm:$0xff]
  %v471 = vld [vmem:[%s451 + $0x98] sm:$0xff]
  %v472 = vld [vmem:[%s451 + $0xa0] sm:$0xff]
  %v473 = vld [vmem:[%s451 + $0xa8] sm:$0xff]
  %v474 = vld [vmem:[%s451 + $0xb0] sm:$0xff]
  %v475 = vld [vmem:[%s451 + $0xb8] sm:$0xff]
  %v476 = vld [vmem:[%s451 + $0xc0] sm:$0xff]
  %v477 = vld [vmem:[%s451 + $0xc8] sm:$0xff]
  %v478 = vld [vmem:[%s451 + $0xd0] sm:$0xff]
  %v479 = vld [vmem:[%s451 + $0xd8] sm:$0xff]
  %v480 = vld [vmem:[%s451 + $0xe0] sm:$0xff]
  %v481 = vld [vmem:[%s451 + $0xe8] sm:$0xff]
  %v482 = vld [vmem:[%s451 + $0xf0] sm:$0xff]
  %v483 = vld [vmem:[%s451 + $0xf8] sm:$0xff]
  %v484 = vld [vmem:[%s451 + $0x100] sm:$0xff]
  %v485 = vld [vmem:[%s451 + $0x108] sm:$0xff]
  %v486 = vld [vmem:[%s451 + $0x110] sm:$0xff]
  %v487 = vld [vmem:[%s451 + $0x118] sm:$0xff]
  %v489 = vsel %vm61, %v452, 0
  %v492 = vsel %vm61, %v453, 0
  %v495 = vsel %vm61, %v454, 0
  %v498 = vsel %vm61, %v455, 0
  %v501 = vsel %vm61, %v456, 0
  %v504 = vsel %vm61, %v457, 0
  %v507 = vsel %vm61, %v458, 0
  %v510 = vsel %vm61, %v459, 0
  %v513 = vsel %vm61, %v460, 0
  %v516 = vsel %vm61, %v461, 0
  %v519 = vsel %vm61, %v462, 0
  %v522 = vsel %vm61, %v463, 0
  %v525 = vsel %vm61, %v464, 0
  %v528 = vsel %vm61, %v465, 0
  %v531 = vsel %vm61, %v466, 0
  %v534 = vsel %vm61, %v467, 0
  %v537 = vsel %vm61, %v468, 0
  %v540 = vsel %vm61, %v469, 0
  %v543 = vsel %vm61, %v470, 0
  %v546 = vsel %vm61, %v471, 0
  %v549 = vsel %vm61, %v472, 0
  %v552 = vsel %vm61, %v473, 0
  %v555 = vsel %vm61, %v474, 0
  %v558 = vsel %vm61, %v475, 0
  %v561 = vsel %vm61, %v476, 0
  %v564 = vsel %vm61, %v477, 0
  %v567 = vsel %vm61, %v478, 0
  %v570 = vsel %vm61, %v479, 0
  %v573 = vsel %vm61, %v480, 0
  %v576 = vsel %vm61, %v481, 0
  %v579 = vsel %vm61, %v482, 0
  %v582 = vsel %vm61, %v483, 0
  %v585 = vsel %vm61, %v484, 0
  %v588 = vsel %vm61, %v485, 0
  %v591 = vsel %vm61, %v486, 0
  %v594 = vsel %vm61, %v487, 0
  %596 = vmatprep.subr.mxu0 0.0
  %597 = vmatpush1.msra.mxu0 %v14
  %598 = vmatprep.subr.mxu0 0.0
  %599 = vmatpush1.msra.mxu0 %v15
  %600 = vmatprep.subr.mxu0 0.0
  %601 = vmatpush1.msra.mxu0 %v16
  %602 = vmatprep.subr.mxu0 0.0
  %603 = vmatpush1.msra.mxu0 %v17
  %604 = vmatprep.subr.mxu0 0.0
  %605 = vmatpush1.msra.mxu0 0.0
  %606 = vmatprep.subr.mxu0 0.0
  %607 = vmatpush1.msra.mxu0 0.0
  %608 = vmatprep.subr.mxu0 0.0
  %609 = vmatpush1.msra.mxu0 0.0
  %610 = vmatprep.subr.mxu0 0.0
  %611 = vmatpush1.msra.mxu0 0.0
  %612 = vmatprep.subr.mxu0 0.0
  %613 = vmatpush1.msra.mxu0 0.0
  %614 = vmatprep.subr.mxu0 0.0
  %615 = vmatpush1.msra.mxu0 0.0
  %616 = vmatprep.subr.mxu0 0.0
  %617 = vmatpush1.msra.mxu0 0.0
  %618 = vmatprep.subr.mxu0 0.0
  %619 = vmatpush1.msra.mxu0 0.0
  %620 = vmatprep.subr.mxu0 0.0
  %621 = vmatpush1.msra.mxu0 0.0
  %622 = vmatprep.subr.mxu0 0.0
  %623 = vmatpush1.msra.mxu0 0.0
  %624 = vmatprep.subr.mxu0 0.0
  %625 = vmatpush1.msra.mxu0 0.0
  %626 = vmatprep.subr.mxu0 0.0
  %627 = vmatpush1.msra.mxu0 0.0
  %628 = vmatprep.subr.mxu0 0.0
  %629 = vmatpush1.msra.mxu0 0.0
  %630 = vmatprep.subr.mxu0 0.0
  %631 = vmatpush1.msra.mxu0 0.0
  %632 = vmatprep.subr.mxu0 0.0
  %633 = vmatpush1.msra.mxu0 0.0
  %634 = vmatprep.subr.mxu0 0.0
  %635 = vmatpush1.msra.mxu0 0.0
  %636 = vmatprep.subr.mxu0 0.0
  %637 = vmatpush1.msra.mxu0 0.0
  %638 = vmatprep.subr.mxu0 0.0
  %639 = vmatpush1.msra.mxu0 0.0
  %640 = vmatprep.subr.mxu0 0.0
  %641 = vmatpush1.msra.mxu0 0.0
  %642 = vmatprep.subr.mxu0 0.0
  %643 = vmatpush1.msra.mxu0 0.0
  %644 = vmatprep.subr.mxu0 0.0
  %645 = vmatpush1.msra.mxu0 0.0
  %646 = vmatprep.subr.mxu0 0.0
  %647 = vmatpush1.msra.mxu0 0.0
  %648 = vmatprep.subr.mxu0 0.0
  %649 = vmatpush1.msra.mxu0 0.0
  %650 = vmatprep.subr.mxu0 0.0
  %651 = vmatpush1.msra.mxu0 0.0
  %652 = vmatprep.subr.mxu0 0.0
  %653 = vmatpush1.msra.mxu0 0.0
  %654 = vmatprep.subr.mxu0 0.0
  %655 = vmatpush1.msra.mxu0 0.0
  %656 = vmatprep.subr.mxu0 0.0
  %657 = vmatpush1.msra.mxu0 0.0
  %658 = vmatprep.subr.mxu0 0.0
  %659 = vmatpush1.msra.mxu0 0.0
  %660 = vmatprep.mubr.f32.mxu0 0.0
  %661 = vmatmul.mubr.f32.gmra.mrb[0].mxu0 %v489
  %v662 = vpop.f32.mrb[0].mxu0
  %v663 = vadd.f32 %v59, %v662
  %v664 = vpop.f32.mrb[0].mxu0
  %665 = vmatprep.mubr.f32.mxu0 0.0
  %666 = vmatmul.mubr.f32.gmra.mrb[0].mxu0 %v492
  %v667 = vpop.f32.mrb[0].mxu0
  %v668 = vadd.f32 %v59, %v667
  %v669 = vpop.f32.mrb[0].mxu0
  %670 = vmatprep.mubr.f32.mxu0 0.0
  %671 = vmatmul.mubr.f32.gmra.mrb[0].mxu0 %v495
  %v672 = vpop.f32.mrb[0].mxu0
  %v673 = vadd.f32 %v59, %v672
  %v674 = vpop.f32.mrb[0].mxu0
  %675 = vmatprep.mubr.f32.mxu0 0.0
  %676 = vmatmul.mubr.f32.gmra.mrb[0].mxu0 %v498
  %v677 = vpop.f32.mrb[0].mxu0
  %v678 = vadd.f32 %v59, %v677
  %v679 = vpop.f32.mrb[0].mxu0
  %680 = vmatprep.mubr.f32.mxu0 0.0
  %681 = vmatmul.mubr.f32.gmra.mrb[0].mxu0 %v501
  %v682 = vpop.f32.mrb[0].mxu0
  %v683 = vadd.f32 %v59, %v682
  %v684 = vpop.f32.mrb[0].mxu0
  %685 = vmatprep.mubr.f32.mxu0 0.0
  %686 = vmatmul.mubr.f32.gmra.mrb[0].mxu0 %v504
  %v687 = vpop.f32.mrb[0].mxu0
  %v688 = vadd.f32 %v59, %v687
  %v689 = vpop.f32.mrb[0].mxu0
  %690 = vmatprep.mubr.f32.mxu0 0.0
  %691 = vmatmul.mubr.f32.gmra.mrb[0].mxu0 %v507
  %v692 = vpop.f32.mrb[0].mxu0
  %v693 = vadd.f32 %v59, %v692
  %v694 = vpop.f32.mrb[0].mxu0
  %695 = vmatprep.mubr.f32.mxu0 0.0
  %696 = vmatmul.mubr.f32.gmra.mrb[0].mxu0 %v510
  %v697 = vpop.f32.mrb[0].mxu0
  %v698 = vadd.f32 %v59, %v697
  %v699 = vpop.f32.mrb[0].mxu0
  %700 = vmatprep.mubr.f32.mxu0 0.0
  %701 = vmatmul.mubr.f32.gmra.mrb[0].mxu0 %v513
  %v702 = vpop.f32.mrb[0].mxu0
  %v703 = vadd.f32 %v59, %v702
  %v704 = vpop.f32.mrb[0].mxu0
  %705 = vmatprep.mubr.f32.mxu0 0.0
  %706 = vmatmul.mubr.f32.gmra.mrb[0].mxu0 %v516
  %v707 = vpop.f32.mrb[0].mxu0
  %v708 = vadd.f32 %v59, %v707
  %v709 = vpop.f32.mrb[0].mxu0
  %710 = vmatprep.mubr.f32.mxu0 0.0
  %711 = vmatmul.mubr.f32.gmra.mrb[0].mxu0 %v519
  %v712 = vpop.f32.mrb[0].mxu0
  %v713 = vadd.f32 %v59, %v712
  %v714 = vpop.f32.mrb[0].mxu0
  %715 = vmatprep.mubr.f32.mxu0 0.0
  %716 = vmatmul.mubr.f32.gmra.mrb[0].mxu0 %v522
  %v717 = vpop.f32.mrb[0].mxu0
  %v718 = vadd.f32 %v59, %v717
  %v719 = vpop.f32.mrb[0].mxu0
  %720 = vmatprep.mubr.f32.mxu0 0.0
  %721 = vmatmul.mubr.f32.gmra.mrb[0].mxu0 %v525
  %v722 = vpop.f32.mrb[0].mxu0
  %v723 = vadd.f32 %v59, %v722
  %v724 = vpop.f32.mrb[0].mxu0
  %725 = vmatprep.mubr.f32.mxu0 0.0
  %726 = vmatmul.mubr.f32.gmra.mrb[0].mxu0 %v528
  %v727 = vpop.f32.mrb[0].mxu0
  %v728 = vadd.f32 %v59, %v727
  %v729 = vpop.f32.mrb[0].mxu0
  %730 = vmatprep.mubr.f32.mxu0 0.0
  %731 = vmatmul.mubr.f32.gmra.mrb[0].mxu0 %v531
  %v732 = vpop.f32.mrb[0].mxu0
  %v733 = vadd.f32 %v59, %v732
  %v734 = vpop.f32.mrb[0].mxu0
  %735 = vmatprep.mubr.f32.mxu0 0.0
  %736 = vmatmul.mubr.f32.gmra.mrb[0].mxu0 %v534
  %v737 = vpop.f32.mrb[0].mxu0
  %v738 = vadd.f32 %v59, %v737
  %v739 = vpop.f32.mrb[0].mxu0
  %740 = vmatprep.mubr.f32.mxu0 0.0
  %741 = vmatmul.mubr.f32.gmra.mrb[0].mxu0 %v537
  %v742 = vpop.f32.mrb[0].mxu0
  %v743 = vadd.f32 %v59, %v742
  %v744 = vpop.f32.mrb[0].mxu0
  %745 = vmatprep.mubr.f32.mxu0 0.0
  %746 = vmatmul.mubr.f32.gmra.mrb[0].mxu0 %v540
  %v747 = vpop.f32.mrb[0].mxu0
  %v748 = vadd.f32 %v59, %v747
  %v749 = vpop.f32.mrb[0].mxu0
  %750 = vmatprep.mubr.f32.mxu0 0.0
  %751 = vmatmul.mubr.f32.gmra.mrb[0].mxu0 %v543
  %v752 = vpop.f32.mrb[0].mxu0
  %v753 = vadd.f32 %v59, %v752
  %v754 = vpop.f32.mrb[0].mxu0
  %755 = vmatprep.mubr.f32.mxu0 0.0
  %756 = vmatmul.mubr.f32.gmra.mrb[0].mxu0 %v546
  %v757 = vpop.f32.mrb[0].mxu0
  %v758 = vadd.f32 %v59, %v757
  %v759 = vpop.f32.mrb[0].mxu0
  %760 = vmatprep.mubr.f32.mxu0 0.0
  %761 = vmatmul.mubr.f32.gmra.mrb[0].mxu0 %v549
  %v762 = vpop.f32.mrb[0].mxu0
  %v763 = vadd.f32 %v59, %v762
  %v764 = vpop.f32.mrb[0].mxu0
  %765 = vmatprep.mubr.f32.mxu0 0.0
  %766 = vmatmul.mubr.f32.gmra.mrb[0].mxu0 %v552
  %v767 = vpop.f32.mrb[0].mxu0
  %v768 = vadd.f32 %v59, %v767
  %v769 = vpop.f32.mrb[0].mxu0
  %770 = vmatprep.mubr.f32.mxu0 0.0
  %771 = vmatmul.mubr.f32.gmra.mrb[0].mxu0 %v555
  %v772 = vpop.f32.mrb[0].mxu0
  %v773 = vadd.f32 %v59, %v772
  %v774 = vpop.f32.mrb[0].mxu0
  %775 = vmatprep.mubr.f32.mxu0 0.0
  %776 = vmatmul.mubr.f32.gmra.mrb[0].mxu0 %v558
  %v777 = vpop.f32.mrb[0].mxu0
  %v778 = vadd.f32 %v59, %v777
  %v779 = vpop.f32.mrb[0].mxu0
  %780 = vmatprep.mubr.f32.mxu0 0.0
  %781 = vmatmul.mubr.f32.gmra.mrb[0].mxu0 %v561
  %v782 = vpop.f32.mrb[0].mxu0
  %v783 = vadd.f32 %v59, %v782
  %v784 = vpop.f32.mrb[0].mxu0
  %785 = vmatprep.mubr.f32.mxu0 0.0
  %786 = vmatmul.mubr.f32.gmra.mrb[0].mxu0 %v564
  %v787 = vpop.f32.mrb[0].mxu0
  %v788 = vadd.f32 %v59, %v787
  %v789 = vpop.f32.mrb[0].mxu0
  %790 = vmatprep.mubr.f32.mxu0 0.0
  %791 = vmatmul.mubr.f32.gmra.mrb[0].mxu0 %v567
  %v792 = vpop.f32.mrb[0].mxu0
  %v793 = vadd.f32 %v59, %v792
  %v794 = vpop.f32.mrb[0].mxu0
  %795 = vmatprep.mubr.f32.mxu0 0.0
  %796 = vmatmul.mubr.f32.gmra.mrb[0].mxu0 %v570
  %v797 = vpop.f32.mrb[0].mxu0
  %v798 = vadd.f32 %v59, %v797
  %v799 = vpop.f32.mrb[0].mxu0
  %800 = vmatprep.mubr.f32.mxu0 0.0
  %801 = vmatmul.mubr.f32.gmra.mrb[0].mxu0 %v573
  %v802 = vpop.f32.mrb[0].mxu0
  %v803 = vadd.f32 %v59, %v802
  %v804 = vpop.f32.mrb[0].mxu0
  %805 = vmatprep.mubr.f32.mxu0 0.0
  %806 = vmatmul.mubr.f32.gmra.mrb[0].mxu0 %v576
  %v807 = vpop.f32.mrb[0].mxu0
  %v808 = vadd.f32 %v59, %v807
  %v809 = vpop.f32.mrb[0].mxu0
  %810 = vmatprep.mubr.f32.mxu0 0.0
  %811 = vmatmul.mubr.f32.gmra.mrb[0].mxu0 %v579
  %v812 = vpop.f32.mrb[0].mxu0
  %v813 = vadd.f32 %v59, %v812
  %v814 = vpop.f32.mrb[0].mxu0
  %815 = vmatprep.mubr.f32.mxu0 0.0
  %816 = vmatmul.mubr.f32.gmra.mrb[0].mxu0 %v582
  %v817 = vpop.f32.mrb[0].mxu0
  %v818 = vadd.f32 %v59, %v817
  %v819 = vpop.f32.mrb[0].mxu0
  %820 = vmatprep.mubr.f32.mxu0 0.0
  %821 = vmatmul.mubr.f32.gmra.mrb[0].mxu0 %v585
  %v822 = vpop.f32.mrb[0].mxu0
  %v823 = vadd.f32 %v59, %v822
  %v824 = vpop.f32.mrb[0].mxu0
  %825 = vmatprep.mubr.f32.mxu0 0.0
  %826 = vmatmul.mubr.f32.gmra.mrb[0].mxu0 %v588
  %v827 = vpop.f32.mrb[0].mxu0
  %v828 = vadd.f32 %v59, %v827
  %v829 = vpop.f32.mrb[0].mxu0
  %830 = vmatprep.mubr.f32.mxu0 0.0
  %831 = vmatmul.mubr.f32.gmra.mrb[0].mxu0 %v591
  %v832 = vpop.f32.mrb[0].mxu0
  %v833 = vadd.f32 %v59, %v832
  %v834 = vpop.f32.mrb[0].mxu0
  %835 = vmatprep.mubr.f32.mxu0 0.0
  %836 = vmatmul.mubr.f32.gmra.mrb[0].mxu0 %v594
  %v837 = vpop.f32.mrb[0].mxu0
  %v838 = vadd.f32 %v59, %v837
  %v839 = vpop.f32.mrb[0].mxu0
  %840 = vdwg.mxu0
  %v841 = vmax.f32 %v663, 0.0
  %v842 = vmax.f32 %v668, 0.0
  %v843 = vmax.f32 %v673, 0.0
  %v844 = vmax.f32 %v678, 0.0
  %v845 = vmax.f32 %v683, 0.0
  %v846 = vmax.f32 %v688, 0.0
  %v847 = vmax.f32 %v693, 0.0
  %v848 = vmax.f32 %v698, 0.0
  %v849 = vmax.f32 %v703, 0.0
  %v850 = vmax.f32 %v708, 0.0
  %v851 = vmax.f32 %v713, 0.0
  %v852 = vmax.f32 %v718, 0.0
  %v853 = vmax.f32 %v723, 0.0
  %v854 = vmax.f32 %v728, 0.0
  %v855 = vmax.f32 %v733, 0.0
  %v856 = vmax.f32 %v738, 0.0
  %v857 = vmax.f32 %v743, 0.0
  %v858 = vmax.f32 %v748, 0.0
  %v859 = vmax.f32 %v753, 0.0
  %v860 = vmax.f32 %v758, 0.0
  %v861 = vmax.f32 %v763, 0.0
  %v862 = vmax.f32 %v768, 0.0
  %v863 = vmax.f32 %v773, 0.0
  %v864 = vmax.f32 %v778, 0.0
  %v865 = vmax.f32 %v783, 0.0
  %v866 = vmax.f32 %v788, 0.0
  %v867 = vmax.f32 %v793, 0.0
  %v868 = vmax.f32 %v798, 0.0
  %v869 = vmax.f32 %v803, 0.0
  %v870 = vmax.f32 %v808, 0.0
  %v871 = vmax.f32 %v813, 0.0
  %v872 = vmax.f32 %v818, 0.0
  %v873 = vmax.f32 %v823, 0.0
  %v874 = vmax.f32 %v828, 0.0
  %v875 = vmax.f32 %v833, 0.0
  %v876 = vmax.f32 %v838, 0.0
  %v877 = vmax.f32 %v415, %v841
  %v878 = vmax.f32 %v416, %v842
  %v879 = vmax.f32 %v417, %v843
  %v880 = vmax.f32 %v418, %v844
  %v881 = vmax.f32 %v419, %v845
  %v882 = vmax.f32 %v420, %v846
  %v883 = vmax.f32 %v421, %v847
  %v884 = vmax.f32 %v422, %v848
  %v885 = vmax.f32 %v423, %v849
  %v886 = vmax.f32 %v424, %v850
  %v887 = vmax.f32 %v425, %v851
  %v888 = vmax.f32 %v426, %v852
  %v889 = vmax.f32 %v427, %v853
  %v890 = vmax.f32 %v428, %v854
  %v891 = vmax.f32 %v429, %v855
  %v892 = vmax.f32 %v430, %v856
  %v893 = vmax.f32 %v431, %v857
  %v894 = vmax.f32 %v432, %v858
  %v895 = vmax.f32 %v433, %v859
  %v896 = vmax.f32 %v434, %v860
  %v897 = vmax.f32 %v435, %v861
  %v898 = vmax.f32 %v436, %v862
  %v899 = vmax.f32 %v437, %v863
  %v900 = vmax.f32 %v438, %v864
  %v901 = vmax.f32 %v439, %v865
  %v902 = vmax.f32 %v440, %v866
  %v903 = vmax.f32 %v441, %v867
  %v904 = vmax.f32 %v442, %v868
  %v905 = vmax.f32 %v443, %v869
  %v906 = vmax.f32 %v444, %v870
  %v907 = vmax.f32 %v445, %v871
  %v908 = vmax.f32 %v446, %v872
  %v909 = vmax.f32 %v447, %v873
  %v910 = vmax.f32 %v448, %v874
  %v911 = vmax.f32 %v449, %v875
  %v912 = vmax.f32 %v450, %v876
  %s913 = scalar_lea.vmem %s0, 576
  %v914 = vld [vmem:[%s913] sm:$0xff]
  %v915 = vld [vmem:[%s913 + $0x8] sm:$0xff]
  %v916 = vld [vmem:[%s913 + $0x10] sm:$0xff]
  %v917 = vld [vmem:[%s913 + $0x18] sm:$0xff]
  %v918 = vld [vmem:[%s913 + $0x20] sm:$0xff]
  %v919 = vld [vmem:[%s913 + $0x28] sm:$0xff]
  %v920 = vld [vmem:[%s913 + $0x30] sm:$0xff]
  %v921 = vld [vmem:[%s913 + $0x38] sm:$0xff]
  %v922 = vld [vmem:[%s913 + $0x40] sm:$0xff]
  %v923 = vld [vmem:[%s913 + $0x48] sm:$0xff]
  %v924 = vld [vmem:[%s913 + $0x50] sm:$0xff]
  %v925 = vld [vmem:[%s913 + $0x58] sm:$0xff]
  %v926 = vld [vmem:[%s913 + $0x60] sm:$0xff]
  %v927 = vld [vmem:[%s913 + $0x68] sm:$0xff]
  %v928 = vld [vmem:[%s913 + $0x70] sm:$0xff]
  %v929 = vld [vmem:[%s913 + $0x78] sm:$0xff]
  %v930 = vld [vmem:[%s913 + $0x80] sm:$0xff]
  %v931 = vld [vmem:[%s913 + $0x88] sm:$0xff]
  %v932 = vld [vmem:[%s913 + $0x90] sm:$0xff]
  %v933 = vld [vmem:[%s913 + $0x98] sm:$0xff]
  %v934 = vld [vmem:[%s913 + $0xa0] sm:$0xff]
  %v935 = vld [vmem:[%s913 + $0xa8] sm:$0xff]
  %v936 = vld [vmem:[%s913 + $0xb0] sm:$0xff]
  %v937 = vld [vmem:[%s913 + $0xb8] sm:$0xff]
  %v938 = vld [vmem:[%s913 + $0xc0] sm:$0xff]
  %v939 = vld [vmem:[%s913 + $0xc8] sm:$0xff]
  %v940 = vld [vmem:[%s913 + $0xd0] sm:$0xff]
  %v941 = vld [vmem:[%s913 + $0xd8] sm:$0xff]
  %v942 = vld [vmem:[%s913 + $0xe0] sm:$0xff]
  %v943 = vld [vmem:[%s913 + $0xe8] sm:$0xff]
  %v944 = vld [vmem:[%s913 + $0xf0] sm:$0xff]
  %v945 = vld [vmem:[%s913 + $0xf8] sm:$0xff]
  %v946 = vld [vmem:[%s913 + $0x100] sm:$0xff]
  %v947 = vld [vmem:[%s913 + $0x108] sm:$0xff]
  %v948 = vld [vmem:[%s913 + $0x110] sm:$0xff]
  %v949 = vld [vmem:[%s913 + $0x118] sm:$0xff]
  %v951 = vsel %vm61, %v914, 0
  %v954 = vsel %vm61, %v915, 0
  %v957 = vsel %vm61, %v916, 0
  %v960 = vsel %vm61, %v917, 0
  %v963 = vsel %vm61, %v918, 0
  %v966 = vsel %vm61, %v919, 0
  %v969 = vsel %vm61, %v920, 0
  %v972 = vsel %vm61, %v921, 0
  %v975 = vsel %vm61, %v922, 0
  %v978 = vsel %vm61, %v923, 0
  %v981 = vsel %vm61, %v924, 0
  %v984 = vsel %vm61, %v925, 0
  %v987 = vsel %vm61, %v926, 0
  %v990 = vsel %vm61, %v927, 0
  %v993 = vsel %vm61, %v928, 0
  %v996 = vsel %vm61, %v929, 0
  %v999 = vsel %vm61, %v930, 0
  %v1002 = vsel %vm61, %v931, 0
  %v1005 = vsel %vm61, %v932, 0
  %v1008 = vsel %vm61, %v933, 0
  %v1011 = vsel %vm61, %v934, 0
  %v1014 = vsel %vm61, %v935, 0
  %v1017 = vsel %vm61, %v936, 0
  %v1020 = vsel %vm61, %v937, 0
  %v1023 = vsel %vm61, %v938, 0
  %v1026 = vsel %vm61, %v939, 0
  %v1029 = vsel %vm61, %v940, 0
  %v1032 = vsel %vm61, %v941, 0
  %v1035 = vsel %vm61, %v942, 0
  %v1038 = vsel %vm61, %v943, 0
  %v1041 = vsel %vm61, %v944, 0
  %v1044 = vsel %vm61, %v945, 0
  %v1047 = vsel %vm61, %v946, 0
  %v1050 = vsel %vm61, %v947, 0
  %v1053 = vsel %vm61, %v948, 0
  %v1056 = vsel %vm61, %v949, 0
  %1058 = vmatprep.subr.mxu0 0.0
  %1059 = vmatpush1.msra.mxu0 %v14
  %1060 = vmatprep.subr.mxu0 0.0
  %1061 = vmatpush1.msra.mxu0 %v15
  %1062 = vmatprep.subr.mxu0 0.0
  %1063 = vmatpush1.msra.mxu0 %v16
  %1064 = vmatprep.subr.mxu0 0.0
  %1065 = vmatpush1.msra.mxu0 %v17
  %1066 = vmatprep.subr.mxu0 0.0
  %1067 = vmatpush1.msra.mxu0 0.0
  %1068 = vmatprep.subr.mxu0 0.0
  %1069 = vmatpush1.msra.mxu0 0.0
  %1070 = vmatprep.subr.mxu0 0.0
  %1071 = vmatpush1.msra.mxu0 0.0
  %1072 = vmatprep.subr.mxu0 0.0
  %1073 = vmatpush1.msra.mxu0 0.0
  %1074 = vmatprep.subr.mxu0 0.0
  %1075 = vmatpush1.msra.mxu0 0.0
  %1076 = vmatprep.subr.mxu0 0.0
  %1077 = vmatpush1.msra.mxu0 0.0
  %1078 = vmatprep.subr.mxu0 0.0
  %1079 = vmatpush1.msra.mxu0 0.0
  %1080 = vmatprep.subr.mxu0 0.0
  %1081 = vmatpush1.msra.mxu0 0.0
  %1082 = vmatprep.subr.mxu0 0.0
  %1083 = vmatpush1.msra.mxu0 0.0
  %1084 = vmatprep.subr.mxu0 0.0
  %1085 = vmatpush1.msra.mxu0 0.0
  %1086 = vmatprep.subr.mxu0 0.0
  %1087 = vmatpush1.msra.mxu0 0.0
  %1088 = vmatprep.subr.mxu0 0.0
  %1089 = vmatpush1.msra.mxu0 0.0
  %1090 = vmatprep.subr.mxu0 0.0
  %1091 = vmatpush1.msra.mxu0 0.0
  %1092 = vmatprep.subr.mxu0 0.0
  %1093 = vmatpush1.msra.mxu0 0.0
  %1094 = vmatprep.subr.mxu0 0.0
  %1095 = vmatpush1.msra.mxu0 0.0
  %1096 = vmatprep.subr.mxu0 0.0
  %1097 = vmatpush1.msra.mxu0 0.0
  %1098 = vmatprep.subr.mxu0 0.0
  %1099 = vmatpush1.msra.mxu0 0.0
  %1100 = vmatprep.subr.mxu0 0.0
  %1101 = vmatpush1.msra.mxu0 0.0
  %1102 = vmatprep.subr.mxu0 0.0
  %1103 = vmatpush1.msra.mxu0 0.0
  %1104 = vmatprep.subr.mxu0 0.0
  %1105 = vmatpush1.msra.mxu0 0.0
  %1106 = vmatprep.subr.mxu0 0.0
  %1107 = vmatpush1.msra.mxu0 0.0
  %1108 = vmatprep.subr.mxu0 0.0
  %1109 = vmatpush1.msra.mxu0 0.0
  %1110 = vmatprep.subr.mxu0 0.0
  %1111 = vmatpush1.msra.mxu0 0.0
  %1112 = vmatprep.subr.mxu0 0.0
  %1113 = vmatpush1.msra.mxu0 0.0
  %1114 = vmatprep.subr.mxu0 0.0
  %1115 = vmatpush1.msra.mxu0 0.0
  %1116 = vmatprep.subr.mxu0 0.0
  %1117 = vmatpush1.msra.mxu0 0.0
  %1118 = vmatprep.subr.mxu0 0.0
  %1119 = vmatpush1.msra.mxu0 0.0
  %1120 = vmatprep.subr.mxu0 0.0
  %1121 = vmatpush1.msra.mxu0 0.0
  %1122 = vmatprep.mubr.f32.mxu0 0.0
  %1123 = vmatmul.mubr.f32.gmra.mrb[0].mxu0 %v951
  %v1124 = vpop.f32.mrb[0].mxu0
  %v1125 = vadd.f32 %v59, %v1124
  %v1126 = vpop.f32.mrb[0].mxu0
  %1127 = vmatprep.mubr.f32.mxu0 0.0
  %1128 = vmatmul.mubr.f32.gmra.mrb[0].mxu0 %v954
  %v1129 = vpop.f32.mrb[0].mxu0
  %v1130 = vadd.f32 %v59, %v1129
  %v1131 = vpop.f32.mrb[0].mxu0
  %1132 = vmatprep.mubr.f32.mxu0 0.0
  %1133 = vmatmul.mubr.f32.gmra.mrb[0].mxu0 %v957
  %v1134 = vpop.f32.mrb[0].mxu0
  %v1135 = vadd.f32 %v59, %v1134
  %v1136 = vpop.f32.mrb[0].mxu0
  %1137 = vmatprep.mubr.f32.mxu0 0.0
  %1138 = vmatmul.mubr.f32.gmra.mrb[0].mxu0 %v960
  %v1139 = vpop.f32.mrb[0].mxu0
  %v1140 = vadd.f32 %v59, %v1139
  %v1141 = vpop.f32.mrb[0].mxu0
  %1142 = vmatprep.mubr.f32.mxu0 0.0
  %1143 = vmatmul.mubr.f32.gmra.mrb[0].mxu0 %v963
  %v1144 = vpop.f32.mrb[0].mxu0
  %v1145 = vadd.f32 %v59, %v1144
  %v1146 = vpop.f32.mrb[0].mxu0
  %1147 = vmatprep.mubr.f32.mxu0 0.0
  %1148 = vmatmul.mubr.f32.gmra.mrb[0].mxu0 %v966
  %v1149 = vpop.f32.mrb[0].mxu0
  %v1150 = vadd.f32 %v59, %v1149
  %v1151 = vpop.f32.mrb[0].mxu0
  %1152 = vmatprep.mubr.f32.mxu0 0.0
  %1153 = vmatmul.mubr.f32.gmra.mrb[0].mxu0 %v969
  %v1154 = vpop.f32.mrb[0].mxu0
  %v1155 = vadd.f32 %v59, %v1154
  %v1156 = vpop.f32.mrb[0].mxu0
  %1157 = vmatprep.mubr.f32.mxu0 0.0
  %1158 = vmatmul.mubr.f32.gmra.mrb[0].mxu0 %v972
  %v1159 = vpop.f32.mrb[0].mxu0
  %v1160 = vadd.f32 %v59, %v1159
  %v1161 = vpop.f32.mrb[0].mxu0
  %1162 = vmatprep.mubr.f32.mxu0 0.0
  %1163 = vmatmul.mubr.f32.gmra.mrb[0].mxu0 %v975
  %v1164 = vpop.f32.mrb[0].mxu0
  %v1165 = vadd.f32 %v59, %v1164
  %v1166 = vpop.f32.mrb[0].mxu0
  %1167 = vmatprep.mubr.f32.mxu0 0.0
  %1168 = vmatmul.mubr.f32.gmra.mrb[0].mxu0 %v978
  %v1169 = vpop.f32.mrb[0].mxu0
  %v1170 = vadd.f32 %v59, %v1169
  %v1171 = vpop.f32.mrb[0].mxu0
  %1172 = vmatprep.mubr.f32.mxu0 0.0
  %1173 = vmatmul.mubr.f32.gmra.mrb[0].mxu0 %v981
  %v1174 = vpop.f32.mrb[0].mxu0
  %v1175 = vadd.f32 %v59, %v1174
  %v1176 = vpop.f32.mrb[0].mxu0
  %1177 = vmatprep.mubr.f32.mxu0 0.0
  %1178 = vmatmul.mubr.f32.gmra.mrb[0].mxu0 %v984
  %v1179 = vpop.f32.mrb[0].mxu0
  %v1180 = vadd.f32 %v59, %v1179
  %v1181 = vpop.f32.mrb[0].mxu0
  %1182 = vmatprep.mubr.f32.mxu0 0.0
  %1183 = vmatmul.mubr.f32.gmra.mrb[0].mxu0 %v987
  %v1184 = vpop.f32.mrb[0].mxu0
  %v1185 = vadd.f32 %v59, %v1184
  %v1186 = vpop.f32.mrb[0].mxu0
  %1187 = vmatprep.mubr.f32.mxu0 0.0
  %1188 = vmatmul.mubr.f32.gmra.mrb[0].mxu0 %v990
  %v1189 = vpop.f32.mrb[0].mxu0
  %v1190 = vadd.f32 %v59, %v1189
  %v1191 = vpop.f32.mrb[0].mxu0
  %1192 = vmatprep.mubr.f32.mxu0 0.0
  %1193 = vmatmul.mubr.f32.gmra.mrb[0].mxu0 %v993
  %v1194 = vpop.f32.mrb[0].mxu0
  %v1195 = vadd.f32 %v59, %v1194
  %v1196 = vpop.f32.mrb[0].mxu0
  %1197 = vmatprep.mubr.f32.mxu0 0.0
  %1198 = vmatmul.mubr.f32.gmra.mrb[0].mxu0 %v996
  %v1199 = vpop.f32.mrb[0].mxu0
  %v1200 = vadd.f32 %v59, %v1199
  %v1201 = vpop.f32.mrb[0].mxu0
  %1202 = vmatprep.mubr.f32.mxu0 0.0
  %1203 = vmatmul.mubr.f32.gmra.mrb[0].mxu0 %v999
  %v1204 = vpop.f32.mrb[0].mxu0
  %v1205 = vadd.f32 %v59, %v1204
  %v1206 = vpop.f32.mrb[0].mxu0
  %1207 = vmatprep.mubr.f32.mxu0 0.0
  %1208 = vmatmul.mubr.f32.gmra.mrb[0].mxu0 %v1002
  %v1209 = vpop.f32.mrb[0].mxu0
  %v1210 = vadd.f32 %v59, %v1209
  %v1211 = vpop.f32.mrb[0].mxu0
  %1212 = vmatprep.mubr.f32.mxu0 0.0
  %1213 = vmatmul.mubr.f32.gmra.mrb[0].mxu0 %v1005
  %v1214 = vpop.f32.mrb[0].mxu0
  %v1215 = vadd.f32 %v59, %v1214
  %v1216 = vpop.f32.mrb[0].mxu0
  %1217 = vmatprep.mubr.f32.mxu0 0.0
  %1218 = vmatmul.mubr.f32.gmra.mrb[0].mxu0 %v1008
  %v1219 = vpop.f32.mrb[0].mxu0
  %v1220 = vadd.f32 %v59, %v1219
  %v1221 = vpop.f32.mrb[0].mxu0
  %1222 = vmatprep.mubr.f32.mxu0 0.0
  %1223 = vmatmul.mubr.f32.gmra.mrb[0].mxu0 %v1011
  %v1224 = vpop.f32.mrb[0].mxu0
  %v1225 = vadd.f32 %v59, %v1224
  %v1226 = vpop.f32.mrb[0].mxu0
  %1227 = vmatprep.mubr.f32.mxu0 0.0
  %1228 = vmatmul.mubr.f32.gmra.mrb[0].mxu0 %v1014
  %v1229 = vpop.f32.mrb[0].mxu0
  %v1230 = vadd.f32 %v59, %v1229
  %v1231 = vpop.f32.mrb[0].mxu0
  %1232 = vmatprep.mubr.f32.mxu0 0.0
  %1233 = vmatmul.mubr.f32.gmra.mrb[0].mxu0 %v1017
  %v1234 = vpop.f32.mrb[0].mxu0
  %v1235 = vadd.f32 %v59, %v1234
  %v1236 = vpop.f32.mrb[0].mxu0
  %1237 = vmatprep.mubr.f32.mxu0 0.0
  %1238 = vmatmul.mubr.f32.gmra.mrb[0].mxu0 %v1020
  %v1239 = vpop.f32.mrb[0].mxu0
  %v1240 = vadd.f32 %v59, %v1239
  %v1241 = vpop.f32.mrb[0].mxu0
  %1242 = vmatprep.mubr.f32.mxu0 0.0
  %1243 = vmatmul.mubr.f32.gmra.mrb[0].mxu0 %v1023
  %v1244 = vpop.f32.mrb[0].mxu0
  %v1245 = vadd.f32 %v59, %v1244
  %v1246 = vpop.f32.mrb[0].mxu0
  %1247 = vmatprep.mubr.f32.mxu0 0.0
  %1248 = vmatmul.mubr.f32.gmra.mrb[0].mxu0 %v1026
  %v1249 = vpop.f32.mrb[0].mxu0
  %v1250 = vadd.f32 %v59, %v1249
  %v1251 = vpop.f32.mrb[0].mxu0
  %1252 = vmatprep.mubr.f32.mxu0 0.0
  %1253 = vmatmul.mubr.f32.gmra.mrb[0].mxu0 %v1029
  %v1254 = vpop.f32.mrb[0].mxu0
  %v1255 = vadd.f32 %v59, %v1254
  %v1256 = vpop.f32.mrb[0].mxu0
  %1257 = vmatprep.mubr.f32.mxu0 0.0
  %1258 = vmatmul.mubr.f32.gmra.mrb[0].mxu0 %v1032
  %v1259 = vpop.f32.mrb[0].mxu0
  %v1260 = vadd.f32 %v59, %v1259
  %v1261 = vpop.f32.mrb[0].mxu0
  %1262 = vmatprep.mubr.f32.mxu0 0.0
  %1263 = vmatmul.mubr.f32.gmra.mrb[0].mxu0 %v1035
  %v1264 = vpop.f32.mrb[0].mxu0
  %v1265 = vadd.f32 %v59, %v1264
  %v1266 = vpop.f32.mrb[0].mxu0
  %1267 = vmatprep.mubr.f32.mxu0 0.0
  %1268 = vmatmul.mubr.f32.gmra.mrb[0].mxu0 %v1038
  %v1269 = vpop.f32.mrb[0].mxu0
  %v1270 = vadd.f32 %v59, %v1269
  %v1271 = vpop.f32.mrb[0].mxu0
  %1272 = vmatprep.mubr.f32.mxu0 0.0
  %1273 = vmatmul.mubr.f32.gmra.mrb[0].mxu0 %v1041
  %v1274 = vpop.f32.mrb[0].mxu0
  %v1275 = vadd.f32 %v59, %v1274
  %v1276 = vpop.f32.mrb[0].mxu0
  %1277 = vmatprep.mubr.f32.mxu0 0.0
  %1278 = vmatmul.mubr.f32.gmra.mrb[0].mxu0 %v1044
  %v1279 = vpop.f32.mrb[0].mxu0
  %v1280 = vadd.f32 %v59, %v1279
  %v1281 = vpop.f32.mrb[0].mxu0
  %1282 = vmatprep.mubr.f32.mxu0 0.0
  %1283 = vmatmul.mubr.f32.gmra.mrb[0].mxu0 %v1047
  %v1284 = vpop.f32.mrb[0].mxu0
  %v1285 = vadd.f32 %v59, %v1284
  %v1286 = vpop.f32.mrb[0].mxu0
  %1287 = vmatprep.mubr.f32.mxu0 0.0
  %1288 = vmatmul.mubr.f32.gmra.mrb[0].mxu0 %v1050
  %v1289 = vpop.f32.mrb[0].mxu0
  %v1290 = vadd.f32 %v59, %v1289
  %v1291 = vpop.f32.mrb[0].mxu0
  %1292 = vmatprep.mubr.f32.mxu0 0.0
  %1293 = vmatmul.mubr.f32.gmra.mrb[0].mxu0 %v1053
  %v1294 = vpop.f32.mrb[0].mxu0
  %v1295 = vadd.f32 %v59, %v1294
  %v1296 = vpop.f32.mrb[0].mxu0
  %1297 = vmatprep.mubr.f32.mxu0 0.0
  %1298 = vmatmul.mubr.f32.gmra.mrb[0].mxu0 %v1056
  %v1299 = vpop.f32.mrb[0].mxu0
  %v1300 = vadd.f32 %v59, %v1299
  %v1301 = vpop.f32.mrb[0].mxu0
  %1302 = vdwg.mxu0
  %v1303 = vmax.f32 %v1125, 0.0
  %v1304 = vmax.f32 %v1130, 0.0
  %v1305 = vmax.f32 %v1135, 0.0
  %v1306 = vmax.f32 %v1140, 0.0
  %v1307 = vmax.f32 %v1145, 0.0
  %v1308 = vmax.f32 %v1150, 0.0
  %v1309 = vmax.f32 %v1155, 0.0
  %v1310 = vmax.f32 %v1160, 0.0
  %v1311 = vmax.f32 %v1165, 0.0
  %v1312 = vmax.f32 %v1170, 0.0
  %v1313 = vmax.f32 %v1175, 0.0
  %v1314 = vmax.f32 %v1180, 0.0
  %v1315 = vmax.f32 %v1185, 0.0
  %v1316 = vmax.f32 %v1190, 0.0
  %v1317 = vmax.f32 %v1195, 0.0
  %v1318 = vmax.f32 %v1200, 0.0
  %v1319 = vmax.f32 %v1205, 0.0
  %v1320 = vmax.f32 %v1210, 0.0
  %v1321 = vmax.f32 %v1215, 0.0
  %v1322 = vmax.f32 %v1220, 0.0
  %v1323 = vmax.f32 %v1225, 0.0
  %v1324 = vmax.f32 %v1230, 0.0
  %v1325 = vmax.f32 %v1235, 0.0
  %v1326 = vmax.f32 %v1240, 0.0
  %v1327 = vmax.f32 %v1245, 0.0
  %v1328 = vmax.f32 %v1250, 0.0
  %v1329 = vmax.f32 %v1255, 0.0
  %v1330 = vmax.f32 %v1260, 0.0
  %v1331 = vmax.f32 %v1265, 0.0
  %v1332 = vmax.f32 %v1270, 0.0
  %v1333 = vmax.f32 %v1275, 0.0
  %v1334 = vmax.f32 %v1280, 0.0
  %v1335 = vmax.f32 %v1285, 0.0
  %v1336 = vmax.f32 %v1290, 0.0
  %v1337 = vmax.f32 %v1295, 0.0
  %v1338 = vmax.f32 %v1300, 0.0
  %s1339 = scalar_lea.vmem %s0, 864
  %v1340 = vld [vmem:[%s1339] sm:$0xff]
  %v1341 = vld [vmem:[%s1339 + $0x8] sm:$0xff]
  %v1342 = vld [vmem:[%s1339 + $0x10] sm:$0xff]
  %v1343 = vld [vmem:[%s1339 + $0x18] sm:$0xff]
  %v1344 = vld [vmem:[%s1339 + $0x20] sm:$0xff]
  %v1345 = vld [vmem:[%s1339 + $0x28] sm:$0xff]
  %v1346 = vld [vmem:[%s1339 + $0x30] sm:$0xff]
  %v1347 = vld [vmem:[%s1339 + $0x38] sm:$0xff]
  %v1348 = vld [vmem:[%s1339 + $0x40] sm:$0xff]
  %v1349 = vld [vmem:[%s1339 + $0x48] sm:$0xff]
  %v1350 = vld [vmem:[%s1339 + $0x50] sm:$0xff]
  %v1351 = vld [vmem:[%s1339 + $0x58] sm:$0xff]
  %v1352 = vld [vmem:[%s1339 + $0x60] sm:$0xff]
  %v1353 = vld [vmem:[%s1339 + $0x68] sm:$0xff]
  %v1354 = vld [vmem:[%s1339 + $0x70] sm:$0xff]
  %v1355 = vld [vmem:[%s1339 + $0x78] sm:$0xff]
  %v1356 = vld [vmem:[%s1339 + $0x80] sm:$0xff]
  %v1357 = vld [vmem:[%s1339 + $0x88] sm:$0xff]
  %v1358 = vld [vmem:[%s1339 + $0x90] sm:$0xff]
  %v1359 = vld [vmem:[%s1339 + $0x98] sm:$0xff]
  %v1360 = vld [vmem:[%s1339 + $0xa0] sm:$0xff]
  %v1361 = vld [vmem:[%s1339 + $0xa8] sm:$0xff]
  %v1362 = vld [vmem:[%s1339 + $0xb0] sm:$0xff]
  %v1363 = vld [vmem:[%s1339 + $0xb8] sm:$0xff]
  %v1364 = vld [vmem:[%s1339 + $0xc0] sm:$0xff]
  %v1365 = vld [vmem:[%s1339 + $0xc8] sm:$0xff]
  %v1366 = vld [vmem:[%s1339 + $0xd0] sm:$0xff]
  %v1367 = vld [vmem:[%s1339 + $0xd8] sm:$0xff]
  %v1368 = vld [vmem:[%s1339 + $0xe0] sm:$0xff]
  %v1369 = vld [vmem:[%s1339 + $0xe8] sm:$0xff]
  %v1370 = vld [vmem:[%s1339 + $0xf0] sm:$0xff]
  %v1371 = vld [vmem:[%s1339 + $0xf8] sm:$0xff]
  %v1372 = vld [vmem:[%s1339 + $0x100] sm:$0xff]
  %v1373 = vld [vmem:[%s1339 + $0x108] sm:$0xff]
  %v1374 = vld [vmem:[%s1339 + $0x110] sm:$0xff]
  %v1375 = vld [vmem:[%s1339 + $0x118] sm:$0xff]
  %v1377 = vsel %vm61, %v1340, 0
  %v1380 = vsel %vm61, %v1341, 0
  %v1383 = vsel %vm61, %v1342, 0
  %v1386 = vsel %vm61, %v1343, 0
  %v1389 = vsel %vm61, %v1344, 0
  %v1392 = vsel %vm61, %v1345, 0
  %v1395 = vsel %vm61, %v1346, 0
  %v1398 = vsel %vm61, %v1347, 0
  %v1401 = vsel %vm61, %v1348, 0
  %v1404 = vsel %vm61, %v1349, 0
  %v1407 = vsel %vm61, %v1350, 0
  %v1410 = vsel %vm61, %v1351, 0
  %v1413 = vsel %vm61, %v1352, 0
  %v1416 = vsel %vm61, %v1353, 0
  %v1419 = vsel %vm61, %v1354, 0
  %v1422 = vsel %vm61, %v1355, 0
  %v1425 = vsel %vm61, %v1356, 0
  %v1428 = vsel %vm61, %v1357, 0
  %v1431 = vsel %vm61, %v1358, 0
  %v1434 = vsel %vm61, %v1359, 0
  %v1437 = vsel %vm61, %v1360, 0
  %v1440 = vsel %vm61, %v1361, 0
  %v1443 = vsel %vm61, %v1362, 0
  %v1446 = vsel %vm61, %v1363, 0
  %v1449 = vsel %vm61, %v1364, 0
  %v1452 = vsel %vm61, %v1365, 0
  %v1455 = vsel %vm61, %v1366, 0
  %v1458 = vsel %vm61, %v1367, 0
  %v1461 = vsel %vm61, %v1368, 0
  %v1464 = vsel %vm61, %v1369, 0
  %v1467 = vsel %vm61, %v1370, 0
  %v1470 = vsel %vm61, %v1371, 0
  %v1473 = vsel %vm61, %v1372, 0
  %v1476 = vsel %vm61, %v1373, 0
  %v1479 = vsel %vm61, %v1374, 0
  %v1482 = vsel %vm61, %v1375, 0
  %1484 = vmatprep.subr.mxu0 0.0
  %1485 = vmatpush1.msra.mxu0 %v14
  %1486 = vmatprep.subr.mxu0 0.0
  %1487 = vmatpush1.msra.mxu0 %v15
  %1488 = vmatprep.subr.mxu0 0.0
  %1489 = vmatpush1.msra.mxu0 %v16
  %1490 = vmatprep.subr.mxu0 0.0
  %1491 = vmatpush1.msra.mxu0 %v17
  %1492 = vmatprep.subr.mxu0 0.0
  %1493 = vmatpush1.msra.mxu0 0.0
  %1494 = vmatprep.subr.mxu0 0.0
  %1495 = vmatpush1.msra.mxu0 0.0
  %1496 = vmatprep.subr.mxu0 0.0
  %1497 = vmatpush1.msra.mxu0 0.0
  %1498 = vmatprep.subr.mxu0 0.0
  %1499 = vmatpush1.msra.mxu0 0.0
  %1500 = vmatprep.subr.mxu0 0.0
  %1501 = vmatpush1.msra.mxu0 0.0
  %1502 = vmatprep.subr.mxu0 0.0
  %1503 = vmatpush1.msra.mxu0 0.0
  %1504 = vmatprep.subr.mxu0 0.0
  %1505 = vmatpush1.msra.mxu0 0.0
  %1506 = vmatprep.subr.mxu0 0.0
  %1507 = vmatpush1.msra.mxu0 0.0
  %1508 = vmatprep.subr.mxu0 0.0
  %1509 = vmatpush1.msra.mxu0 0.0
  %1510 = vmatprep.subr.mxu0 0.0
  %1511 = vmatpush1.msra.mxu0 0.0
  %1512 = vmatprep.subr.mxu0 0.0
  %1513 = vmatpush1.msra.mxu0 0.0
  %1514 = vmatprep.subr.mxu0 0.0
  %1515 = vmatpush1.msra.mxu0 0.0
  %1516 = vmatprep.subr.mxu0 0.0
  %1517 = vmatpush1.msra.mxu0 0.0
  %1518 = vmatprep.subr.mxu0 0.0
  %1519 = vmatpush1.msra.mxu0 0.0
  %1520 = vmatprep.subr.mxu0 0.0
  %1521 = vmatpush1.msra.mxu0 0.0
  %1522 = vmatprep.subr.mxu0 0.0
  %1523 = vmatpush1.msra.mxu0 0.0
  %1524 = vmatprep.subr.mxu0 0.0
  %1525 = vmatpush1.msra.mxu0 0.0
  %1526 = vmatprep.subr.mxu0 0.0
  %1527 = vmatpush1.msra.mxu0 0.0
  %1528 = vmatprep.subr.mxu0 0.0
  %1529 = vmatpush1.msra.mxu0 0.0
  %1530 = vmatprep.subr.mxu0 0.0
  %1531 = vmatpush1.msra.mxu0 0.0
  %1532 = vmatprep.subr.mxu0 0.0
  %1533 = vmatpush1.msra.mxu0 0.0
  %1534 = vmatprep.subr.mxu0 0.0
  %1535 = vmatpush1.msra.mxu0 0.0
  %1536 = vmatprep.subr.mxu0 0.0
  %1537 = vmatpush1.msra.mxu0 0.0
  %1538 = vmatprep.subr.mxu0 0.0
  %1539 = vmatpush1.msra.mxu0 0.0
  %1540 = vmatprep.subr.mxu0 0.0
  %1541 = vmatpush1.msra.mxu0 0.0
  %1542 = vmatprep.subr.mxu0 0.0
  %1543 = vmatpush1.msra.mxu0 0.0
  %1544 = vmatprep.subr.mxu0 0.0
  %1545 = vmatpush1.msra.mxu0 0.0
  %1546 = vmatprep.subr.mxu0 0.0
  %1547 = vmatpush1.msra.mxu0 0.0
  %1548 = vmatprep.mubr.f32.mxu0 0.0
  %1549 = vmatmul.mubr.f32.gmra.mrb[0].mxu0 %v1377
  %v1550 = vpop.f32.mrb[0].mxu0
  %v1551 = vadd.f32 %v59, %v1550
  %v1552 = vpop.f32.mrb[0].mxu0
  %1553 = vmatprep.mubr.f32.mxu0 0.0
  %1554 = vmatmul.mubr.f32.gmra.mrb[0].mxu0 %v1380
  %v1555 = vpop.f32.mrb[0].mxu0
  %v1556 = vadd.f32 %v59, %v1555
  %v1557 = vpop.f32.mrb[0].mxu0
  %1558 = vmatprep.mubr.f32.mxu0 0.0
  %1559 = vmatmul.mubr.f32.gmra.mrb[0].mxu0 %v1383
  %v1560 = vpop.f32.mrb[0].mxu0
  %v1561 = vadd.f32 %v59, %v1560
  %v1562 = vpop.f32.mrb[0].mxu0
  %1563 = vmatprep.mubr.f32.mxu0 0.0
  %1564 = vmatmul.mubr.f32.gmra.mrb[0].mxu0 %v1386
  %v1565 = vpop.f32.mrb[0].mxu0
  %v1566 = vadd.f32 %v59, %v1565
  %v1567 = vpop.f32.mrb[0].mxu0
  %1568 = vmatprep.mubr.f32.mxu0 0.0
  %1569 = vmatmul.mubr.f32.gmra.mrb[0].mxu0 %v1389
  %v1570 = vpop.f32.mrb[0].mxu0
  %v1571 = vadd.f32 %v59, %v1570
  %v1572 = vpop.f32.mrb[0].mxu0
  %1573 = vmatprep.mubr.f32.mxu0 0.0
  %1574 = vmatmul.mubr.f32.gmra.mrb[0].mxu0 %v1392
  %v1575 = vpop.f32.mrb[0].mxu0
  %v1576 = vadd.f32 %v59, %v1575
  %v1577 = vpop.f32.mrb[0].mxu0
  %1578 = vmatprep.mubr.f32.mxu0 0.0
  %1579 = vmatmul.mubr.f32.gmra.mrb[0].mxu0 %v1395
  %v1580 = vpop.f32.mrb[0].mxu0
  %v1581 = vadd.f32 %v59, %v1580
  %v1582 = vpop.f32.mrb[0].mxu0
  %1583 = vmatprep.mubr.f32.mxu0 0.0
  %1584 = vmatmul.mubr.f32.gmra.mrb[0].mxu0 %v1398
  %v1585 = vpop.f32.mrb[0].mxu0
  %v1586 = vadd.f32 %v59, %v1585
  %v1587 = vpop.f32.mrb[0].mxu0
  %1588 = vmatprep.mubr.f32.mxu0 0.0
  %1589 = vmatmul.mubr.f32.gmra.mrb[0].mxu0 %v1401
  %v1590 = vpop.f32.mrb[0].mxu0
  %v1591 = vadd.f32 %v59, %v1590
  %v1592 = vpop.f32.mrb[0].mxu0
  %1593 = vmatprep.mubr.f32.mxu0 0.0
  %1594 = vmatmul.mubr.f32.gmra.mrb[0].mxu0 %v1404
  %v1595 = vpop.f32.mrb[0].mxu0
  %v1596 = vadd.f32 %v59, %v1595
  %v1597 = vpop.f32.mrb[0].mxu0
  %1598 = vmatprep.mubr.f32.mxu0 0.0
  %1599 = vmatmul.mubr.f32.gmra.mrb[0].mxu0 %v1407
  %v1600 = vpop.f32.mrb[0].mxu0
  %v1601 = vadd.f32 %v59, %v1600
  %v1602 = vpop.f32.mrb[0].mxu0
  %1603 = vmatprep.mubr.f32.mxu0 0.0
  %1604 = vmatmul.mubr.f32.gmra.mrb[0].mxu0 %v1410
  %v1605 = vpop.f32.mrb[0].mxu0
  %v1606 = vadd.f32 %v59, %v1605
  %v1607 = vpop.f32.mrb[0].mxu0
  %1608 = vmatprep.mubr.f32.mxu0 0.0
  %1609 = vmatmul.mubr.f32.gmra.mrb[0].mxu0 %v1413
  %v1610 = vpop.f32.mrb[0].mxu0
  %v1611 = vadd.f32 %v59, %v1610
  %v1612 = vpop.f32.mrb[0].mxu0
  %1613 = vmatprep.mubr.f32.mxu0 0.0
  %1614 = vmatmul.mubr.f32.gmra.mrb[0].mxu0 %v1416
  %v1615 = vpop.f32.mrb[0].mxu0
  %v1616 = vadd.f32 %v59, %v1615
  %v1617 = vpop.f32.mrb[0].mxu0
  %1618 = vmatprep.mubr.f32.mxu0 0.0
  %1619 = vmatmul.mubr.f32.gmra.mrb[0].mxu0 %v1419
  %v1620 = vpop.f32.mrb[0].mxu0
  %v1621 = vadd.f32 %v59, %v1620
  %v1622 = vpop.f32.mrb[0].mxu0
  %1623 = vmatprep.mubr.f32.mxu0 0.0
  %1624 = vmatmul.mubr.f32.gmra.mrb[0].mxu0 %v1422
  %v1625 = vpop.f32.mrb[0].mxu0
  %v1626 = vadd.f32 %v59, %v1625
  %v1627 = vpop.f32.mrb[0].mxu0
  %1628 = vmatprep.mubr.f32.mxu0 0.0
  %1629 = vmatmul.mubr.f32.gmra.mrb[0].mxu0 %v1425
  %v1630 = vpop.f32.mrb[0].mxu0
  %v1631 = vadd.f32 %v59, %v1630
  %v1632 = vpop.f32.mrb[0].mxu0
  %1633 = vmatprep.mubr.f32.mxu0 0.0
  %1634 = vmatmul.mubr.f32.gmra.mrb[0].mxu0 %v1428
  %v1635 = vpop.f32.mrb[0].mxu0
  %v1636 = vadd.f32 %v59, %v1635
  %v1637 = vpop.f32.mrb[0].mxu0
  %1638 = vmatprep.mubr.f32.mxu0 0.0
  %1639 = vmatmul.mubr.f32.gmra.mrb[0].mxu0 %v1431
  %v1640 = vpop.f32.mrb[0].mxu0
  %v1641 = vadd.f32 %v59, %v1640
  %v1642 = vpop.f32.mrb[0].mxu0
  %1643 = vmatprep.mubr.f32.mxu0 0.0
  %1644 = vmatmul.mubr.f32.gmra.mrb[0].mxu0 %v1434
  %v1645 = vpop.f32.mrb[0].mxu0
  %v1646 = vadd.f32 %v59, %v1645
  %v1647 = vpop.f32.mrb[0].mxu0
  %1648 = vmatprep.mubr.f32.mxu0 0.0
  %1649 = vmatmul.mubr.f32.gmra.mrb[0].mxu0 %v1437
  %v1650 = vpop.f32.mrb[0].mxu0
  %v1651 = vadd.f32 %v59, %v1650
  %v1652 = vpop.f32.mrb[0].mxu0
  %1653 = vmatprep.mubr.f32.mxu0 0.0
  %1654 = vmatmul.mubr.f32.gmra.mrb[0].mxu0 %v1440
  %v1655 = vpop.f32.mrb[0].mxu0
  %v1656 = vadd.f32 %v59, %v1655
  %v1657 = vpop.f32.mrb[0].mxu0
  %1658 = vmatprep.mubr.f32.mxu0 0.0
  %1659 = vmatmul.mubr.f32.gmra.mrb[0].mxu0 %v1443
  %v1660 = vpop.f32.mrb[0].mxu0
  %v1661 = vadd.f32 %v59, %v1660
  %v1662 = vpop.f32.mrb[0].mxu0
  %1663 = vmatprep.mubr.f32.mxu0 0.0
  %1664 = vmatmul.mubr.f32.gmra.mrb[0].mxu0 %v1446
  %v1665 = vpop.f32.mrb[0].mxu0
  %v1666 = vadd.f32 %v59, %v1665
  %v1667 = vpop.f32.mrb[0].mxu0
  %1668 = vmatprep.mubr.f32.mxu0 0.0
  %1669 = vmatmul.mubr.f32.gmra.mrb[0].mxu0 %v1449
  %v1670 = vpop.f32.mrb[0].mxu0
  %v1671 = vadd.f32 %v59, %v1670
  %v1672 = vpop.f32.mrb[0].mxu0
  %1673 = vmatprep.mubr.f32.mxu0 0.0
  %1674 = vmatmul.mubr.f32.gmra.mrb[0].mxu0 %v1452
  %v1675 = vpop.f32.mrb[0].mxu0
  %v1676 = vadd.f32 %v59, %v1675
  %v1677 = vpop.f32.mrb[0].mxu0
  %1678 = vmatprep.mubr.f32.mxu0 0.0
  %1679 = vmatmul.mubr.f32.gmra.mrb[0].mxu0 %v1455
  %v1680 = vpop.f32.mrb[0].mxu0
  %v1681 = vadd.f32 %v59, %v1680
  %v1682 = vpop.f32.mrb[0].mxu0
  %1683 = vmatprep.mubr.f32.mxu0 0.0
  %1684 = vmatmul.mubr.f32.gmra.mrb[0].mxu0 %v1458
  %v1685 = vpop.f32.mrb[0].mxu0
  %v1686 = vadd.f32 %v59, %v1685
  %v1687 = vpop.f32.mrb[0].mxu0
  %1688 = vmatprep.mubr.f32.mxu0 0.0
  %1689 = vmatmul.mubr.f32.gmra.mrb[0].mxu0 %v1461
  %v1690 = vpop.f32.mrb[0].mxu0
  %v1691 = vadd.f32 %v59, %v1690
  %v1692 = vpop.f32.mrb[0].mxu0
  %1693 = vmatprep.mubr.f32.mxu0 0.0
  %1694 = vmatmul.mubr.f32.gmra.mrb[0].mxu0 %v1464
  %v1695 = vpop.f32.mrb[0].mxu0
  %v1696 = vadd.f32 %v59, %v1695
  %v1697 = vpop.f32.mrb[0].mxu0
  %1698 = vmatprep.mubr.f32.mxu0 0.0
  %1699 = vmatmul.mubr.f32.gmra.mrb[0].mxu0 %v1467
  %v1700 = vpop.f32.mrb[0].mxu0
  %v1701 = vadd.f32 %v59, %v1700
  %v1702 = vpop.f32.mrb[0].mxu0
  %1703 = vmatprep.mubr.f32.mxu0 0.0
  %1704 = vmatmul.mubr.f32.gmra.mrb[0].mxu0 %v1470
  %v1705 = vpop.f32.mrb[0].mxu0
  %v1706 = vadd.f32 %v59, %v1705
  %v1707 = vpop.f32.mrb[0].mxu0
  %1708 = vmatprep.mubr.f32.mxu0 0.0
  %1709 = vmatmul.mubr.f32.gmra.mrb[0].mxu0 %v1473
  %v1710 = vpop.f32.mrb[0].mxu0
  %v1711 = vadd.f32 %v59, %v1710
  %v1712 = vpop.f32.mrb[0].mxu0
  %1713 = vmatprep.mubr.f32.mxu0 0.0
  %1714 = vmatmul.mubr.f32.gmra.mrb[0].mxu0 %v1476
  %v1715 = vpop.f32.mrb[0].mxu0
  %v1716 = vadd.f32 %v59, %v1715
  %v1717 = vpop.f32.mrb[0].mxu0
  %1718 = vmatprep.mubr.f32.mxu0 0.0
  %1719 = vmatmul.mubr.f32.gmra.mrb[0].mxu0 %v1479
  %v1720 = vpop.f32.mrb[0].mxu0
  %v1721 = vadd.f32 %v59, %v1720
  %v1722 = vpop.f32.mrb[0].mxu0
  %1723 = vmatprep.mubr.f32.mxu0 0.0
  %1724 = vmatmul.mubr.f32.gmra.mrb[0].mxu0 %v1482
  %v1725 = vpop.f32.mrb[0].mxu0
  %v1726 = vadd.f32 %v59, %v1725
  %v1727 = vpop.f32.mrb[0].mxu0
  %1728 = vdwg.mxu0
  %v1729 = vmax.f32 %v1551, 0.0
  %v1730 = vmax.f32 %v1556, 0.0
  %v1731 = vmax.f32 %v1561, 0.0
  %v1732 = vmax.f32 %v1566, 0.0
  %v1733 = vmax.f32 %v1571, 0.0
  %v1734 = vmax.f32 %v1576, 0.0
  %v1735 = vmax.f32 %v1581, 0.0
  %v1736 = vmax.f32 %v1586, 0.0
  %v1737 = vmax.f32 %v1591, 0.0
  %v1738 = vmax.f32 %v1596, 0.0
  %v1739 = vmax.f32 %v1601, 0.0
  %v1740 = vmax.f32 %v1606, 0.0
  %v1741 = vmax.f32 %v1611, 0.0
  %v1742 = vmax.f32 %v1616, 0.0
  %v1743 = vmax.f32 %v1621, 0.0
  %v1744 = vmax.f32 %v1626, 0.0
  %v1745 = vmax.f32 %v1631, 0.0
  %v1746 = vmax.f32 %v1636, 0.0
  %v1747 = vmax.f32 %v1641, 0.0
  %v1748 = vmax.f32 %v1646, 0.0
  %v1749 = vmax.f32 %v1651, 0.0
  %v1750 = vmax.f32 %v1656, 0.0
  %v1751 = vmax.f32 %v1661, 0.0
  %v1752 = vmax.f32 %v1666, 0.0
  %v1753 = vmax.f32 %v1671, 0.0
  %v1754 = vmax.f32 %v1676, 0.0
  %v1755 = vmax.f32 %v1681, 0.0
  %v1756 = vmax.f32 %v1686, 0.0
  %v1757 = vmax.f32 %v1691, 0.0
  %v1758 = vmax.f32 %v1696, 0.0
  %v1759 = vmax.f32 %v1701, 0.0
  %v1760 = vmax.f32 %v1706, 0.0
  %v1761 = vmax.f32 %v1711, 0.0
  %v1762 = vmax.f32 %v1716, 0.0
  %v1763 = vmax.f32 %v1721, 0.0
  %v1764 = vmax.f32 %v1726, 0.0
  %v1765 = vmax.f32 %v1303, %v1729
  %v1766 = vmax.f32 %v1304, %v1730
  %v1767 = vmax.f32 %v1305, %v1731
  %v1768 = vmax.f32 %v1306, %v1732
  %v1769 = vmax.f32 %v1307, %v1733
  %v1770 = vmax.f32 %v1308, %v1734
  %v1771 = vmax.f32 %v1309, %v1735
  %v1772 = vmax.f32 %v1310, %v1736
  %v1773 = vmax.f32 %v1311, %v1737
  %v1774 = vmax.f32 %v1312, %v1738
  %v1775 = vmax.f32 %v1313, %v1739
  %v1776 = vmax.f32 %v1314, %v1740
  %v1777 = vmax.f32 %v1315, %v1741
  %v1778 = vmax.f32 %v1316, %v1742
  %v1779 = vmax.f32 %v1317, %v1743
  %v1780 = vmax.f32 %v1318, %v1744
  %v1781 = vmax.f32 %v1319, %v1745
  %v1782 = vmax.f32 %v1320, %v1746
  %v1783 = vmax.f32 %v1321, %v1747
  %v1784 = vmax.f32 %v1322, %v1748
  %v1785 = vmax.f32 %v1323, %v1749
  %v1786 = vmax.f32 %v1324, %v1750
  %v1787 = vmax.f32 %v1325, %v1751
  %v1788 = vmax.f32 %v1326, %v1752
  %v1789 = vmax.f32 %v1327, %v1753
  %v1790 = vmax.f32 %v1328, %v1754
  %v1791 = vmax.f32 %v1329, %v1755
  %v1792 = vmax.f32 %v1330, %v1756
  %v1793 = vmax.f32 %v1331, %v1757
  %v1794 = vmax.f32 %v1332, %v1758
  %v1795 = vmax.f32 %v1333, %v1759
  %v1796 = vmax.f32 %v1334, %v1760
  %v1797 = vmax.f32 %v1335, %v1761
  %v1798 = vmax.f32 %v1336, %v1762
  %v1799 = vmax.f32 %v1337, %v1763
  %v1800 = vmax.f32 %v1338, %v1764
  %v1801 = vmax.f32 %v877, %v1765
  %v1802 = vmax.f32 %v878, %v1766
  %v1803 = vmax.f32 %v879, %v1767
  %v1804 = vmax.f32 %v880, %v1768
  %v1805 = vmax.f32 %v881, %v1769
  %v1806 = vmax.f32 %v882, %v1770
  %v1807 = vmax.f32 %v883, %v1771
  %v1808 = vmax.f32 %v884, %v1772
  %v1809 = vmax.f32 %v885, %v1773
  %v1810 = vmax.f32 %v886, %v1774
  %v1811 = vmax.f32 %v887, %v1775
  %v1812 = vmax.f32 %v888, %v1776
  %v1813 = vmax.f32 %v889, %v1777
  %v1814 = vmax.f32 %v890, %v1778
  %v1815 = vmax.f32 %v891, %v1779
  %v1816 = vmax.f32 %v892, %v1780
  %v1817 = vmax.f32 %v893, %v1781
  %v1818 = vmax.f32 %v894, %v1782
  %v1819 = vmax.f32 %v895, %v1783
  %v1820 = vmax.f32 %v896, %v1784
  %v1821 = vmax.f32 %v897, %v1785
  %v1822 = vmax.f32 %v898, %v1786
  %v1823 = vmax.f32 %v899, %v1787
  %v1824 = vmax.f32 %v900, %v1788
  %v1825 = vmax.f32 %v901, %v1789
  %v1826 = vmax.f32 %v902, %v1790
  %v1827 = vmax.f32 %v903, %v1791
  %v1828 = vmax.f32 %v904, %v1792
  %v1829 = vmax.f32 %v905, %v1793
  %v1830 = vmax.f32 %v906, %v1794
  %v1831 = vmax.f32 %v907, %v1795
  %v1832 = vmax.f32 %v908, %v1796
  %v1833 = vmax.f32 %v909, %v1797
  %v1834 = vmax.f32 %v910, %v1798
  %v1835 = vmax.f32 %v911, %v1799
  %v1836 = vmax.f32 %v912, %v1800
  %1837 = vst [vmem:[%s3] sm:$0xff] %v1801
  %1838 = vst [vmem:[%s3 + $0x8] sm:$0xff] %v1802
  %1839 = vst [vmem:[%s3 + $0x10] sm:$0xff] %v1803
  %1840 = vst [vmem:[%s3 + $0x18] sm:$0xff] %v1804
  %1841 = vst [vmem:[%s3 + $0x20] sm:$0xff] %v1805
  %1842 = vst [vmem:[%s3 + $0x28] sm:$0xff] %v1806
  %1843 = vst [vmem:[%s3 + $0x30] sm:$0xff] %v1807
  %1844 = vst [vmem:[%s3 + $0x38] sm:$0xff] %v1808
  %1845 = vst [vmem:[%s3 + $0x40] sm:$0xff] %v1809
  %1846 = vst [vmem:[%s3 + $0x48] sm:$0xff] %v1810
  %1847 = vst [vmem:[%s3 + $0x50] sm:$0xff] %v1811
  %1848 = vst [vmem:[%s3 + $0x58] sm:$0xff] %v1812
  %1849 = vst [vmem:[%s3 + $0x60] sm:$0xff] %v1813
  %1850 = vst [vmem:[%s3 + $0x68] sm:$0xff] %v1814
  %1851 = vst [vmem:[%s3 + $0x70] sm:$0xff] %v1815
  %1852 = vst [vmem:[%s3 + $0x78] sm:$0xff] %v1816
  %1853 = vst [vmem:[%s3 + $0x80] sm:$0xff] %v1817
  %1854 = vst [vmem:[%s3 + $0x88] sm:$0xff] %v1818
  %1855 = vst [vmem:[%s3 + $0x90] sm:$0xff] %v1819
  %1856 = vst [vmem:[%s3 + $0x98] sm:$0xff] %v1820
  %1857 = vst [vmem:[%s3 + $0xa0] sm:$0xff] %v1821
  %1858 = vst [vmem:[%s3 + $0xa8] sm:$0xff] %v1822
  %1859 = vst [vmem:[%s3 + $0xb0] sm:$0xff] %v1823
  %1860 = vst [vmem:[%s3 + $0xb8] sm:$0xff] %v1824
  %1861 = vst [vmem:[%s3 + $0xc0] sm:$0xff] %v1825
  %1862 = vst [vmem:[%s3 + $0xc8] sm:$0xff] %v1826
  %1863 = vst [vmem:[%s3 + $0xd0] sm:$0xff] %v1827
  %1864 = vst [vmem:[%s3 + $0xd8] sm:$0xff] %v1828
  %1865 = vst [vmem:[%s3 + $0xe0] sm:$0xff] %v1829
  %1866 = vst [vmem:[%s3 + $0xe8] sm:$0xff] %v1830
  %1867 = vst [vmem:[%s3 + $0xf0] sm:$0xff] %v1831
  %1868 = vst [vmem:[%s3 + $0xf8] sm:$0xff] %v1832
  %1869 = vst [vmem:[%s3 + $0x100] sm:$0xff] %v1833
  %1870 = vst [vmem:[%s3 + $0x108] sm:$0xff] %v1834
  %1871 = vst [vmem:[%s3 + $0x110] sm:$0xff] %v1835
  %1872 = vst [vmem:[%s3 + $0x118] sm:$0xff] %v1836
  // Predicated region
  $region14: #{cnn_forward.3} parent=0 // pred_check
    _
  $region15: #{cnn_forward.3} parent=0 // pred_check_branch
    %1874 = sbr.rel (0) target = $region17
  $region16: #{cnn_forward.3} parent=0 // pred_region
    _
  $region17: #{cnn_forward.3} parent=0 // pred_fallthru
    _
  // Predicated region
  $region18: #{cnn_forward.3} parent=0 // pred_check
    _
  $region19: #{cnn_forward.3} parent=0 // pred_check_branch
    %1876 = sbr.rel (0) target = $region21
  $region20: #{cnn_forward.3} parent=0 // pred_region
    _
  $region21: #{cnn_forward.3} parent=0 // pred_fallthru
    _

// kernel: cnn_forward.4
$region0: #{cnn_forward.4}
  #allocation0 [shape = 'u32[]', space=smem, size = 0x4, offset = 0x4, fixed_abs, tag = 'smem constant byte address 0x4 - core index']
  #allocation1 [shape = 'u32[144,128]{1,0:T(1,128)}', space=vmem, size = 0x12000, scoped, tag = 'internal scratch']
  %s0 = inlined_call_operand.vmem [shape: f32[4,32,256], index: 0, kind: input, shape index: {}]
  %s1 = inlined_call_operand.vmem [shape: f32[256,128], index: 1, kind: input, shape index: {}]
  %s2 = inlined_call_operand.vmem [shape: f32[1,128], index: 2, kind: input, shape index: {}]
  %s3 = inlined_call_operand.vmem [shape: f32[32,128], index: 3, kind: output, shape index: {}]
  %s4 = sld [smem:[#allocation0]]
  $region22: #{cnn_forward.4} parent=0
    _
  %s6 = ssub.s32 1, %s4
  %s7 = scalar_select 0, %s6, %s4
  // Predicated region
  $region2: #{cnn_forward.4} parent=0 // pred_check
    _
  $region3: #{cnn_forward.4} parent=0 // pred_check_branch
    %9 = sbr.rel (0) target = $region5
  $region4: #{cnn_forward.4} parent=0 // pred_region
    _
  $region5: #{cnn_forward.4} parent=0 // pred_fallthru
    _
  // Predicated region
  $region6: #{cnn_forward.4} parent=0 // pred_check
    _
  $region7: #{cnn_forward.4} parent=0 // pred_check_branch
    %11 = sbr.rel (0) target = $region9
  $region8: #{cnn_forward.4} parent=0 // pred_region
    _
  $region9: #{cnn_forward.4} parent=0 // pred_fallthru
    _
  // Predicated region
  $region10: #{cnn_forward.4} parent=0 // pred_check
    _
  $region11: #{cnn_forward.4} parent=0 // pred_check_branch
    %13 = sbr.rel (0) target = $region13
  $region12: #{cnn_forward.4} parent=0 // pred_region
    _
  $region13: #{cnn_forward.4} parent=0 // pred_fallthru
    _
  %v14 = vld [vmem:[%s1] sm:$0xff]
  %v15 = vld [vmem:[%s1 + $0x8] sm:$0xff]
  %v16 = vld [vmem:[%s1 + $0x10] sm:$0xff]
  %v17 = vld [vmem:[%s1 + $0x18] sm:$0xff]
  %v18 = vld [vmem:[%s1 + $0x20] sm:$0xff]
  %v19 = vld [vmem:[%s1 + $0x28] sm:$0xff]
  %v20 = vld [vmem:[%s1 + $0x30] sm:$0xff]
  %v21 = vld [vmem:[%s1 + $0x38] sm:$0xff]
  %v22 = vld [vmem:[%s1 + $0x40] sm:$0xff]
  %v23 = vld [vmem:[%s1 + $0x48] sm:$0xff]
  %v24 = vld [vmem:[%s1 + $0x50] sm:$0xff]
  %v25 = vld [vmem:[%s1 + $0x58] sm:$0xff]
  %v26 = vld [vmem:[%s1 + $0x60] sm:$0xff]
  %v27 = vld [vmem:[%s1 + $0x68] sm:$0xff]
  %v28 = vld [vmem:[%s1 + $0x70] sm:$0xff]
  %v29 = vld [vmem:[%s1 + $0x78] sm:$0xff]
  %v30 = vld [vmem:[%s1 + $0x80] sm:$0xff]
  %v31 = vld [vmem:[%s1 + $0x88] sm:$0xff]
  %v32 = vld [vmem:[%s1 + $0x90] sm:$0xff]
  %v33 = vld [vmem:[%s1 + $0x98] sm:$0xff]
  %v34 = vld [vmem:[%s1 + $0xa0] sm:$0xff]
  %v35 = vld [vmem:[%s1 + $0xa8] sm:$0xff]
  %v36 = vld [vmem:[%s1 + $0xb0] sm:$0xff]
  %v37 = vld [vmem:[%s1 + $0xb8] sm:$0xff]
  %v38 = vld [vmem:[%s1 + $0xc0] sm:$0xff]
  %v39 = vld [vmem:[%s1 + $0xc8] sm:$0xff]
  %v40 = vld [vmem:[%s1 + $0xd0] sm:$0xff]
  %v41 = vld [vmem:[%s1 + $0xd8] sm:$0xff]
  %v42 = vld [vmem:[%s1 + $0xe0] sm:$0xff]
  %v43 = vld [vmem:[%s1 + $0xe8] sm:$0xff]
  %v44 = vld [vmem:[%s1 + $0xf0] sm:$0xff]
  %v45 = vld [vmem:[%s1 + $0xf8] sm:$0xff]
  %v46 = vld [vmem:[%s2] sm:$0x1]
  %v47 = vld [vmem:[%s0] sm:$0xff]
  %v48 = vld [vmem:[%s0 + $0x8] sm:$0xff]
  %v49 = vld [vmem:[%s0 + $0x10] sm:$0xff]
  %v50 = vld [vmem:[%s0 + $0x18] sm:$0xff]
  %v51 = vld [vmem:[%s0 + $0x20] sm:$0xff]
  %v52 = vld [vmem:[%s0 + $0x28] sm:$0xff]
  %v53 = vld [vmem:[%s0 + $0x30] sm:$0xff]
  %v54 = vld [vmem:[%s0 + $0x38] sm:$0xff]
  %v56 = vlaneseq
  %v57 = vshrl.u32 %v56, 7
  %v58 = vsub.s32 0, %v57
  %v59 = vrot.slane %v46, %v58
  %61 = vmatprep.subr.mxu0 0.0
  %62 = vmatpush1.msra.mxu0 %v14
  %63 = vmatprep.subr.mxu0 0.0
  %64 = vmatpush1.msra.mxu0 %v15
  %65 = vmatprep.subr.mxu0 0.0
  %66 = vmatpush1.msra.mxu0 %v16
  %67 = vmatprep.subr.mxu0 0.0
  %68 = vmatpush1.msra.mxu0 %v17
  %69 = vmatprep.subr.mxu0 0.0
  %70 = vmatpush1.msra.mxu0 %v18
  %71 = vmatprep.subr.mxu0 0.0
  %72 = vmatpush1.msra.mxu0 %v19
  %73 = vmatprep.subr.mxu0 0.0
  %74 = vmatpush1.msra.mxu0 %v20
  %75 = vmatprep.subr.mxu0 0.0
  %76 = vmatpush1.msra.mxu0 %v21
  %77 = vmatprep.subr.mxu0 0.0
  %78 = vmatpush1.msra.mxu0 %v22
  %79 = vmatprep.subr.mxu0 0.0
  %80 = vmatpush1.msra.mxu0 %v23
  %81 = vmatprep.subr.mxu0 0.0
  %82 = vmatpush1.msra.mxu0 %v24
  %83 = vmatprep.subr.mxu0 0.0
  %84 = vmatpush1.msra.mxu0 %v25
  %85 = vmatprep.subr.mxu0 0.0
  %86 = vmatpush1.msra.mxu0 %v26
  %87 = vmatprep.subr.mxu0 0.0
  %88 = vmatpush1.msra.mxu0 %v27
  %89 = vmatprep.subr.mxu0 0.0
  %90 = vmatpush1.msra.mxu0 %v28
  %91 = vmatprep.subr.mxu0 0.0
  %92 = vmatpush1.msra.mxu0 %v29
  %93 = vmatprep.subr.mxu0 0.0
  %94 = vmatpush1.msra.mxu0 %v30
  %95 = vmatprep.subr.mxu0 0.0
  %96 = vmatpush1.msra.mxu0 %v31
  %97 = vmatprep.subr.mxu0 0.0
  %98 = vmatpush1.msra.mxu0 %v32
  %99 = vmatprep.subr.mxu0 0.0
  %100 = vmatpush1.msra.mxu0 %v33
  %101 = vmatprep.subr.mxu0 0.0
  %102 = vmatpush1.msra.mxu0 %v34
  %103 = vmatprep.subr.mxu0 0.0
  %104 = vmatpush1.msra.mxu0 %v35
  %105 = vmatprep.subr.mxu0 0.0
  %106 = vmatpush1.msra.mxu0 %v36
  %107 = vmatprep.subr.mxu0 0.0
  %108 = vmatpush1.msra.mxu0 %v37
  %109 = vmatprep.subr.mxu0 0.0
  %110 = vmatpush1.msra.mxu0 %v38
  %111 = vmatprep.subr.mxu0 0.0
  %112 = vmatpush1.msra.mxu0 %v39
  %113 = vmatprep.subr.mxu0 0.0
  %114 = vmatpush1.msra.mxu0 %v40
  %115 = vmatprep.subr.mxu0 0.0
  %116 = vmatpush1.msra.mxu0 %v41
  %117 = vmatprep.subr.mxu0 0.0
  %118 = vmatpush1.msra.mxu0 %v42
  %119 = vmatprep.subr.mxu0 0.0
  %120 = vmatpush1.msra.mxu0 %v43
  %121 = vmatprep.subr.mxu0 0.0
  %122 = vmatpush1.msra.mxu0 %v44
  %123 = vmatprep.subr.mxu0 0.0
  %124 = vmatpush1.msra.mxu0 %v45
  %125 = vmatprep.mubr.f32.mxu0 %v48
  %126 = vmatmul.mubr.f32.gmra.mrb[0].mxu0 %v47
  %v127 = vpop.f32.mrb[0].mxu0
  %v128 = vadd.f32 %v59, %v127
  %v129 = vpop.f32.mrb[0].mxu0
  %130 = vmatprep.mubr.f32.mxu0 %v50
  %131 = vmatmul.mubr.f32.gmra.mrb[0].mxu0 %v49
  %v132 = vpop.f32.mrb[0].mxu0
  %v133 = vadd.f32 %v59, %v132
  %v134 = vpop.f32.mrb[0].mxu0
  %135 = vmatprep.mubr.f32.mxu0 %v52
  %136 = vmatmul.mubr.f32.gmra.mrb[0].mxu0 %v51
  %v137 = vpop.f32.mrb[0].mxu0
  %v138 = vadd.f32 %v59, %v137
  %v139 = vpop.f32.mrb[0].mxu0
  %140 = vmatprep.mubr.f32.mxu0 %v54
  %141 = vmatmul.mubr.f32.gmra.mrb[0].mxu0 %v53
  %v142 = vpop.f32.mrb[0].mxu0
  %v143 = vadd.f32 %v59, %v142
  %v144 = vpop.f32.mrb[0].mxu0
  %145 = vdwg.mxu0
  %v146 = vmax.f32 %v128, 0.0
  %v147 = vmax.f32 %v133, 0.0
  %v148 = vmax.f32 %v138, 0.0
  %v149 = vmax.f32 %v143, 0.0
  %s150 = scalar_lea.vmem %s0, 64
  %v151 = vld [vmem:[%s150] sm:$0xff]
  %v152 = vld [vmem:[%s150 + $0x8] sm:$0xff]
  %v153 = vld [vmem:[%s150 + $0x10] sm:$0xff]
  %v154 = vld [vmem:[%s150 + $0x18] sm:$0xff]
  %v155 = vld [vmem:[%s150 + $0x20] sm:$0xff]
  %v156 = vld [vmem:[%s150 + $0x28] sm:$0xff]
  %v157 = vld [vmem:[%s150 + $0x30] sm:$0xff]
  %v158 = vld [vmem:[%s150 + $0x38] sm:$0xff]
  %159 = vmatprep.subr.mxu0 0.0
  %160 = vmatpush1.msra.mxu0 %v14
  %161 = vmatprep.subr.mxu0 0.0
  %162 = vmatpush1.msra.mxu0 %v15
  %163 = vmatprep.subr.mxu0 0.0
  %164 = vmatpush1.msra.mxu0 %v16
  %165 = vmatprep.subr.mxu0 0.0
  %166 = vmatpush1.msra.mxu0 %v17
  %167 = vmatprep.subr.mxu0 0.0
  %168 = vmatpush1.msra.mxu0 %v18
  %169 = vmatprep.subr.mxu0 0.0
  %170 = vmatpush1.msra.mxu0 %v19
  %171 = vmatprep.subr.mxu0 0.0
  %172 = vmatpush1.msra.mxu0 %v20
  %173 = vmatprep.subr.mxu0 0.0
  %174 = vmatpush1.msra.mxu0 %v21
  %175 = vmatprep.subr.mxu0 0.0
  %176 = vmatpush1.msra.mxu0 %v22
  %177 = vmatprep.subr.mxu0 0.0
  %178 = vmatpush1.msra.mxu0 %v23
  %179 = vmatprep.subr.mxu0 0.0
  %180 = vmatpush1.msra.mxu0 %v24
  %181 = vmatprep.subr.mxu0 0.0
  %182 = vmatpush1.msra.mxu0 %v25
  %183 = vmatprep.subr.mxu0 0.0
  %184 = vmatpush1.msra.mxu0 %v26
  %185 = vmatprep.subr.mxu0 0.0
  %186 = vmatpush1.msra.mxu0 %v27
  %187 = vmatprep.subr.mxu0 0.0
  %188 = vmatpush1.msra.mxu0 %v28
  %189 = vmatprep.subr.mxu0 0.0
  %190 = vmatpush1.msra.mxu0 %v29
  %191 = vmatprep.subr.mxu0 0.0
  %192 = vmatpush1.msra.mxu0 %v30
  %193 = vmatprep.subr.mxu0 0.0
  %194 = vmatpush1.msra.mxu0 %v31
  %195 = vmatprep.subr.mxu0 0.0
  %196 = vmatpush1.msra.mxu0 %v32
  %197 = vmatprep.subr.mxu0 0.0
  %198 = vmatpush1.msra.mxu0 %v33
  %199 = vmatprep.subr.mxu0 0.0
  %200 = vmatpush1.msra.mxu0 %v34
  %201 = vmatprep.subr.mxu0 0.0
  %202 = vmatpush1.msra.mxu0 %v35
  %203 = vmatprep.subr.mxu0 0.0
  %204 = vmatpush1.msra.mxu0 %v36
  %205 = vmatprep.subr.mxu0 0.0
  %206 = vmatpush1.msra.mxu0 %v37
  %207 = vmatprep.subr.mxu0 0.0
  %208 = vmatpush1.msra.mxu0 %v38
  %209 = vmatprep.subr.mxu0 0.0
  %210 = vmatpush1.msra.mxu0 %v39
  %211 = vmatprep.subr.mxu0 0.0
  %212 = vmatpush1.msra.mxu0 %v40
  %213 = vmatprep.subr.mxu0 0.0
  %214 = vmatpush1.msra.mxu0 %v41
  %215 = vmatprep.subr.mxu0 0.0
  %216 = vmatpush1.msra.mxu0 %v42
  %217 = vmatprep.subr.mxu0 0.0
  %218 = vmatpush1.msra.mxu0 %v43
  %219 = vmatprep.subr.mxu0 0.0
  %220 = vmatpush1.msra.mxu0 %v44
  %221 = vmatprep.subr.mxu0 0.0
  %222 = vmatpush1.msra.mxu0 %v45
  %223 = vmatprep.mubr.f32.mxu0 %v152
  %224 = vmatmul.mubr.f32.gmra.mrb[0].mxu0 %v151
  %v225 = vpop.f32.mrb[0].mxu0
  %v226 = vadd.f32 %v59, %v225
  %v227 = vpop.f32.mrb[0].mxu0
  %228 = vmatprep.mubr.f32.mxu0 %v154
  %229 = vmatmul.mubr.f32.gmra.mrb[0].mxu0 %v153
  %v230 = vpop.f32.mrb[0].mxu0
  %v231 = vadd.f32 %v59, %v230
  %v232 = vpop.f32.mrb[0].mxu0
  %233 = vmatprep.mubr.f32.mxu0 %v156
  %234 = vmatmul.mubr.f32.gmra.mrb[0].mxu0 %v155
  %v235 = vpop.f32.mrb[0].mxu0
  %v236 = vadd.f32 %v59, %v235
  %v237 = vpop.f32.mrb[0].mxu0
  %238 = vmatprep.mubr.f32.mxu0 %v158
  %239 = vmatmul.mubr.f32.gmra.mrb[0].mxu0 %v157
  %v240 = vpop.f32.mrb[0].mxu0
  %v241 = vadd.f32 %v59, %v240
  %v242 = vpop.f32.mrb[0].mxu0
  %243 = vdwg.mxu0
  %v244 = vmax.f32 %v226, 0.0
  %v245 = vmax.f32 %v231, 0.0
  %v246 = vmax.f32 %v236, 0.0
  %v247 = vmax.f32 %v241, 0.0
  %v248 = vmax.f32 %v146, %v244
  %v249 = vmax.f32 %v147, %v245
  %v250 = vmax.f32 %v148, %v246
  %v251 = vmax.f32 %v149, %v247
  %s252 = scalar_lea.vmem %s0, 128
  %v253 = vld [vmem:[%s252] sm:$0xff]
  %v254 = vld [vmem:[%s252 + $0x8] sm:$0xff]
  %v255 = vld [vmem:[%s252 + $0x10] sm:$0xff]
  %v256 = vld [vmem:[%s252 + $0x18] sm:$0xff]
  %v257 = vld [vmem:[%s252 + $0x20] sm:$0xff]
  %v258 = vld [vmem:[%s252 + $0x28] sm:$0xff]
  %v259 = vld [vmem:[%s252 + $0x30] sm:$0xff]
  %v260 = vld [vmem:[%s252 + $0x38] sm:$0xff]
  %261 = vmatprep.subr.mxu0 0.0
  %262 = vmatpush1.msra.mxu0 %v14
  %263 = vmatprep.subr.mxu0 0.0
  %264 = vmatpush1.msra.mxu0 %v15
  %265 = vmatprep.subr.mxu0 0.0
  %266 = vmatpush1.msra.mxu0 %v16
  %267 = vmatprep.subr.mxu0 0.0
  %268 = vmatpush1.msra.mxu0 %v17
  %269 = vmatprep.subr.mxu0 0.0
  %270 = vmatpush1.msra.mxu0 %v18
  %271 = vmatprep.subr.mxu0 0.0
  %272 = vmatpush1.msra.mxu0 %v19
  %273 = vmatprep.subr.mxu0 0.0
  %274 = vmatpush1.msra.mxu0 %v20
  %275 = vmatprep.subr.mxu0 0.0
  %276 = vmatpush1.msra.mxu0 %v21
  %277 = vmatprep.subr.mxu0 0.0
  %278 = vmatpush1.msra.mxu0 %v22
  %279 = vmatprep.subr.mxu0 0.0
  %280 = vmatpush1.msra.mxu0 %v23
  %281 = vmatprep.subr.mxu0 0.0
  %282 = vmatpush1.msra.mxu0 %v24
  %283 = vmatprep.subr.mxu0 0.0
  %284 = vmatpush1.msra.mxu0 %v25
  %285 = vmatprep.subr.mxu0 0.0
  %286 = vmatpush1.msra.mxu0 %v26
  %287 = vmatprep.subr.mxu0 0.0
  %288 = vmatpush1.msra.mxu0 %v27
  %289 = vmatprep.subr.mxu0 0.0
  %290 = vmatpush1.msra.mxu0 %v28
  %291 = vmatprep.subr.mxu0 0.0
  %292 = vmatpush1.msra.mxu0 %v29
  %293 = vmatprep.subr.mxu0 0.0
  %294 = vmatpush1.msra.mxu0 %v30
  %295 = vmatprep.subr.mxu0 0.0
  %296 = vmatpush1.msra.mxu0 %v31
  %297 = vmatprep.subr.mxu0 0.0
  %298 = vmatpush1.msra.mxu0 %v32
  %299 = vmatprep.subr.mxu0 0.0
  %300 = vmatpush1.msra.mxu0 %v33
  %301 = vmatprep.subr.mxu0 0.0
  %302 = vmatpush1.msra.mxu0 %v34
  %303 = vmatprep.subr.mxu0 0.0
  %304 = vmatpush1.msra.mxu0 %v35
  %305 = vmatprep.subr.mxu0 0.0
  %306 = vmatpush1.msra.mxu0 %v36
  %307 = vmatprep.subr.mxu0 0.0
  %308 = vmatpush1.msra.mxu0 %v37
  %309 = vmatprep.subr.mxu0 0.0
  %310 = vmatpush1.msra.mxu0 %v38
  %311 = vmatprep.subr.mxu0 0.0
  %312 = vmatpush1.msra.mxu0 %v39
  %313 = vmatprep.subr.mxu0 0.0
  %314 = vmatpush1.msra.mxu0 %v40
  %315 = vmatprep.subr.mxu0 0.0
  %316 = vmatpush1.msra.mxu0 %v41
  %317 = vmatprep.subr.mxu0 0.0
  %318 = vmatpush1.msra.mxu0 %v42
  %319 = vmatprep.subr.mxu0 0.0
  %320 = vmatpush1.msra.mxu0 %v43
  %321 = vmatprep.subr.mxu0 0.0
  %322 = vmatpush1.msra.mxu0 %v44
  %323 = vmatprep.subr.mxu0 0.0
  %324 = vmatpush1.msra.mxu0 %v45
  %325 = vmatprep.mubr.f32.mxu0 %v254
  %326 = vmatmul.mubr.f32.gmra.mrb[0].mxu0 %v253
  %v327 = vpop.f32.mrb[0].mxu0
  %v328 = vadd.f32 %v59, %v327
  %v329 = vpop.f32.mrb[0].mxu0
  %330 = vmatprep.mubr.f32.mxu0 %v256
  %331 = vmatmul.mubr.f32.gmra.mrb[0].mxu0 %v255
  %v332 = vpop.f32.mrb[0].mxu0
  %v333 = vadd.f32 %v59, %v332
  %v334 = vpop.f32.mrb[0].mxu0
  %335 = vmatprep.mubr.f32.mxu0 %v258
  %336 = vmatmul.mubr.f32.gmra.mrb[0].mxu0 %v257
  %v337 = vpop.f32.mrb[0].mxu0
  %v338 = vadd.f32 %v59, %v337
  %v339 = vpop.f32.mrb[0].mxu0
  %340 = vmatprep.mubr.f32.mxu0 %v260
  %341 = vmatmul.mubr.f32.gmra.mrb[0].mxu0 %v259
  %v342 = vpop.f32.mrb[0].mxu0
  %v343 = vadd.f32 %v59, %v342
  %v344 = vpop.f32.mrb[0].mxu0
  %345 = vdwg.mxu0
  %v346 = vmax.f32 %v328, 0.0
  %v347 = vmax.f32 %v333, 0.0
  %v348 = vmax.f32 %v338, 0.0
  %v349 = vmax.f32 %v343, 0.0
  %s350 = scalar_lea.vmem %s0, 192
  %v351 = vld [vmem:[%s350] sm:$0xff]
  %v352 = vld [vmem:[%s350 + $0x8] sm:$0xff]
  %v353 = vld [vmem:[%s350 + $0x10] sm:$0xff]
  %v354 = vld [vmem:[%s350 + $0x18] sm:$0xff]
  %v355 = vld [vmem:[%s350 + $0x20] sm:$0xff]
  %v356 = vld [vmem:[%s350 + $0x28] sm:$0xff]
  %v357 = vld [vmem:[%s350 + $0x30] sm:$0xff]
  %v358 = vld [vmem:[%s350 + $0x38] sm:$0xff]
  %359 = vmatprep.subr.mxu0 0.0
  %360 = vmatpush1.msra.mxu0 %v14
  %361 = vmatprep.subr.mxu0 0.0
  %362 = vmatpush1.msra.mxu0 %v15
  %363 = vmatprep.subr.mxu0 0.0
  %364 = vmatpush1.msra.mxu0 %v16
  %365 = vmatprep.subr.mxu0 0.0
  %366 = vmatpush1.msra.mxu0 %v17
  %367 = vmatprep.subr.mxu0 0.0
  %368 = vmatpush1.msra.mxu0 %v18
  %369 = vmatprep.subr.mxu0 0.0
  %370 = vmatpush1.msra.mxu0 %v19
  %371 = vmatprep.subr.mxu0 0.0
  %372 = vmatpush1.msra.mxu0 %v20
  %373 = vmatprep.subr.mxu0 0.0
  %374 = vmatpush1.msra.mxu0 %v21
  %375 = vmatprep.subr.mxu0 0.0
  %376 = vmatpush1.msra.mxu0 %v22
  %377 = vmatprep.subr.mxu0 0.0
  %378 = vmatpush1.msra.mxu0 %v23
  %379 = vmatprep.subr.mxu0 0.0
  %380 = vmatpush1.msra.mxu0 %v24
  %381 = vmatprep.subr.mxu0 0.0
  %382 = vmatpush1.msra.mxu0 %v25
  %383 = vmatprep.subr.mxu0 0.0
  %384 = vmatpush1.msra.mxu0 %v26
  %385 = vmatprep.subr.mxu0 0.0
  %386 = vmatpush1.msra.mxu0 %v27
  %387 = vmatprep.subr.mxu0 0.0
  %388 = vmatpush1.msra.mxu0 %v28
  %389 = vmatprep.subr.mxu0 0.0
  %390 = vmatpush1.msra.mxu0 %v29
  %391 = vmatprep.subr.mxu0 0.0
  %392 = vmatpush1.msra.mxu0 %v30
  %393 = vmatprep.subr.mxu0 0.0
  %394 = vmatpush1.msra.mxu0 %v31
  %395 = vmatprep.subr.mxu0 0.0
  %396 = vmatpush1.msra.mxu0 %v32
  %397 = vmatprep.subr.mxu0 0.0
  %398 = vmatpush1.msra.mxu0 %v33
  %399 = vmatprep.subr.mxu0 0.0
  %400 = vmatpush1.msra.mxu0 %v34
  %401 = vmatprep.subr.mxu0 0.0
  %402 = vmatpush1.msra.mxu0 %v35
  %403 = vmatprep.subr.mxu0 0.0
  %404 = vmatpush1.msra.mxu0 %v36
  %405 = vmatprep.subr.mxu0 0.0
  %406 = vmatpush1.msra.mxu0 %v37
  %407 = vmatprep.subr.mxu0 0.0
  %408 = vmatpush1.msra.mxu0 %v38
  %409 = vmatprep.subr.mxu0 0.0
  %410 = vmatpush1.msra.mxu0 %v39
  %411 = vmatprep.subr.mxu0 0.0
  %412 = vmatpush1.msra.mxu0 %v40
  %413 = vmatprep.subr.mxu0 0.0
  %414 = vmatpush1.msra.mxu0 %v41
  %415 = vmatprep.subr.mxu0 0.0
  %416 = vmatpush1.msra.mxu0 %v42
  %417 = vmatprep.subr.mxu0 0.0
  %418 = vmatpush1.msra.mxu0 %v43
  %419 = vmatprep.subr.mxu0 0.0
  %420 = vmatpush1.msra.mxu0 %v44
  %421 = vmatprep.subr.mxu0 0.0
  %422 = vmatpush1.msra.mxu0 %v45
  %423 = vmatprep.mubr.f32.mxu0 %v352
  %424 = vmatmul.mubr.f32.gmra.mrb[0].mxu0 %v351
  %v425 = vpop.f32.mrb[0].mxu0
  %v426 = vadd.f32 %v59, %v425
  %v427 = vpop.f32.mrb[0].mxu0
  %428 = vmatprep.mubr.f32.mxu0 %v354
  %429 = vmatmul.mubr.f32.gmra.mrb[0].mxu0 %v353
  %v430 = vpop.f32.mrb[0].mxu0
  %v431 = vadd.f32 %v59, %v430
  %v432 = vpop.f32.mrb[0].mxu0
  %433 = vmatprep.mubr.f32.mxu0 %v356
  %434 = vmatmul.mubr.f32.gmra.mrb[0].mxu0 %v355
  %v435 = vpop.f32.mrb[0].mxu0
  %v436 = vadd.f32 %v59, %v435
  %v437 = vpop.f32.mrb[0].mxu0
  %438 = vmatprep.mubr.f32.mxu0 %v358
  %439 = vmatmul.mubr.f32.gmra.mrb[0].mxu0 %v357
  %v440 = vpop.f32.mrb[0].mxu0
  %v441 = vadd.f32 %v59, %v440
  %v442 = vpop.f32.mrb[0].mxu0
  %443 = vdwg.mxu0
  %v444 = vmax.f32 %v426, 0.0
  %v445 = vmax.f32 %v431, 0.0
  %v446 = vmax.f32 %v436, 0.0
  %v447 = vmax.f32 %v441, 0.0
  %v448 = vmax.f32 %v346, %v444
  %v449 = vmax.f32 %v347, %v445
  %v450 = vmax.f32 %v348, %v446
  %v451 = vmax.f32 %v349, %v447
  %v452 = vmax.f32 %v248, %v448
  %v453 = vmax.f32 %v249, %v449
  %v454 = vmax.f32 %v250, %v450
  %v455 = vmax.f32 %v251, %v451
  %456 = vst [vmem:[%s3] sm:$0xff] %v452
  %457 = vst [vmem:[%s3 + $0x8] sm:$0xff] %v453
  %458 = vst [vmem:[%s3 + $0x10] sm:$0xff] %v454
  %459 = vst [vmem:[%s3 + $0x18] sm:$0xff] %v455
  // Predicated region
  $region14: #{cnn_forward.4} parent=0 // pred_check
    _
  $region15: #{cnn_forward.4} parent=0 // pred_check_branch
    %461 = sbr.rel (0) target = $region17
  $region16: #{cnn_forward.4} parent=0 // pred_region
    _
  $region17: #{cnn_forward.4} parent=0 // pred_fallthru
    _
  // Predicated region
  $region18: #{cnn_forward.4} parent=0 // pred_check
    _
  $region19: #{cnn_forward.4} parent=0 // pred_check_branch
    %463 = sbr.rel (0) target = $region21
  $region20: #{cnn_forward.4} parent=0 // pred_region
    _
  $region21: #{cnn_forward.4} parent=0 // pred_fallthru
    _

// kernel: cnn_forward.5
$region0: #{cnn_forward.5}
  #allocation0 [shape = 'u32[]', space=smem, size = 0x4, offset = 0x4, fixed_abs, tag = 'smem constant byte address 0x4 - core index']
  #allocation1 [shape = 'u32[144,128]{1,0:T(1,128)}', space=vmem, size = 0x12000, scoped, tag = 'internal scratch']
  %s0 = inlined_call_operand.vmem [shape: f32[2,2048], index: 0, kind: input, shape index: {}]
  %s1 = inlined_call_operand.vmem [shape: f32[2048,128], index: 1, kind: input, shape index: {}]
  %s2 = inlined_call_operand.vmem [shape: f32[1,128], index: 2, kind: input, shape index: {}]
  %s3 = inlined_call_operand.vmem [shape: f32[128,128], index: 3, kind: input, shape index: {}]
  %s4 = inlined_call_operand.vmem [shape: f32[1,128], index: 4, kind: input, shape index: {}]
  %s5 = inlined_call_operand.vmem [shape: f32[128,128], index: 5, kind: input, shape index: {}]
  %s6 = inlined_call_operand.vmem [shape: f32[1,128], index: 6, kind: input, shape index: {}]
  %s7 = inlined_call_operand.hbm [shape: f32[2,128], index: 7, kind: output, shape index: {}]
  %s8 = sld [smem:[#allocation0]]
  $region38: #{cnn_forward.5} parent=0
    _
  %s10 = ssub.s32 1, %s8
  %s11 = scalar_select 0, %s10, %s8
  $region1: #{cnn_forward.5} parent=0
    #allocation2 [shape = 'u8[1024]{0}', space=vmem, size = 0x400, scoped, tag = 'output window, operand 0, single buffered']
    #allocation3 [shape = 's32[1]{0}', space=sflag, size = 0x4, scoped, tag = 'scoped memory for cnn_forward.5']
    %12 = vsyncpa [#allocation3], 0
    // Predicated region
    $region2: #{cnn_forward.5} parent=1 // pred_check
      _
    $region3: #{cnn_forward.5} parent=1 // pred_check_branch
      %14 = sbr.rel (0) target = $region5
    $region4: #{cnn_forward.5} parent=1 // pred_region
      _
    $region5: #{cnn_forward.5} parent=1 // pred_fallthru
      _
    // Predicated region
    $region6: #{cnn_forward.5} parent=1 // pred_check
      _
    $region7: #{cnn_forward.5} parent=1 // pred_check_branch
      %16 = sbr.rel (0) target = $region9
    $region8: #{cnn_forward.5} parent=1 // pred_region
      _
    $region9: #{cnn_forward.5} parent=1 // pred_fallthru
      _
    // Predicated region
    $region10: #{cnn_forward.5} parent=1 // pred_check
      _
    $region11: #{cnn_forward.5} parent=1 // pred_check_branch
      %18 = sbr.rel (0) target = $region13
    $region12: #{cnn_forward.5} parent=1 // pred_region
      _
    $region13: #{cnn_forward.5} parent=1 // pred_fallthru
      _
    // Predicated region
    $region14: #{cnn_forward.5} parent=1 // pred_check
      _
    $region15: #{cnn_forward.5} parent=1 // pred_check_branch
      %20 = sbr.rel (0) target = $region17
    $region16: #{cnn_forward.5} parent=1 // pred_region
      _
    $region17: #{cnn_forward.5} parent=1 // pred_fallthru
      _
    // Predicated region
    $region18: #{cnn_forward.5} parent=1 // pred_check
      _
    $region19: #{cnn_forward.5} parent=1 // pred_check_branch
      %22 = sbr.rel (0) target = $region21
    $region20: #{cnn_forward.5} parent=1 // pred_region
      _
    $region21: #{cnn_forward.5} parent=1 // pred_fallthru
      _
    // Predicated region
    $region22: #{cnn_forward.5} parent=1 // pred_check
      _
    $region23: #{cnn_forward.5} parent=1 // pred_check_branch
      %24 = sbr.rel (0) target = $region25
    $region24: #{cnn_forward.5} parent=1 // pred_region
      _
    $region25: #{cnn_forward.5} parent=1 // pred_fallthru
      _
    // Predicated region
    $region26: #{cnn_forward.5} parent=1 // pred_check
      _
    $region27: #{cnn_forward.5} parent=1 // pred_check_branch
      %26 = sbr.rel (0) target = $region29
    $region28: #{cnn_forward.5} parent=1 // pred_region
      _
    $region29: #{cnn_forward.5} parent=1 // pred_fallthru
      _
    %v27 = vld [vmem:[%s0] sm:$0xff]
    %v28 = vld [vmem:[%s0 + $0x8] sm:$0xff]
    %v29 = vld [vmem:[%s0 + $0x10] sm:$0xff]
    %v30 = vld [vmem:[%s0 + $0x18] sm:$0xff]
    %v31 = vld [vmem:[%s1] sm:$0xff]
    %v32 = vld [vmem:[%s1 + $0x8] sm:$0xff]
    %v33 = vld [vmem:[%s1 + $0x10] sm:$0xff]
    %v34 = vld [vmem:[%s1 + $0x18] sm:$0xff]
    %v35 = vld [vmem:[%s1 + $0x20] sm:$0xff]
    %v36 = vld [vmem:[%s1 + $0x28] sm:$0xff]
    %v37 = vld [vmem:[%s1 + $0x30] sm:$0xff]
    %v38 = vld [vmem:[%s1 + $0x38] sm:$0xff]
    %v39 = vld [vmem:[%s1 + $0x40] sm:$0xff]
    %v40 = vld [vmem:[%s1 + $0x48] sm:$0xff]
    %v41 = vld [vmem:[%s1 + $0x50] sm:$0xff]
    %v42 = vld [vmem:[%s1 + $0x58] sm:$0xff]
    %v43 = vld [vmem:[%s1 + $0x60] sm:$0xff]
    %v44 = vld [vmem:[%s1 + $0x68] sm:$0xff]
    %v45 = vld [vmem:[%s1 + $0x70] sm:$0xff]
    %v46 = vld [vmem:[%s1 + $0x78] sm:$0xff]
    %v47 = vld [vmem:[%s1 + $0x80] sm:$0xff]
    %v48 = vld [vmem:[%s1 + $0x88] sm:$0xff]
    %v49 = vld [vmem:[%s1 + $0x90] sm:$0xff]
    %v50 = vld [vmem:[%s1 + $0x98] sm:$0xff]
    %v51 = vld [vmem:[%s1 + $0xa0] sm:$0xff]
    %v52 = vld [vmem:[%s1 + $0xa8] sm:$0xff]
    %v53 = vld [vmem:[%s1 + $0xb0] sm:$0xff]
    %v54 = vld [vmem:[%s1 + $0xb8] sm:$0xff]
    %v55 = vld [vmem:[%s1 + $0xc0] sm:$0xff]
    %v56 = vld [vmem:[%s1 + $0xc8] sm:$0xff]
    %v57 = vld [vmem:[%s1 + $0xd0] sm:$0xff]
    %v58 = vld [vmem:[%s1 + $0xd8] sm:$0xff]
    %v59 = vld [vmem:[%s1 + $0xe0] sm:$0xff]
    %v60 = vld [vmem:[%s1 + $0xe8] sm:$0xff]
    %v61 = vld [vmem:[%s1 + $0xf0] sm:$0xff]
    %v62 = vld [vmem:[%s1 + $0xf8] sm:$0xff]
    %v63 = vld [vmem:[%s1 + $0x100] sm:$0xff]
    %v64 = vld [vmem:[%s1 + $0x108] sm:$0xff]
    %v65 = vld [vmem:[%s1 + $0x110] sm:$0xff]
    %v66 = vld [vmem:[%s1 + $0x118] sm:$0xff]
    %v67 = vld [vmem:[%s1 + $0x120] sm:$0xff]
    %v68 = vld [vmem:[%s1 + $0x128] sm:$0xff]
    %v69 = vld [vmem:[%s1 + $0x130] sm:$0xff]
    %v70 = vld [vmem:[%s1 + $0x138] sm:$0xff]
    %v71 = vld [vmem:[%s1 + $0x140] sm:$0xff]
    %v72 = vld [vmem:[%s1 + $0x148] sm:$0xff]
    %v73 = vld [vmem:[%s1 + $0x150] sm:$0xff]
    %v74 = vld [vmem:[%s1 + $0x158] sm:$0xff]
    %v75 = vld [vmem:[%s1 + $0x160] sm:$0xff]
    %v76 = vld [vmem:[%s1 + $0x168] sm:$0xff]
    %v77 = vld [vmem:[%s1 + $0x170] sm:$0xff]
    %v78 = vld [vmem:[%s1 + $0x178] sm:$0xff]
    %v79 = vld [vmem:[%s1 + $0x180] sm:$0xff]
    %v80 = vld [vmem:[%s1 + $0x188] sm:$0xff]
    %v81 = vld [vmem:[%s1 + $0x190] sm:$0xff]
    %v82 = vld [vmem:[%s1 + $0x198] sm:$0xff]
    %v83 = vld [vmem:[%s1 + $0x1a0] sm:$0xff]
    %v84 = vld [vmem:[%s1 + $0x1a8] sm:$0xff]
    %v85 = vld [vmem:[%s1 + $0x1b0] sm:$0xff]
    %v86 = vld [vmem:[%s1 + $0x1b8] sm:$0xff]
    %v87 = vld [vmem:[%s1 + $0x1c0] sm:$0xff]
    %v88 = vld [vmem:[%s1 + $0x1c8] sm:$0xff]
    %v89 = vld [vmem:[%s1 + $0x1d0] sm:$0xff]
    %v90 = vld [vmem:[%s1 + $0x1d8] sm:$0xff]
    %v91 = vld [vmem:[%s1 + $0x1e0] sm:$0xff]
    %v92 = vld [vmem:[%s1 + $0x1e8] sm:$0xff]
    %v93 = vld [vmem:[%s1 + $0x1f0] sm:$0xff]
    %v94 = vld [vmem:[%s1 + $0x1f8] sm:$0xff]
    %v95 = vld [vmem:[%s1 + $0x200] sm:$0xff]
    %v96 = vld [vmem:[%s1 + $0x208] sm:$0xff]
    %v97 = vld [vmem:[%s1 + $0x210] sm:$0xff]
    %v98 = vld [vmem:[%s1 + $0x218] sm:$0xff]
    %v99 = vld [vmem:[%s1 + $0x220] sm:$0xff]
    %v100 = vld [vmem:[%s1 + $0x228] sm:$0xff]
    %v101 = vld [vmem:[%s1 + $0x230] sm:$0xff]
    %v102 = vld [vmem:[%s1 + $0x238] sm:$0xff]
    %v103 = vld [vmem:[%s1 + $0x240] sm:$0xff]
    %v104 = vld [vmem:[%s1 + $0x248] sm:$0xff]
    %v105 = vld [vmem:[%s1 + $0x250] sm:$0xff]
    %v106 = vld [vmem:[%s1 + $0x258] sm:$0xff]
    %v107 = vld [vmem:[%s1 + $0x260] sm:$0xff]
    %v108 = vld [vmem:[%s1 + $0x268] sm:$0xff]
    %v109 = vld [vmem:[%s1 + $0x270] sm:$0xff]
    %v110 = vld [vmem:[%s1 + $0x278] sm:$0xff]
    %v111 = vld [vmem:[%s1 + $0x280] sm:$0xff]
    %v112 = vld [vmem:[%s1 + $0x288] sm:$0xff]
    %v113 = vld [vmem:[%s1 + $0x290] sm:$0xff]
    %v114 = vld [vmem:[%s1 + $0x298] sm:$0xff]
    %v115 = vld [vmem:[%s1 + $0x2a0] sm:$0xff]
    %v116 = vld [vmem:[%s1 + $0x2a8] sm:$0xff]
    %v117 = vld [vmem:[%s1 + $0x2b0] sm:$0xff]
    %v118 = vld [vmem:[%s1 + $0x2b8] sm:$0xff]
    %v119 = vld [vmem:[%s1 + $0x2c0] sm:$0xff]
    %v120 = vld [vmem:[%s1 + $0x2c8] sm:$0xff]
    %v121 = vld [vmem:[%s1 + $0x2d0] sm:$0xff]
    %v122 = vld [vmem:[%s1 + $0x2d8] sm:$0xff]
    %v123 = vld [vmem:[%s1 + $0x2e0] sm:$0xff]
    %v124 = vld [vmem:[%s1 + $0x2e8] sm:$0xff]
    %v125 = vld [vmem:[%s1 + $0x2f0] sm:$0xff]
    %v126 = vld [vmem:[%s1 + $0x2f8] sm:$0xff]
    %v127 = vld [vmem:[%s1 + $0x300] sm:$0xff]
    %v128 = vld [vmem:[%s1 + $0x308] sm:$0xff]
    %v129 = vld [vmem:[%s1 + $0x310] sm:$0xff]
    %v130 = vld [vmem:[%s1 + $0x318] sm:$0xff]
    %v131 = vld [vmem:[%s1 + $0x320] sm:$0xff]
    %v132 = vld [vmem:[%s1 + $0x328] sm:$0xff]
    %v133 = vld [vmem:[%s1 + $0x330] sm:$0xff]
    %v134 = vld [vmem:[%s1 + $0x338] sm:$0xff]
    %v135 = vld [vmem:[%s1 + $0x340] sm:$0xff]
    %v136 = vld [vmem:[%s1 + $0x348] sm:$0xff]
    %v137 = vld [vmem:[%s1 + $0x350] sm:$0xff]
    %v138 = vld [vmem:[%s1 + $0x358] sm:$0xff]
    %v139 = vld [vmem:[%s1 + $0x360] sm:$0xff]
    %v140 = vld [vmem:[%s1 + $0x368] sm:$0xff]
    %v141 = vld [vmem:[%s1 + $0x370] sm:$0xff]
    %v142 = vld [vmem:[%s1 + $0x378] sm:$0xff]
    %v143 = vld [vmem:[%s1 + $0x380] sm:$0xff]
    %v144 = vld [vmem:[%s1 + $0x388] sm:$0xff]
    %v145 = vld [vmem:[%s1 + $0x390] sm:$0xff]
    %v146 = vld [vmem:[%s1 + $0x398] sm:$0xff]
    %v147 = vld [vmem:[%s1 + $0x3a0] sm:$0xff]
    %v148 = vld [vmem:[%s1 + $0x3a8] sm:$0xff]
    %v149 = vld [vmem:[%s1 + $0x3b0] sm:$0xff]
    %v150 = vld [vmem:[%s1 + $0x3b8] sm:$0xff]
    %v151 = vld [vmem:[%s1 + $0x3c0] sm:$0xff]
    %v152 = vld [vmem:[%s1 + $0x3c8] sm:$0xff]
    %v153 = vld [vmem:[%s1 + $0x3d0] sm:$0xff]
    %v154 = vld [vmem:[%s1 + $0x3d8] sm:$0xff]
    %v155 = vld [vmem:[%s1 + $0x3e0] sm:$0xff]
    %v156 = vld [vmem:[%s1 + $0x3e8] sm:$0xff]
    %v157 = vld [vmem:[%s1 + $0x3f0] sm:$0xff]
    %v158 = vld [vmem:[%s1 + $0x3f8] sm:$0xff]
    %v159 = vld [vmem:[%s1 + $0x400] sm:$0xff]
    %v160 = vld [vmem:[%s1 + $0x408] sm:$0xff]
    %v161 = vld [vmem:[%s1 + $0x410] sm:$0xff]
    %v162 = vld [vmem:[%s1 + $0x418] sm:$0xff]
    %v163 = vld [vmem:[%s1 + $0x420] sm:$0xff]
    %v164 = vld [vmem:[%s1 + $0x428] sm:$0xff]
    %v165 = vld [vmem:[%s1 + $0x430] sm:$0xff]
    %v166 = vld [vmem:[%s1 + $0x438] sm:$0xff]
    %v167 = vld [vmem:[%s1 + $0x440] sm:$0xff]
    %v168 = vld [vmem:[%s1 + $0x448] sm:$0xff]
    %v169 = vld [vmem:[%s1 + $0x450] sm:$0xff]
    %v170 = vld [vmem:[%s1 + $0x458] sm:$0xff]
    %v171 = vld [vmem:[%s1 + $0x460] sm:$0xff]
    %v172 = vld [vmem:[%s1 + $0x468] sm:$0xff]
    %v173 = vld [vmem:[%s1 + $0x470] sm:$0xff]
    %v174 = vld [vmem:[%s1 + $0x478] sm:$0xff]
    %v175 = vld [vmem:[%s1 + $0x480] sm:$0xff]
    %v176 = vld [vmem:[%s1 + $0x488] sm:$0xff]
    %v177 = vld [vmem:[%s1 + $0x490] sm:$0xff]
    %v178 = vld [vmem:[%s1 + $0x498] sm:$0xff]
    %v179 = vld [vmem:[%s1 + $0x4a0] sm:$0xff]
    %v180 = vld [vmem:[%s1 + $0x4a8] sm:$0xff]
    %v181 = vld [vmem:[%s1 + $0x4b0] sm:$0xff]
    %v182 = vld [vmem:[%s1 + $0x4b8] sm:$0xff]
    %v183 = vld [vmem:[%s1 + $0x4c0] sm:$0xff]
    %v184 = vld [vmem:[%s1 + $0x4c8] sm:$0xff]
    %v185 = vld [vmem:[%s1 + $0x4d0] sm:$0xff]
    %v186 = vld [vmem:[%s1 + $0x4d8] sm:$0xff]
    %v187 = vld [vmem:[%s1 + $0x4e0] sm:$0xff]
    %v188 = vld [vmem:[%s1 + $0x4e8] sm:$0xff]
    %v189 = vld [vmem:[%s1 + $0x4f0] sm:$0xff]
    %v190 = vld [vmem:[%s1 + $0x4f8] sm:$0xff]
    %v191 = vld [vmem:[%s1 + $0x500] sm:$0xff]
    %v192 = vld [vmem:[%s1 + $0x508] sm:$0xff]
    %v193 = vld [vmem:[%s1 + $0x510] sm:$0xff]
    %v194 = vld [vmem:[%s1 + $0x518] sm:$0xff]
    %v195 = vld [vmem:[%s1 + $0x520] sm:$0xff]
    %v196 = vld [vmem:[%s1 + $0x528] sm:$0xff]
    %v197 = vld [vmem:[%s1 + $0x530] sm:$0xff]
    %v198 = vld [vmem:[%s1 + $0x538] sm:$0xff]
    %v199 = vld [vmem:[%s1 + $0x540] sm:$0xff]
    %v200 = vld [vmem:[%s1 + $0x548] sm:$0xff]
    %v201 = vld [vmem:[%s1 + $0x550] sm:$0xff]
    %v202 = vld [vmem:[%s1 + $0x558] sm:$0xff]
    %v203 = vld [vmem:[%s1 + $0x560] sm:$0xff]
    %v204 = vld [vmem:[%s1 + $0x568] sm:$0xff]
    %v205 = vld [vmem:[%s1 + $0x570] sm:$0xff]
    %v206 = vld [vmem:[%s1 + $0x578] sm:$0xff]
    %v207 = vld [vmem:[%s1 + $0x580] sm:$0xff]
    %v208 = vld [vmem:[%s1 + $0x588] sm:$0xff]
    %v209 = vld [vmem:[%s1 + $0x590] sm:$0xff]
    %v210 = vld [vmem:[%s1 + $0x598] sm:$0xff]
    %v211 = vld [vmem:[%s1 + $0x5a0] sm:$0xff]
    %v212 = vld [vmem:[%s1 + $0x5a8] sm:$0xff]
    %v213 = vld [vmem:[%s1 + $0x5b0] sm:$0xff]
    %v214 = vld [vmem:[%s1 + $0x5b8] sm:$0xff]
    %v215 = vld [vmem:[%s1 + $0x5c0] sm:$0xff]
    %v216 = vld [vmem:[%s1 + $0x5c8] sm:$0xff]
    %v217 = vld [vmem:[%s1 + $0x5d0] sm:$0xff]
    %v218 = vld [vmem:[%s1 + $0x5d8] sm:$0xff]
    %v219 = vld [vmem:[%s1 + $0x5e0] sm:$0xff]
    %v220 = vld [vmem:[%s1 + $0x5e8] sm:$0xff]
    %v221 = vld [vmem:[%s1 + $0x5f0] sm:$0xff]
    %v222 = vld [vmem:[%s1 + $0x5f8] sm:$0xff]
    %v223 = vld [vmem:[%s1 + $0x600] sm:$0xff]
    %v224 = vld [vmem:[%s1 + $0x608] sm:$0xff]
    %v225 = vld [vmem:[%s1 + $0x610] sm:$0xff]
    %v226 = vld [vmem:[%s1 + $0x618] sm:$0xff]
    %v227 = vld [vmem:[%s1 + $0x620] sm:$0xff]
    %v228 = vld [vmem:[%s1 + $0x628] sm:$0xff]
    %v229 = vld [vmem:[%s1 + $0x630] sm:$0xff]
    %v230 = vld [vmem:[%s1 + $0x638] sm:$0xff]
    %v231 = vld [vmem:[%s1 + $0x640] sm:$0xff]
    %v232 = vld [vmem:[%s1 + $0x648] sm:$0xff]
    %v233 = vld [vmem:[%s1 + $0x650] sm:$0xff]
    %v234 = vld [vmem:[%s1 + $0x658] sm:$0xff]
    %v235 = vld [vmem:[%s1 + $0x660] sm:$0xff]
    %v236 = vld [vmem:[%s1 + $0x668] sm:$0xff]
    %v237 = vld [vmem:[%s1 + $0x670] sm:$0xff]
    %v238 = vld [vmem:[%s1 + $0x678] sm:$0xff]
    %v239 = vld [vmem:[%s1 + $0x680] sm:$0xff]
    %v240 = vld [vmem:[%s1 + $0x688] sm:$0xff]
    %v241 = vld [vmem:[%s1 + $0x690] sm:$0xff]
    %v242 = vld [vmem:[%s1 + $0x698] sm:$0xff]
    %v243 = vld [vmem:[%s1 + $0x6a0] sm:$0xff]
    %v244 = vld [vmem:[%s1 + $0x6a8] sm:$0xff]
    %v245 = vld [vmem:[%s1 + $0x6b0] sm:$0xff]
    %v246 = vld [vmem:[%s1 + $0x6b8] sm:$0xff]
    %v247 = vld [vmem:[%s1 + $0x6c0] sm:$0xff]
    %v248 = vld [vmem:[%s1 + $0x6c8] sm:$0xff]
    %v249 = vld [vmem:[%s1 + $0x6d0] sm:$0xff]
    %v250 = vld [vmem:[%s1 + $0x6d8] sm:$0xff]
    %v251 = vld [vmem:[%s1 + $0x6e0] sm:$0xff]
    %v252 = vld [vmem:[%s1 + $0x6e8] sm:$0xff]
    %v253 = vld [vmem:[%s1 + $0x6f0] sm:$0xff]
    %v254 = vld [vmem:[%s1 + $0x6f8] sm:$0xff]
    %v255 = vld [vmem:[%s1 + $0x700] sm:$0xff]
    %v256 = vld [vmem:[%s1 + $0x708] sm:$0xff]
    %v257 = vld [vmem:[%s1 + $0x710] sm:$0xff]
    %v258 = vld [vmem:[%s1 + $0x718] sm:$0xff]
    %v259 = vld [vmem:[%s1 + $0x720] sm:$0xff]
    %v260 = vld [vmem:[%s1 + $0x728] sm:$0xff]
    %v261 = vld [vmem:[%s1 + $0x730] sm:$0xff]
    %v262 = vld [vmem:[%s1 + $0x738] sm:$0xff]
    %v263 = vld [vmem:[%s1 + $0x740] sm:$0xff]
    %v264 = vld [vmem:[%s1 + $0x748] sm:$0xff]
    %v265 = vld [vmem:[%s1 + $0x750] sm:$0xff]
    %v266 = vld [vmem:[%s1 + $0x758] sm:$0xff]
    %v267 = vld [vmem:[%s1 + $0x760] sm:$0xff]
    %v268 = vld [vmem:[%s1 + $0x768] sm:$0xff]
    %v269 = vld [vmem:[%s1 + $0x770] sm:$0xff]
    %v270 = vld [vmem:[%s1 + $0x778] sm:$0xff]
    %v271 = vld [vmem:[%s1 + $0x780] sm:$0xff]
    %v272 = vld [vmem:[%s1 + $0x788] sm:$0xff]
    %v273 = vld [vmem:[%s1 + $0x790] sm:$0xff]
    %v274 = vld [vmem:[%s1 + $0x798] sm:$0xff]
    %v275 = vld [vmem:[%s1 + $0x7a0] sm:$0xff]
    %v276 = vld [vmem:[%s1 + $0x7a8] sm:$0xff]
    %v277 = vld [vmem:[%s1 + $0x7b0] sm:$0xff]
    %v278 = vld [vmem:[%s1 + $0x7b8] sm:$0xff]
    %v279 = vld [vmem:[%s1 + $0x7c0] sm:$0xff]
    %v280 = vld [vmem:[%s1 + $0x7c8] sm:$0xff]
    %v281 = vld [vmem:[%s1 + $0x7d0] sm:$0xff]
    %v282 = vld [vmem:[%s1 + $0x7d8] sm:$0xff]
    %v283 = vld [vmem:[%s1 + $0x7e0] sm:$0xff]
    %v284 = vld [vmem:[%s1 + $0x7e8] sm:$0xff]
    %v285 = vld [vmem:[%s1 + $0x7f0] sm:$0xff]
    %v286 = vld [vmem:[%s1 + $0x7f8] sm:$0xff]
    %v287 = vld [vmem:[%s2] sm:$0x1]
    %v289 = vlaneseq
    %v290 = vshrl.u32 %v289, 7
    %v291 = vsub.s32 0, %v290
    %v292 = vrot.slane %v287, %v291
    %v298 = vcombine.high %v27, %v27
    %v300 = vunpack.c.l.s4 1983009808
    %v301 = vunpack.c.0.s8 %v300
    %v302 = vlaneseq
    %v303 = vshrl.u32 %v302, 7
    %v304 = vsub.s32 %v301, %v303
    %v305 = vrot.slane %v27, %v304
    %v307 = vunpack.c.l.s4 1983009808
    %v308 = vunpack.c.0.s8 %v307
    %v309 = vlaneseq
    %v310 = vshrl.u32 %v309, 7
    %v311 = vsub.s32 %v308, %v310
    %v312 = vrot.slane %v298, %v311
    %v313 = vcombine.high %v305, %v305
    %v314 = vcombine.high %v312, %v312
    %v315 = vcombine.high %v28, %v28
    %v317 = vunpack.c.l.s4 1983009808
    %v318 = vunpack.c.0.s8 %v317
    %v319 = vlaneseq
    %v320 = vshrl.u32 %v319, 7
    %v321 = vsub.s32 %v318, %v320
    %v322 = vrot.slane %v28, %v321
    %v324 = vunpack.c.l.s4 1983009808
    %v325 = vunpack.c.0.s8 %v324
    %v326 = vlaneseq
    %v327 = vshrl.u32 %v326, 7
    %v328 = vsub.s32 %v325, %v327
    %v329 = vrot.slane %v315, %v328
    %v330 = vcombine.high %v322, %v322
    %v331 = vcombine.high %v329, %v329
    %v332 = vcombine.high %v29, %v29
    %v334 = vunpack.c.l.s4 1983009808
    %v335 = vunpack.c.0.s8 %v334
    %v336 = vlaneseq
    %v337 = vshrl.u32 %v336, 7
    %v338 = vsub.s32 %v335, %v337
    %v339 = vrot.slane %v29, %v338
    %v341 = vunpack.c.l.s4 1983009808
    %v342 = vunpack.c.0.s8 %v341
    %v343 = vlaneseq
    %v344 = vshrl.u32 %v343, 7
    %v345 = vsub.s32 %v342, %v344
    %v346 = vrot.slane %v332, %v345
    %v347 = vcombine.high %v339, %v339
    %v348 = vcombine.high %v346, %v346
    %v349 = vcombine.high %v30, %v30
    %v351 = vunpack.c.l.s4 1983009808
    %v352 = vunpack.c.0.s8 %v351
    %v353 = vlaneseq
    %v354 = vshrl.u32 %v353, 7
    %v355 = vsub.s32 %v352, %v354
    %v356 = vrot.slane %v30, %v355
    %v358 = vunpack.c.l.s4 1983009808
    %v359 = vunpack.c.0.s8 %v358
    %v360 = vlaneseq
    %v361 = vshrl.u32 %v360, 7
    %v362 = vsub.s32 %v359, %v361
    %v363 = vrot.slane %v349, %v362
    %v364 = vcombine.high %v356, %v356
    %v365 = vcombine.high %v363, %v363
    %382 = vmatprep.subr.mxu0 0.0
    %383 = vmatpush1.msra.mxu0 %v31
    %384 = vmatprep.subr.mxu0 0.0
    %385 = vmatpush1.msra.mxu0 %v32
    %386 = vmatprep.subr.mxu0 0.0
    %387 = vmatpush1.msra.mxu0 %v33
    %388 = vmatprep.subr.mxu0 0.0
    %389 = vmatpush1.msra.mxu0 %v34
    %390 = vmatprep.subr.mxu0 0.0
    %391 = vmatpush1.msra.mxu0 %v35
    %392 = vmatprep.subr.mxu0 0.0
    %393 = vmatpush1.msra.mxu0 %v36
    %394 = vmatprep.subr.mxu0 0.0
    %395 = vmatpush1.msra.mxu0 %v37
    %396 = vmatprep.subr.mxu0 0.0
    %397 = vmatpush1.msra.mxu0 %v38
    %398 = vmatprep.subr.mxu0 0.0
    %399 = vmatpush1.msra.mxu0 %v39
    %400 = vmatprep.subr.mxu0 0.0
    %401 = vmatpush1.msra.mxu0 %v40
    %402 = vmatprep.subr.mxu0 0.0
    %403 = vmatpush1.msra.mxu0 %v41
    %404 = vmatprep.subr.mxu0 0.0
    %405 = vmatpush1.msra.mxu0 %v42
    %406 = vmatprep.subr.mxu0 0.0
    %407 = vmatpush1.msra.mxu0 %v43
    %408 = vmatprep.subr.mxu0 0.0
    %409 = vmatpush1.msra.mxu0 %v44
    %410 = vmatprep.subr.mxu0 0.0
    %411 = vmatpush1.msra.mxu0 %v45
    %412 = vmatprep.subr.mxu0 0.0
    %413 = vmatpush1.msra.mxu0 %v46
    %414 = vmatprep.subr.mxu0 0.0
    %415 = vmatpush1.msra.mxu0 %v47
    %416 = vmatprep.subr.mxu0 0.0
    %417 = vmatpush1.msra.mxu0 %v48
    %418 = vmatprep.subr.mxu0 0.0
    %419 = vmatpush1.msra.mxu0 %v49
    %420 = vmatprep.subr.mxu0 0.0
    %421 = vmatpush1.msra.mxu0 %v50
    %422 = vmatprep.subr.mxu0 0.0
    %423 = vmatpush1.msra.mxu0 %v51
    %424 = vmatprep.subr.mxu0 0.0
    %425 = vmatpush1.msra.mxu0 %v52
    %426 = vmatprep.subr.mxu0 0.0
    %427 = vmatpush1.msra.mxu0 %v53
    %428 = vmatprep.subr.mxu0 0.0
    %429 = vmatpush1.msra.mxu0 %v54
    %430 = vmatprep.subr.mxu0 0.0
    %431 = vmatpush1.msra.mxu0 %v55
    %432 = vmatprep.subr.mxu0 0.0
    %433 = vmatpush1.msra.mxu0 %v56
    %434 = vmatprep.subr.mxu0 0.0
    %435 = vmatpush1.msra.mxu0 %v57
    %436 = vmatprep.subr.mxu0 0.0
    %437 = vmatpush1.msra.mxu0 %v58
    %438 = vmatprep.subr.mxu0 0.0
    %439 = vmatpush1.msra.mxu0 %v59
    %440 = vmatprep.subr.mxu0 0.0
    %441 = vmatpush1.msra.mxu0 %v60
    %442 = vmatprep.subr.mxu0 0.0
    %443 = vmatpush1.msra.mxu0 %v61
    %444 = vmatprep.subr.mxu0 0.0
    %445 = vmatpush1.msra.mxu0 %v62
    %446 = vmatprep.mubr.f32.mxu0 %v313
    %447 = vmatmul.mubr.f32.gmra.mrb[0].mxu0 %v305
    %v448 = vpop.f32.mrb[0].mxu0
    %v449 = vadd.f32 %v292, %v448
    %v450 = vpop.f32.mrb[0].mxu0
    %451 = vdwg.mxu0
    %452 = vmatprep.subr.mxu0 0.0
    %453 = vmatpush1.msra.mxu0 %v63
    %454 = vmatprep.subr.mxu0 0.0
    %455 = vmatpush1.msra.mxu0 %v64
    %456 = vmatprep.subr.mxu0 0.0
    %457 = vmatpush1.msra.mxu0 %v65
    %458 = vmatprep.subr.mxu0 0.0
    %459 = vmatpush1.msra.mxu0 %v66
    %460 = vmatprep.subr.mxu0 0.0
    %461 = vmatpush1.msra.mxu0 %v67
    %462 = vmatprep.subr.mxu0 0.0
    %463 = vmatpush1.msra.mxu0 %v68
    %464 = vmatprep.subr.mxu0 0.0
    %465 = vmatpush1.msra.mxu0 %v69
    %466 = vmatprep.subr.mxu0 0.0
    %467 = vmatpush1.msra.mxu0 %v70
    %468 = vmatprep.subr.mxu0 0.0
    %469 = vmatpush1.msra.mxu0 %v71
    %470 = vmatprep.subr.mxu0 0.0
    %471 = vmatpush1.msra.mxu0 %v72
    %472 = vmatprep.subr.mxu0 0.0
    %473 = vmatpush1.msra.mxu0 %v73
    %474 = vmatprep.subr.mxu0 0.0
    %475 = vmatpush1.msra.mxu0 %v74
    %476 = vmatprep.subr.mxu0 0.0
    %477 = vmatpush1.msra.mxu0 %v75
    %478 = vmatprep.subr.mxu0 0.0
    %479 = vmatpush1.msra.mxu0 %v76
    %480 = vmatprep.subr.mxu0 0.0
    %481 = vmatpush1.msra.mxu0 %v77
    %482 = vmatprep.subr.mxu0 0.0
    %483 = vmatpush1.msra.mxu0 %v78
    %484 = vmatprep.subr.mxu0 0.0
    %485 = vmatpush1.msra.mxu0 %v79
    %486 = vmatprep.subr.mxu0 0.0
    %487 = vmatpush1.msra.mxu0 %v80
    %488 = vmatprep.subr.mxu0 0.0
    %489 = vmatpush1.msra.mxu0 %v81
    %490 = vmatprep.subr.mxu0 0.0
    %491 = vmatpush1.msra.mxu0 %v82
    %492 = vmatprep.subr.mxu0 0.0
    %493 = vmatpush1.msra.mxu0 %v83
    %494 = vmatprep.subr.mxu0 0.0
    %495 = vmatpush1.msra.mxu0 %v84
    %496 = vmatprep.subr.mxu0 0.0
    %497 = vmatpush1.msra.mxu0 %v85
    %498 = vmatprep.subr.mxu0 0.0
    %499 = vmatpush1.msra.mxu0 %v86
    %500 = vmatprep.subr.mxu0 0.0
    %501 = vmatpush1.msra.mxu0 %v87
    %502 = vmatprep.subr.mxu0 0.0
    %503 = vmatpush1.msra.mxu0 %v88
    %504 = vmatprep.subr.mxu0 0.0
    %505 = vmatpush1.msra.mxu0 %v89
    %506 = vmatprep.subr.mxu0 0.0
    %507 = vmatpush1.msra.mxu0 %v90
    %508 = vmatprep.subr.mxu0 0.0
    %509 = vmatpush1.msra.mxu0 %v91
    %510 = vmatprep.subr.mxu0 0.0
    %511 = vmatpush1.msra.mxu0 %v92
    %512 = vmatprep.subr.mxu0 0.0
    %513 = vmatpush1.msra.mxu0 %v93
    %514 = vmatprep.subr.mxu0 0.0
    %515 = vmatpush1.msra.mxu0 %v94
    %516 = vmatprep.mubr.f32.mxu0 %v314
    %517 = vmatmul.mubr.f32.gmra.mrb[0].mxu0 %v312
    %v518 = vpop.f32.mrb[0].mxu0
    %v519 = vadd.f32 %v449, %v518
    %v520 = vpop.f32.mrb[0].mxu0
    %521 = vdwg.mxu0
    %522 = vmatprep.subr.mxu0 0.0
    %523 = vmatpush1.msra.mxu0 %v95
    %524 = vmatprep.subr.mxu0 0.0
    %525 = vmatpush1.msra.mxu0 %v96
    %526 = vmatprep.subr.mxu0 0.0
    %527 = vmatpush1.msra.mxu0 %v97
    %528 = vmatprep.subr.mxu0 0.0
    %529 = vmatpush1.msra.mxu0 %v98
    %530 = vmatprep.subr.mxu0 0.0
    %531 = vmatpush1.msra.mxu0 %v99
    %532 = vmatprep.subr.mxu0 0.0
    %533 = vmatpush1.msra.mxu0 %v100
    %534 = vmatprep.subr.mxu0 0.0
    %535 = vmatpush1.msra.mxu0 %v101
    %536 = vmatprep.subr.mxu0 0.0
    %537 = vmatpush1.msra.mxu0 %v102
    %538 = vmatprep.subr.mxu0 0.0
    %539 = vmatpush1.msra.mxu0 %v103
    %540 = vmatprep.subr.mxu0 0.0
    %541 = vmatpush1.msra.mxu0 %v104
    %542 = vmatprep.subr.mxu0 0.0
    %543 = vmatpush1.msra.mxu0 %v105
    %544 = vmatprep.subr.mxu0 0.0
    %545 = vmatpush1.msra.mxu0 %v106
    %546 = vmatprep.subr.mxu0 0.0
    %547 = vmatpush1.msra.mxu0 %v107
    %548 = vmatprep.subr.mxu0 0.0
    %549 = vmatpush1.msra.mxu0 %v108
    %550 = vmatprep.subr.mxu0 0.0
    %551 = vmatpush1.msra.mxu0 %v109
    %552 = vmatprep.subr.mxu0 0.0
    %553 = vmatpush1.msra.mxu0 %v110
    %554 = vmatprep.subr.mxu0 0.0
    %555 = vmatpush1.msra.mxu0 %v111
    %556 = vmatprep.subr.mxu0 0.0
    %557 = vmatpush1.msra.mxu0 %v112
    %558 = vmatprep.subr.mxu0 0.0
    %559 = vmatpush1.msra.mxu0 %v113
    %560 = vmatprep.subr.mxu0 0.0
    %561 = vmatpush1.msra.mxu0 %v114
    %562 = vmatprep.subr.mxu0 0.0
    %563 = vmatpush1.msra.mxu0 %v115
    %564 = vmatprep.subr.mxu0 0.0
    %565 = vmatpush1.msra.mxu0 %v116
    %566 = vmatprep.subr.mxu0 0.0
    %567 = vmatpush1.msra.mxu0 %v117
    %568 = vmatprep.subr.mxu0 0.0
    %569 = vmatpush1.msra.mxu0 %v118
    %570 = vmatprep.subr.mxu0 0.0
    %571 = vmatpush1.msra.mxu0 %v119
    %572 = vmatprep.subr.mxu0 0.0
    %573 = vmatpush1.msra.mxu0 %v120
    %574 = vmatprep.subr.mxu0 0.0
    %575 = vmatpush1.msra.mxu0 %v121
    %576 = vmatprep.subr.mxu0 0.0
    %577 = vmatpush1.msra.mxu0 %v122
    %578 = vmatprep.subr.mxu0 0.0
    %579 = vmatpush1.msra.mxu0 %v123
    %580 = vmatprep.subr.mxu0 0.0
    %581 = vmatpush1.msra.mxu0 %v124
    %582 = vmatprep.subr.mxu0 0.0
    %583 = vmatpush1.msra.mxu0 %v125
    %584 = vmatprep.subr.mxu0 0.0
    %585 = vmatpush1.msra.mxu0 %v126
    %586 = vmatprep.mubr.f32.mxu0 %v330
    %587 = vmatmul.mubr.f32.gmra.mrb[0].mxu0 %v322
    %v588 = vpop.f32.mrb[0].mxu0
    %v589 = vadd.f32 %v519, %v588
    %v590 = vpop.f32.mrb[0].mxu0
    %591 = vdwg.mxu0
    %592 = vmatprep.subr.mxu0 0.0
    %593 = vmatpush1.msra.mxu0 %v127
    %594 = vmatprep.subr.mxu0 0.0
    %595 = vmatpush1.msra.mxu0 %v128
    %596 = vmatprep.subr.mxu0 0.0
    %597 = vmatpush1.msra.mxu0 %v129
    %598 = vmatprep.subr.mxu0 0.0
    %599 = vmatpush1.msra.mxu0 %v130
    %600 = vmatprep.subr.mxu0 0.0
    %601 = vmatpush1.msra.mxu0 %v131
    %602 = vmatprep.subr.mxu0 0.0
    %603 = vmatpush1.msra.mxu0 %v132
    %604 = vmatprep.subr.mxu0 0.0
    %605 = vmatpush1.msra.mxu0 %v133
    %606 = vmatprep.subr.mxu0 0.0
    %607 = vmatpush1.msra.mxu0 %v134
    %608 = vmatprep.subr.mxu0 0.0
    %609 = vmatpush1.msra.mxu0 %v135
    %610 = vmatprep.subr.mxu0 0.0
    %611 = vmatpush1.msra.mxu0 %v136
    %612 = vmatprep.subr.mxu0 0.0
    %613 = vmatpush1.msra.mxu0 %v137
    %614 = vmatprep.subr.mxu0 0.0
    %615 = vmatpush1.msra.mxu0 %v138
    %616 = vmatprep.subr.mxu0 0.0
    %617 = vmatpush1.msra.mxu0 %v139
    %618 = vmatprep.subr.mxu0 0.0
    %619 = vmatpush1.msra.mxu0 %v140
    %620 = vmatprep.subr.mxu0 0.0
    %621 = vmatpush1.msra.mxu0 %v141
    %622 = vmatprep.subr.mxu0 0.0
    %623 = vmatpush1.msra.mxu0 %v142
    %624 = vmatprep.subr.mxu0 0.0
    %625 = vmatpush1.msra.mxu0 %v143
    %626 = vmatprep.subr.mxu0 0.0
    %627 = vmatpush1.msra.mxu0 %v144
    %628 = vmatprep.subr.mxu0 0.0
    %629 = vmatpush1.msra.mxu0 %v145
    %630 = vmatprep.subr.mxu0 0.0
    %631 = vmatpush1.msra.mxu0 %v146
    %632 = vmatprep.subr.mxu0 0.0
    %633 = vmatpush1.msra.mxu0 %v147
    %634 = vmatprep.subr.mxu0 0.0
    %635 = vmatpush1.msra.mxu0 %v148
    %636 = vmatprep.subr.mxu0 0.0
    %637 = vmatpush1.msra.mxu0 %v149
    %638 = vmatprep.subr.mxu0 0.0
    %639 = vmatpush1.msra.mxu0 %v150
    %640 = vmatprep.subr.mxu0 0.0
    %641 = vmatpush1.msra.mxu0 %v151
    %642 = vmatprep.subr.mxu0 0.0
    %643 = vmatpush1.msra.mxu0 %v152
    %644 = vmatprep.subr.mxu0 0.0
    %645 = vmatpush1.msra.mxu0 %v153
    %646 = vmatprep.subr.mxu0 0.0
    %647 = vmatpush1.msra.mxu0 %v154
    %648 = vmatprep.subr.mxu0 0.0
    %649 = vmatpush1.msra.mxu0 %v155
    %650 = vmatprep.subr.mxu0 0.0
    %651 = vmatpush1.msra.mxu0 %v156
    %652 = vmatprep.subr.mxu0 0.0
    %653 = vmatpush1.msra.mxu0 %v157
    %654 = vmatprep.subr.mxu0 0.0
    %655 = vmatpush1.msra.mxu0 %v158
    %656 = vmatprep.mubr.f32.mxu0 %v331
    %657 = vmatmul.mubr.f32.gmra.mrb[0].mxu0 %v329
    %v658 = vpop.f32.mrb[0].mxu0
    %v659 = vadd.f32 %v589, %v658
    %v660 = vpop.f32.mrb[0].mxu0
    %661 = vdwg.mxu0
    %662 = vmatprep.subr.mxu0 0.0
    %663 = vmatpush1.msra.mxu0 %v159
    %664 = vmatprep.subr.mxu0 0.0
    %665 = vmatpush1.msra.mxu0 %v160
    %666 = vmatprep.subr.mxu0 0.0
    %667 = vmatpush1.msra.mxu0 %v161
    %668 = vmatprep.subr.mxu0 0.0
    %669 = vmatpush1.msra.mxu0 %v162
    %670 = vmatprep.subr.mxu0 0.0
    %671 = vmatpush1.msra.mxu0 %v163
    %672 = vmatprep.subr.mxu0 0.0
    %673 = vmatpush1.msra.mxu0 %v164
    %674 = vmatprep.subr.mxu0 0.0
    %675 = vmatpush1.msra.mxu0 %v165
    %676 = vmatprep.subr.mxu0 0.0
    %677 = vmatpush1.msra.mxu0 %v166
    %678 = vmatprep.subr.mxu0 0.0
    %679 = vmatpush1.msra.mxu0 %v167
    %680 = vmatprep.subr.mxu0 0.0
    %681 = vmatpush1.msra.mxu0 %v168
    %682 = vmatprep.subr.mxu0 0.0
    %683 = vmatpush1.msra.mxu0 %v169
    %684 = vmatprep.subr.mxu0 0.0
    %685 = vmatpush1.msra.mxu0 %v170
    %686 = vmatprep.subr.mxu0 0.0
    %687 = vmatpush1.msra.mxu0 %v171
    %688 = vmatprep.subr.mxu0 0.0
    %689 = vmatpush1.msra.mxu0 %v172
    %690 = vmatprep.subr.mxu0 0.0
    %691 = vmatpush1.msra.mxu0 %v173
    %692 = vmatprep.subr.mxu0 0.0
    %693 = vmatpush1.msra.mxu0 %v174
    %694 = vmatprep.subr.mxu0 0.0
    %695 = vmatpush1.msra.mxu0 %v175
    %696 = vmatprep.subr.mxu0 0.0
    %697 = vmatpush1.msra.mxu0 %v176
    %698 = vmatprep.subr.mxu0 0.0
    %699 = vmatpush1.msra.mxu0 %v177
    %700 = vmatprep.subr.mxu0 0.0
    %701 = vmatpush1.msra.mxu0 %v178
    %702 = vmatprep.subr.mxu0 0.0
    %703 = vmatpush1.msra.mxu0 %v179
    %704 = vmatprep.subr.mxu0 0.0
    %705 = vmatpush1.msra.mxu0 %v180
    %706 = vmatprep.subr.mxu0 0.0
    %707 = vmatpush1.msra.mxu0 %v181
    %708 = vmatprep.subr.mxu0 0.0
    %709 = vmatpush1.msra.mxu0 %v182
    %710 = vmatprep.subr.mxu0 0.0
    %711 = vmatpush1.msra.mxu0 %v183
    %712 = vmatprep.subr.mxu0 0.0
    %713 = vmatpush1.msra.mxu0 %v184
    %714 = vmatprep.subr.mxu0 0.0
    %715 = vmatpush1.msra.mxu0 %v185
    %716 = vmatprep.subr.mxu0 0.0
    %717 = vmatpush1.msra.mxu0 %v186
    %718 = vmatprep.subr.mxu0 0.0
    %719 = vmatpush1.msra.mxu0 %v187
    %720 = vmatprep.subr.mxu0 0.0
    %721 = vmatpush1.msra.mxu0 %v188
    %722 = vmatprep.subr.mxu0 0.0
    %723 = vmatpush1.msra.mxu0 %v189
    %724 = vmatprep.subr.mxu0 0.0
    %725 = vmatpush1.msra.mxu0 %v190
    %726 = vmatprep.mubr.f32.mxu0 %v347
    %727 = vmatmul.mubr.f32.gmra.mrb[0].mxu0 %v339
    %v728 = vpop.f32.mrb[0].mxu0
    %v729 = vadd.f32 %v659, %v728
    %v730 = vpop.f32.mrb[0].mxu0
    %731 = vdwg.mxu0
    %732 = vmatprep.subr.mxu0 0.0
    %733 = vmatpush1.msra.mxu0 %v191
    %734 = vmatprep.subr.mxu0 0.0
    %735 = vmatpush1.msra.mxu0 %v192
    %736 = vmatprep.subr.mxu0 0.0
    %737 = vmatpush1.msra.mxu0 %v193
    %738 = vmatprep.subr.mxu0 0.0
    %739 = vmatpush1.msra.mxu0 %v194
    %740 = vmatprep.subr.mxu0 0.0
    %741 = vmatpush1.msra.mxu0 %v195
    %742 = vmatprep.subr.mxu0 0.0
    %743 = vmatpush1.msra.mxu0 %v196
    %744 = vmatprep.subr.mxu0 0.0
    %745 = vmatpush1.msra.mxu0 %v197
    %746 = vmatprep.subr.mxu0 0.0
    %747 = vmatpush1.msra.mxu0 %v198
    %748 = vmatprep.subr.mxu0 0.0
    %749 = vmatpush1.msra.mxu0 %v199
    %750 = vmatprep.subr.mxu0 0.0
    %751 = vmatpush1.msra.mxu0 %v200
    %752 = vmatprep.subr.mxu0 0.0
    %753 = vmatpush1.msra.mxu0 %v201
    %754 = vmatprep.subr.mxu0 0.0
    %755 = vmatpush1.msra.mxu0 %v202
    %756 = vmatprep.subr.mxu0 0.0
    %757 = vmatpush1.msra.mxu0 %v203
    %758 = vmatprep.subr.mxu0 0.0
    %759 = vmatpush1.msra.mxu0 %v204
    %760 = vmatprep.subr.mxu0 0.0
    %761 = vmatpush1.msra.mxu0 %v205
    %762 = vmatprep.subr.mxu0 0.0
    %763 = vmatpush1.msra.mxu0 %v206
    %764 = vmatprep.subr.mxu0 0.0
    %765 = vmatpush1.msra.mxu0 %v207
    %766 = vmatprep.subr.mxu0 0.0
    %767 = vmatpush1.msra.mxu0 %v208
    %768 = vmatprep.subr.mxu0 0.0
    %769 = vmatpush1.msra.mxu0 %v209
    %770 = vmatprep.subr.mxu0 0.0
    %771 = vmatpush1.msra.mxu0 %v210
    %772 = vmatprep.subr.mxu0 0.0
    %773 = vmatpush1.msra.mxu0 %v211
    %774 = vmatprep.subr.mxu0 0.0
    %775 = vmatpush1.msra.mxu0 %v212
    %776 = vmatprep.subr.mxu0 0.0
    %777 = vmatpush1.msra.mxu0 %v213
    %778 = vmatprep.subr.mxu0 0.0
    %779 = vmatpush1.msra.mxu0 %v214
    %780 = vmatprep.subr.mxu0 0.0
    %781 = vmatpush1.msra.mxu0 %v215
    %782 = vmatprep.subr.mxu0 0.0
    %783 = vmatpush1.msra.mxu0 %v216
    %784 = vmatprep.subr.mxu0 0.0
    %785 = vmatpush1.msra.mxu0 %v217
    %786 = vmatprep.subr.mxu0 0.0
    %787 = vmatpush1.msra.mxu0 %v218
    %788 = vmatprep.subr.mxu0 0.0
    %789 = vmatpush1.msra.mxu0 %v219
    %790 = vmatprep.subr.mxu0 0.0
    %791 = vmatpush1.msra.mxu0 %v220
    %792 = vmatprep.subr.mxu0 0.0
    %793 = vmatpush1.msra.mxu0 %v221
    %794 = vmatprep.subr.mxu0 0.0
    %795 = vmatpush1.msra.mxu0 %v222
    %796 = vmatprep.mubr.f32.mxu0 %v348
    %797 = vmatmul.mubr.f32.gmra.mrb[0].mxu0 %v346
    %v798 = vpop.f32.mrb[0].mxu0
    %v799 = vadd.f32 %v729, %v798
    %v800 = vpop.f32.mrb[0].mxu0
    %801 = vdwg.mxu0
    %802 = vmatprep.subr.mxu0 0.0
    %803 = vmatpush1.msra.mxu0 %v223
    %804 = vmatprep.subr.mxu0 0.0
    %805 = vmatpush1.msra.mxu0 %v224
    %806 = vmatprep.subr.mxu0 0.0
    %807 = vmatpush1.msra.mxu0 %v225
    %808 = vmatprep.subr.mxu0 0.0
    %809 = vmatpush1.msra.mxu0 %v226
    %810 = vmatprep.subr.mxu0 0.0
    %811 = vmatpush1.msra.mxu0 %v227
    %812 = vmatprep.subr.mxu0 0.0
    %813 = vmatpush1.msra.mxu0 %v228
    %814 = vmatprep.subr.mxu0 0.0
    %815 = vmatpush1.msra.mxu0 %v229
    %816 = vmatprep.subr.mxu0 0.0
    %817 = vmatpush1.msra.mxu0 %v230
    %818 = vmatprep.subr.mxu0 0.0
    %819 = vmatpush1.msra.mxu0 %v231
    %820 = vmatprep.subr.mxu0 0.0
    %821 = vmatpush1.msra.mxu0 %v232
    %822 = vmatprep.subr.mxu0 0.0
    %823 = vmatpush1.msra.mxu0 %v233
    %824 = vmatprep.subr.mxu0 0.0
    %825 = vmatpush1.msra.mxu0 %v234
    %826 = vmatprep.subr.mxu0 0.0
    %827 = vmatpush1.msra.mxu0 %v235
    %828 = vmatprep.subr.mxu0 0.0
    %829 = vmatpush1.msra.mxu0 %v236
    %830 = vmatprep.subr.mxu0 0.0
    %831 = vmatpush1.msra.mxu0 %v237
    %832 = vmatprep.subr.mxu0 0.0
    %833 = vmatpush1.msra.mxu0 %v238
    %834 = vmatprep.subr.mxu0 0.0
    %835 = vmatpush1.msra.mxu0 %v239
    %836 = vmatprep.subr.mxu0 0.0
    %837 = vmatpush1.msra.mxu0 %v240
    %838 = vmatprep.subr.mxu0 0.0
    %839 = vmatpush1.msra.mxu0 %v241
    %840 = vmatprep.subr.mxu0 0.0
    %841 = vmatpush1.msra.mxu0 %v242
    %842 = vmatprep.subr.mxu0 0.0
    %843 = vmatpush1.msra.mxu0 %v243
    %844 = vmatprep.subr.mxu0 0.0
    %845 = vmatpush1.msra.mxu0 %v244
    %846 = vmatprep.subr.mxu0 0.0
    %847 = vmatpush1.msra.mxu0 %v245
    %848 = vmatprep.subr.mxu0 0.0
    %849 = vmatpush1.msra.mxu0 %v246
    %850 = vmatprep.subr.mxu0 0.0
    %851 = vmatpush1.msra.mxu0 %v247
    %852 = vmatprep.subr.mxu0 0.0
    %853 = vmatpush1.msra.mxu0 %v248
    %854 = vmatprep.subr.mxu0 0.0
    %855 = vmatpush1.msra.mxu0 %v249
    %856 = vmatprep.subr.mxu0 0.0
    %857 = vmatpush1.msra.mxu0 %v250
    %858 = vmatprep.subr.mxu0 0.0
    %859 = vmatpush1.msra.mxu0 %v251
    %860 = vmatprep.subr.mxu0 0.0
    %861 = vmatpush1.msra.mxu0 %v252
    %862 = vmatprep.subr.mxu0 0.0
    %863 = vmatpush1.msra.mxu0 %v253
    %864 = vmatprep.subr.mxu0 0.0
    %865 = vmatpush1.msra.mxu0 %v254
    %866 = vmatprep.mubr.f32.mxu0 %v364
    %867 = vmatmul.mubr.f32.gmra.mrb[0].mxu0 %v356
    %v868 = vpop.f32.mrb[0].mxu0
    %v869 = vadd.f32 %v799, %v868
    %v870 = vpop.f32.mrb[0].mxu0
    %871 = vdwg.mxu0
    %872 = vmatprep.subr.mxu0 0.0
    %873 = vmatpush1.msra.mxu0 %v255
    %874 = vmatprep.subr.mxu0 0.0
    %875 = vmatpush1.msra.mxu0 %v256
    %876 = vmatprep.subr.mxu0 0.0
    %877 = vmatpush1.msra.mxu0 %v257
    %878 = vmatprep.subr.mxu0 0.0
    %879 = vmatpush1.msra.mxu0 %v258
    %880 = vmatprep.subr.mxu0 0.0
    %881 = vmatpush1.msra.mxu0 %v259
    %882 = vmatprep.subr.mxu0 0.0
    %883 = vmatpush1.msra.mxu0 %v260
    %884 = vmatprep.subr.mxu0 0.0
    %885 = vmatpush1.msra.mxu0 %v261
    %886 = vmatprep.subr.mxu0 0.0
    %887 = vmatpush1.msra.mxu0 %v262
    %888 = vmatprep.subr.mxu0 0.0
    %889 = vmatpush1.msra.mxu0 %v263
    %890 = vmatprep.subr.mxu0 0.0
    %891 = vmatpush1.msra.mxu0 %v264
    %892 = vmatprep.subr.mxu0 0.0
    %893 = vmatpush1.msra.mxu0 %v265
    %894 = vmatprep.subr.mxu0 0.0
    %895 = vmatpush1.msra.mxu0 %v266
    %896 = vmatprep.subr.mxu0 0.0
    %897 = vmatpush1.msra.mxu0 %v267
    %898 = vmatprep.subr.mxu0 0.0
    %899 = vmatpush1.msra.mxu0 %v268
    %900 = vmatprep.subr.mxu0 0.0
    %901 = vmatpush1.msra.mxu0 %v269
    %902 = vmatprep.subr.mxu0 0.0
    %903 = vmatpush1.msra.mxu0 %v270
    %904 = vmatprep.subr.mxu0 0.0
    %905 = vmatpush1.msra.mxu0 %v271
    %906 = vmatprep.subr.mxu0 0.0
    %907 = vmatpush1.msra.mxu0 %v272
    %908 = vmatprep.subr.mxu0 0.0
    %909 = vmatpush1.msra.mxu0 %v273
    %910 = vmatprep.subr.mxu0 0.0
    %911 = vmatpush1.msra.mxu0 %v274
    %912 = vmatprep.subr.mxu0 0.0
    %913 = vmatpush1.msra.mxu0 %v275
    %914 = vmatprep.subr.mxu0 0.0
    %915 = vmatpush1.msra.mxu0 %v276
    %916 = vmatprep.subr.mxu0 0.0
    %917 = vmatpush1.msra.mxu0 %v277
    %918 = vmatprep.subr.mxu0 0.0
    %919 = vmatpush1.msra.mxu0 %v278
    %920 = vmatprep.subr.mxu0 0.0
    %921 = vmatpush1.msra.mxu0 %v279
    %922 = vmatprep.subr.mxu0 0.0
    %923 = vmatpush1.msra.mxu0 %v280
    %924 = vmatprep.subr.mxu0 0.0
    %925 = vmatpush1.msra.mxu0 %v281
    %926 = vmatprep.subr.mxu0 0.0
    %927 = vmatpush1.msra.mxu0 %v282
    %928 = vmatprep.subr.mxu0 0.0
    %929 = vmatpush1.msra.mxu0 %v283
    %930 = vmatprep.subr.mxu0 0.0
    %931 = vmatpush1.msra.mxu0 %v284
    %932 = vmatprep.subr.mxu0 0.0
    %933 = vmatpush1.msra.mxu0 %v285
    %934 = vmatprep.subr.mxu0 0.0
    %935 = vmatpush1.msra.mxu0 %v286
    %936 = vmatprep.mubr.f32.mxu0 %v365
    %937 = vmatmul.mubr.f32.gmra.mrb[0].mxu0 %v363
    %v938 = vpop.f32.mrb[0].mxu0
    %v939 = vadd.f32 %v869, %v938
    %v940 = vpop.f32.mrb[0].mxu0
    %941 = vdwg.mxu0
    %v942 = vmax.f32 %v939, 0.0
    %v943 = vld [vmem:[%s3] sm:$0xff]
    %v944 = vld [vmem:[%s3 + $0x8] sm:$0xff]
    %v945 = vld [vmem:[%s3 + $0x10] sm:$0xff]
    %v946 = vld [vmem:[%s3 + $0x18] sm:$0xff]
    %v947 = vld [vmem:[%s3 + $0x20] sm:$0xff]
    %v948 = vld [vmem:[%s3 + $0x28] sm:$0xff]
    %v949 = vld [vmem:[%s3 + $0x30] sm:$0xff]
    %v950 = vld [vmem:[%s3 + $0x38] sm:$0xff]
    %v951 = vld [vmem:[%s3 + $0x40] sm:$0xff]
    %v952 = vld [vmem:[%s3 + $0x48] sm:$0xff]
    %v953 = vld [vmem:[%s3 + $0x50] sm:$0xff]
    %v954 = vld [vmem:[%s3 + $0x58] sm:$0xff]
    %v955 = vld [vmem:[%s3 + $0x60] sm:$0xff]
    %v956 = vld [vmem:[%s3 + $0x68] sm:$0xff]
    %v957 = vld [vmem:[%s3 + $0x70] sm:$0xff]
    %v958 = vld [vmem:[%s3 + $0x78] sm:$0xff]
    %v959 = vld [vmem:[%s4] sm:$0x1]
    %v961 = vlaneseq
    %v962 = vshrl.u32 %v961, 7
    %v963 = vsub.s32 0, %v962
    %v964 = vrot.slane %v959, %v963
    %966 = vmatprep.subr.mxu0 0.0
    %967 = vmatpush1.msra.mxu0 %v943
    %968 = vmatprep.subr.mxu0 0.0
    %969 = vmatpush1.msra.mxu0 %v944
    %970 = vmatprep.subr.mxu0 0.0
    %971 = vmatpush1.msra.mxu0 %v945
    %972 = vmatprep.subr.mxu0 0.0
    %973 = vmatpush1.msra.mxu0 %v946
    %974 = vmatprep.subr.mxu0 0.0
    %975 = vmatpush1.msra.mxu0 %v947
    %976 = vmatprep.subr.mxu0 0.0
    %977 = vmatpush1.msra.mxu0 %v948
    %978 = vmatprep.subr.mxu0 0.0
    %979 = vmatpush1.msra.mxu0 %v949
    %980 = vmatprep.subr.mxu0 0.0
    %981 = vmatpush1.msra.mxu0 %v950
    %982 = vmatprep.subr.mxu0 0.0
    %983 = vmatpush1.msra.mxu0 %v951
    %984 = vmatprep.subr.mxu0 0.0
    %985 = vmatpush1.msra.mxu0 %v952
    %986 = vmatprep.subr.mxu0 0.0
    %987 = vmatpush1.msra.mxu0 %v953
    %988 = vmatprep.subr.mxu0 0.0
    %989 = vmatpush1.msra.mxu0 %v954
    %990 = vmatprep.subr.mxu0 0.0
    %991 = vmatpush1.msra.mxu0 %v955
    %992 = vmatprep.subr.mxu0 0.0
    %993 = vmatpush1.msra.mxu0 %v956
    %994 = vmatprep.subr.mxu0 0.0
    %995 = vmatpush1.msra.mxu0 %v957
    %996 = vmatprep.subr.mxu0 0.0
    %997 = vmatpush1.msra.mxu0 %v958
    %998 = vmatprep.subr.mxu0 0.0
    %999 = vmatpush1.msra.mxu0 0.0
    %1000 = vmatprep.subr.mxu0 0.0
    %1001 = vmatpush1.msra.mxu0 0.0
    %1002 = vmatprep.subr.mxu0 0.0
    %1003 = vmatpush1.msra.mxu0 0.0
    %1004 = vmatprep.subr.mxu0 0.0
    %1005 = vmatpush1.msra.mxu0 0.0
    %1006 = vmatprep.subr.mxu0 0.0
    %1007 = vmatpush1.msra.mxu0 0.0
    %1008 = vmatprep.subr.mxu0 0.0
    %1009 = vmatpush1.msra.mxu0 0.0
    %1010 = vmatprep.subr.mxu0 0.0
    %1011 = vmatpush1.msra.mxu0 0.0
    %1012 = vmatprep.subr.mxu0 0.0
    %1013 = vmatpush1.msra.mxu0 0.0
    %1014 = vmatprep.subr.mxu0 0.0
    %1015 = vmatpush1.msra.mxu0 0.0
    %1016 = vmatprep.subr.mxu0 0.0
    %1017 = vmatpush1.msra.mxu0 0.0
    %1018 = vmatprep.subr.mxu0 0.0
    %1019 = vmatpush1.msra.mxu0 0.0
    %1020 = vmatprep.subr.mxu0 0.0
    %1021 = vmatpush1.msra.mxu0 0.0
    %1022 = vmatprep.subr.mxu0 0.0
    %1023 = vmatpush1.msra.mxu0 0.0
    %1024 = vmatprep.subr.mxu0 0.0
    %1025 = vmatpush1.msra.mxu0 0.0
    %1026 = vmatprep.subr.mxu0 0.0
    %1027 = vmatpush1.msra.mxu0 0.0
    %1028 = vmatprep.subr.mxu0 0.0
    %1029 = vmatpush1.msra.mxu0 0.0
    %1030 = vmatprep.mubr.f32.mxu0 0.0
    %1031 = vmatmul.mubr.f32.gmra.mrb[0].mxu0 %v942
    %v1032 = vpop.f32.mrb[0].mxu0
    %v1033 = vadd.f32 %v964, %v1032
    %v1034 = vpop.f32.mrb[0].mxu0
    %1035 = vdwg.mxu0
    %v1036 = vmax.f32 %v1033, 0.0
    %v1037 = vld [vmem:[%s5] sm:$0xff]
    %v1038 = vld [vmem:[%s5 + $0x8] sm:$0xff]
    %v1039 = vld [vmem:[%s5 + $0x10] sm:$0xff]
    %v1040 = vld [vmem:[%s5 + $0x18] sm:$0xff]
    %v1041 = vld [vmem:[%s5 + $0x20] sm:$0xff]
    %v1042 = vld [vmem:[%s5 + $0x28] sm:$0xff]
    %v1043 = vld [vmem:[%s5 + $0x30] sm:$0xff]
    %v1044 = vld [vmem:[%s5 + $0x38] sm:$0xff]
    %v1045 = vld [vmem:[%s5 + $0x40] sm:$0xff]
    %v1046 = vld [vmem:[%s5 + $0x48] sm:$0xff]
    %v1047 = vld [vmem:[%s5 + $0x50] sm:$0xff]
    %v1048 = vld [vmem:[%s5 + $0x58] sm:$0xff]
    %v1049 = vld [vmem:[%s5 + $0x60] sm:$0xff]
    %v1050 = vld [vmem:[%s5 + $0x68] sm:$0xff]
    %v1051 = vld [vmem:[%s5 + $0x70] sm:$0xff]
    %v1052 = vld [vmem:[%s5 + $0x78] sm:$0xff]
    %v1053 = vld [vmem:[%s6] sm:$0x1]
    %v1055 = vlaneseq
    %v1056 = vshrl.u32 %v1055, 7
    %v1057 = vsub.s32 0, %v1056
    %v1058 = vrot.slane %v1053, %v1057
    %1060 = vmatprep.subr.mxu0 0.0
    %1061 = vmatpush1.msra.mxu0 %v1037
    %1062 = vmatprep.subr.mxu0 0.0
    %1063 = vmatpush1.msra.mxu0 %v1038
    %1064 = vmatprep.subr.mxu0 0.0
    %1065 = vmatpush1.msra.mxu0 %v1039
    %1066 = vmatprep.subr.mxu0 0.0
    %1067 = vmatpush1.msra.mxu0 %v1040
    %1068 = vmatprep.subr.mxu0 0.0
    %1069 = vmatpush1.msra.mxu0 %v1041
    %1070 = vmatprep.subr.mxu0 0.0
    %1071 = vmatpush1.msra.mxu0 %v1042
    %1072 = vmatprep.subr.mxu0 0.0
    %1073 = vmatpush1.msra.mxu0 %v1043
    %1074 = vmatprep.subr.mxu0 0.0
    %1075 = vmatpush1.msra.mxu0 %v1044
    %1076 = vmatprep.subr.mxu0 0.0
    %1077 = vmatpush1.msra.mxu0 %v1045
    %1078 = vmatprep.subr.mxu0 0.0
    %1079 = vmatpush1.msra.mxu0 %v1046
    %1080 = vmatprep.subr.mxu0 0.0
    %1081 = vmatpush1.msra.mxu0 %v1047
    %1082 = vmatprep.subr.mxu0 0.0
    %1083 = vmatpush1.msra.mxu0 %v1048
    %1084 = vmatprep.subr.mxu0 0.0
    %1085 = vmatpush1.msra.mxu0 %v1049
    %1086 = vmatprep.subr.mxu0 0.0
    %1087 = vmatpush1.msra.mxu0 %v1050
    %1088 = vmatprep.subr.mxu0 0.0
    %1089 = vmatpush1.msra.mxu0 %v1051
    %1090 = vmatprep.subr.mxu0 0.0
    %1091 = vmatpush1.msra.mxu0 %v1052
    %1092 = vmatprep.subr.mxu0 0.0
    %1093 = vmatpush1.msra.mxu0 0.0
    %1094 = vmatprep.subr.mxu0 0.0
    %1095 = vmatpush1.msra.mxu0 0.0
    %1096 = vmatprep.subr.mxu0 0.0
    %1097 = vmatpush1.msra.mxu0 0.0
    %1098 = vmatprep.subr.mxu0 0.0
    %1099 = vmatpush1.msra.mxu0 0.0
    %1100 = vmatprep.subr.mxu0 0.0
    %1101 = vmatpush1.msra.mxu0 0.0
    %1102 = vmatprep.subr.mxu0 0.0
    %1103 = vmatpush1.msra.mxu0 0.0
    %1104 = vmatprep.subr.mxu0 0.0
    %1105 = vmatpush1.msra.mxu0 0.0
    %1106 = vmatprep.subr.mxu0 0.0
    %1107 = vmatpush1.msra.mxu0 0.0
    %1108 = vmatprep.subr.mxu0 0.0
    %1109 = vmatpush1.msra.mxu0 0.0
    %1110 = vmatprep.subr.mxu0 0.0
    %1111 = vmatpush1.msra.mxu0 0.0
    %1112 = vmatprep.subr.mxu0 0.0
    %1113 = vmatpush1.msra.mxu0 0.0
    %1114 = vmatprep.subr.mxu0 0.0
    %1115 = vmatpush1.msra.mxu0 0.0
    %1116 = vmatprep.subr.mxu0 0.0
    %1117 = vmatpush1.msra.mxu0 0.0
    %1118 = vmatprep.subr.mxu0 0.0
    %1119 = vmatpush1.msra.mxu0 0.0
    %1120 = vmatprep.subr.mxu0 0.0
    %1121 = vmatpush1.msra.mxu0 0.0
    %1122 = vmatprep.subr.mxu0 0.0
    %1123 = vmatpush1.msra.mxu0 0.0
    %1124 = vmatprep.mubr.f32.mxu0 0.0
    %1125 = vmatmul.mubr.f32.gmra.mrb[0].mxu0 %v1036
    %v1126 = vpop.f32.mrb[0].mxu0
    %v1127 = vadd.f32 %v1058, %v1126
    %v1128 = vpop.f32.mrb[0].mxu0
    %1129 = vdwg.mxu0
    %vm1130 = vcmask 1041408
    %v1131 = vsel %vm1130, %v1127, -inf
    %1132 = vmax.xlane.f32.xlu0 %v1131
    %v1133 = vpop.xlane.xlu0 %1132
    %v1134 = vsub.f32 %v1127, %v1133
    %v1135 = vmul.f32 %v1134, 1.442695
    %v1136 = vpow.pop %v1135
    %v1137 = vsel %vm1130, %v1136, 0.0
    %1138 = vadd.xlane.f32.xlu0 %v1137
    %v1139 = vpop.xlane.xlu0 %1138
    %v1140 = vrcp.pop %v1139
    %v1141 = vmul.f32 %v1136, %v1140
    %1142 = vst [vmem:[#allocation2] sm:$0x3] %v1141
    // Predicated region
    $region30: #{cnn_forward.5} parent=1 // pred_check
      _
    $region31: #{cnn_forward.5} parent=1 // pred_check_branch
      %1144 = sbr.rel (0) target = $region33
    $region32: #{cnn_forward.5} parent=1 // pred_region
      %s1146 = ssub.s32 32, 32
      %1147 = vsyncadd [#allocation3], %s1146
      %s1149 = sshll.u32 [#allocation2], 4
      %s1150 = int_to_ptr.vmem [resolvable:$true] %s1149
      %1152 = dma.vmem_to_hbm [thread:$0]  %s1150, 32, %s7, [#allocation3]
    $region33: #{cnn_forward.5} parent=1 // pred_fallthru
      _
    // Predicated region
    $region34: #{cnn_forward.5} parent=1 // pred_check
      _
    $region35: #{cnn_forward.5} parent=1 // pred_check_branch
      %1154 = sbr.rel (0) target = $region37
    $region36: #{cnn_forward.5} parent=1 // pred_region
      %1155 = dma.done [#allocation3], 32
    $region37: #{cnn_forward.5} parent=1 // pred_fallthru
      _
    %1156 = vsyncpa [#allocation3], 1

</llo_original>
